<compile_context>
chip_gen: v5e
topology: v5e:2x2
jax: 0.10.0
libtpu: 0.0.40
codegen_flags: <defaults>
</compile_context>

<pallas_src>
import functools
import math

import jax
import jax.numpy as jnp
from jax import lax
from jax.experimental import pallas as pl
from jax.experimental.pallas import tpu as pltpu


# ---------------------------------------------------------------------------
# Interpolation matrices (depend only on static shapes).
# ---------------------------------------------------------------------------
def _interp_matrix(out_size: int, in_size: int, mode: str, align_corners: bool,
                   dtype) -> jnp.ndarray:
    """Row-interpolation matrix M of shape (out_size, in_size): y = M @ x."""
    if mode == "nearest":
        # PyTorch 'nearest': src = floor(dst * in/out)
        idx = jnp.floor(
            jnp.arange(out_size, dtype=jnp.float32) * (in_size / out_size)
        ).astype(jnp.int32)
        idx = jnp.clip(idx, 0, in_size - 1)
        m = jax.nn.one_hot(idx, in_size, dtype=jnp.float32)
    elif mode in ("bilinear", "linear"):
        if align_corners:
            if out_size > 1:
                src = jnp.arange(out_size, dtype=jnp.float32) * (
                    (in_size - 1) / (out_size - 1))
            else:
                src = jnp.zeros((out_size,), dtype=jnp.float32)  # PyTorch degenerate case
        else:
            src = (jnp.arange(out_size, dtype=jnp.float32) + 0.5) * (in_size / out_size) - 0.5
            src = jnp.clip(src, 0.0, float(in_size - 1))
        x0 = jnp.floor(src).astype(jnp.int32)
        x1 = jnp.minimum(x0 + 1, in_size - 1)
        w1 = src - x0.astype(jnp.float32)
        w0 = 1.0 - w1
        m = (jax.nn.one_hot(x0, in_size, dtype=jnp.float32) * w0[:, None]
             + jax.nn.one_hot(x1, in_size, dtype=jnp.float32) * w1[:, None])
    else:
        # TODO(synk): bicubic / trilinear / area modes are not implemented.
        raise NotImplementedError(f"mode={mode}")
    return m.astype(dtype)


# ---------------------------------------------------------------------------
# Generation-aware VMEM budgeting.
# ---------------------------------------------------------------------------
@functools.lru_cache(maxsize=1)
def _vmem_caps():
    """Returns (per-step block budget, base vmem_limit, capacity)."""
    cap = None
    try:
        info = pltpu.get_tpu_info()
        cap = int(getattr(info, "vmem_capacity_bytes", 0)) or None
    except Exception:
        cap = None
    kind = ""
    try:
        kind = jax.devices()[0].device_kind.lower()
    except Exception:
        kind = ""
    if cap is None:
        # 128 MiB on v5e/v5p/v6e; default conservatively to 64 MiB otherwise.
        cap = 128 * 1024 * 1024 if ("v5" in kind or "v6" in kind) else 64 * 1024 * 1024
    if "7" in kind:
        cap = min(cap, 64 * 1024 * 1024)   # v7x: 64 MiB per TensorCore
    cap = min(cap, 128 * 1024 * 1024)
    block_budget = (3 * cap) // 8          # ~37.5% of capacity for one grid step
    vmem_limit = cap // 2                  # headroom for Mosaic internal scratch
    return block_budget, vmem_limit, cap


def _ceil_div(a, b):
    return -(-a // b)


def _pick_tile(cands, nc, block_bytes, budget):
    """Largest candidate fitting the budget; prefer an even number of grid
    steps >= 2 (keeps both v7x TensorCores busy and balanced)."""
    fitting = [b for b in cands if block_bytes(b) <= budget]
    if not fitting:
        return None
    even = [b for b in fitting
            if _ceil_div(nc, b) >= 2 and _ceil_div(nc, b) % 2 == 0]
    if even:
        return max(even)
    multi = [b for b in fitting if _ceil_div(nc, b) >= 2]
    if multi:
        return max(multi)
    return max(fitting)


def _choose_kron_tile(nc, k_in, k_out, x_bytes, mat_bytes, sub_align, budget):
    mats = 2 * k_in * k_out * mat_bytes              # resident kron matrix (x2 pipeline bufs)

    def block_bytes(b):
        io = 2 * b * (k_in + k_out) * x_bytes        # double-buffered in/out blocks
        inter = b * k_out * 4                        # f32 accumulator
        return io + inter + mats

    max_waste = max(sub_align, nc // 8)
    cands = []
    b = sub_align
    top = _ceil_div(nc, sub_align) * sub_align
    while b <= top:
        if _ceil_div(nc, b) * b - nc <= max_waste:
            cands.append(b)
        b += sub_align
    bt = _pick_tile(cands, nc, block_bytes, budget)
    if bt is None:
        bt = sub_align                               # best effort; gate should prevent this
    return bt, block_bytes(bt)


def _choose_sep_tile(nc, h_in, w_in, h_out, w_out, x_bytes, mat_bytes, sub_align, budget):
    mats = 2 * (h_out * h_in + w_in * w_out) * mat_bytes   # resident matrices (x2 bufs)

    def block_bytes(b):
        io = 2 * b * (h_in * w_in + h_out * w_out) * x_bytes
        inter = b * (h_in * w_out + h_out * w_out + h_out * h_in) * 4
        return io + inter + mats

    max_waste = max(1, nc // 8)
    cands = []
    for b in range(1, nc + 1):
        if (b * h_in) % sub_align and b != nc:       # full-dim blocks are exempt
            continue
        if (b * h_out) % sub_align and b != nc:
            continue
        if _ceil_div(nc, b) * b - nc > max_waste:
            continue
        cands.append(b)
    bt = _pick_tile(cands, nc, block_bytes, budget)
    if bt is None:
        bt = min(cands) if cands else nc             # vmem_limit is raised to cover it
    return bt, block_bytes(bt)


# ---------------------------------------------------------------------------
# Kernels.
# ---------------------------------------------------------------------------
def _kron_kernel(kt_ref, x_ref, o_ref, *, precision):
    # kt_ref: (H*W, H_out*W_out)  kron(A_h, A_w)^T, resident in VMEM
    # x_ref : (BT, H*W)           BT fused (n, c) rows
    # o_ref : (BT, H_out*W_out)   lane-dense output (single MXU matmul)
    o_ref[...] = jnp.dot(
        x_ref[...], kt_ref[...],
        preferred_element_type=jnp.float32,
        precision=precision,
    ).astype(o_ref.dtype)


def _separable_kernel(ah_ref, awt_ref, x_ref, o_ref, *, bt, h_in, h_out, w_out,
                      precision):
    # ah_ref : (H_out, H_in) f32   height interpolation matrix (resident)
    # awt_ref: (W_in, W_out)       width interpolation matrix, transposed (resident)
    # x_ref  : (BT*H_in, W_in)     BT fused (n, c) spatial slices
    # o_ref  : (BT*H_out, W_out)
    # Width resize: ONE fused 2-D MXU matmul over all BT*H rows.
    xw = jnp.dot(x_ref[...], awt_ref[...],
                 preferred_element_type=jnp.float32,
                 precision=precision)                       # (BT*H, W_out) f32
    # Keep the intermediate in f32 (no bf16 double rounding).
    xw = xw.reshape(bt, h_in, w_out)
    # Height resize: contraction over H.
    # TODO(synk): the review suggests a single un-batched (H_out, H)@(H, BT*W_out)
    # matmul + one transpose; the rank-mismatched dot_general / major-axis
    # transpose it needs could not be validated to lower on this toolchain, so
    # the proven batched form is kept.  This path only runs for large spatial
    # maps, where the per-batch matmuls are big and the kernel is HBM-bound.
    ah_b = jnp.broadcast_to(ah_ref[...], (bt, h_out, h_in))
    out = jnp.einsum("boh,bhw->bow", ah_b, xw,
                     preferred_element_type=jnp.float32,
                     precision=lax.Precision.HIGHEST)       # (BT, H_out, W_out) f32
    o_ref[...] = out.reshape(bt * h_out, w_out).astype(o_ref.dtype)


# ---------------------------------------------------------------------------
# Wrapper (the module's forward pass).
# ---------------------------------------------------------------------------
@functools.partial(jax.jit,
                   static_argnames=("size", "scale_factor", "mode", "align_corners"))
def interpolate(x, *, size=None, scale_factor=None, mode="nearest",
                align_corners=False):
    """Pallas equivalent of F.interpolate(x, size, scale_factor, mode, align_corners).

    x: (N, C, H, W) array (NCHW, same convention as PyTorch).
    """
    N, C, H, W = x.shape
    if size is not None:
        H_out, W_out = (size, size) if isinstance(size, int) else tuple(size)
    elif scale_factor is not None:
        sf = scale_factor if isinstance(scale_factor, (tuple, list)) else (scale_factor, scale_factor)
        H_out, W_out = int(math.floor(H * sf[0])), int(math.floor(W * sf[1]))
    else:
        raise ValueError("either size or scale_factor must be given")
    align_corners = bool(align_corners)

    x_dtype = x.dtype
    is_bf16 = x_dtype == jnp.bfloat16
    mat_dtype = jnp.bfloat16 if is_bf16 else jnp.float32
    x_bytes = jnp.dtype(x_dtype).itemsize
    mat_bytes = jnp.dtype(mat_dtype).itemsize
    sub_align = 16 if is_bf16 else 8       # dtype-aware sublane packing (bf16: 2 rows/sublane)
    precision = lax.Precision.DEFAULT if is_bf16 else lax.Precision.HIGHEST

    a_h = _interp_matrix(H_out, H, mode, align_corners, jnp.float32)   # (Ho, H)
    a_w = _interp_matrix(W_out, W, mode, align_corners, jnp.float32)   # (Wo, W)

    nc = N * C
    budget, vmem_base, vmem_cap = _vmem_caps()

    # TODO(synk): pure data-movement fast path (repeat / index_map replication)
    # for nearest with integer scales; the one-hot matmul below is already
    # exact at HIGHEST precision, so this would be perf-only.

    kron_bytes = H * W * H_out * W_out * mat_bytes
    data_bytes = nc * (H * W + H_out * W_out) * x_bytes
    min_blocks = 2 * sub_align * (H * W + H_out * W_out) * x_bytes
    use_kron = (H * W <= 4096
                and 2 * kron_bytes + min_blocks <= budget
                and 4 * kron_bytes <= max(data_bytes, 4 * 1024 * 1024))

    if use_kron:
        # ---- Kronecker-fused single-matmul path (lane-dense, full MXU depth).
        kt = jnp.kron(a_h.T, a_w.T).astype(mat_dtype)                  # (H*W, Ho*Wo)
        bt, blk_bytes = _choose_kron_tile(nc, H * W, H_out * W_out,
                                          x_bytes, mat_bytes, sub_align, budget)
        steps = _ceil_div(nc, bt)
        nc_pad = steps * bt
        x2d = x.reshape(nc, H * W)
        if nc_pad != nc:
            x2d = jnp.pad(x2d, ((0, nc_pad - nc), (0, 0)))
        flops = 2 * nc_pad * (H * W) * (H_out * W_out)
        bytes_accessed = nc_pad * (H * W + H_out * W_out) * x_bytes + kron_bytes
        out2d = pl.pallas_call(
            functools.partial(_kron_kernel, precision=precision),
            out_shape=jax.ShapeDtypeStruct((nc_pad, H_out * W_out), x_dtype),
            grid_spec=pltpu.PrefetchScalarGridSpec(
                num_scalar_prefetch=0,
                grid=(steps,),
                in_specs=[
                    pl.BlockSpec((H * W, H_out * W_out), lambda i: (0, 0)),  # resident kron matrix
                    pl.BlockSpec((bt, H * W), lambda i: (i, 0)),
                ],
                out_specs=pl.BlockSpec((bt, H_out * W_out), lambda i: (i, 0)),
            ),
            compiler_params=pltpu.CompilerParams(
                dimension_semantics=("parallel",),
                vmem_limit_bytes=min(vmem_cap, max(vmem_base, blk_bytes + (4 << 20))),
            ),
            cost_estimate=pl.CostEstimate(flops=flops, transcendentals=0,
                                          bytes_accessed=bytes_accessed),
        )(kt, x2d)
        out = out2d[:nc].reshape(N, C, H_out, W_out)
    else:
        # ---- Separable two-matmul path (large spatial maps).
        awt = a_w.T.astype(mat_dtype)                                  # (W, Wo)
        bt, blk_bytes = _choose_sep_tile(nc, H, W, H_out, W_out,
                                         x_bytes, mat_bytes, sub_align, budget)
        steps = _ceil_div(nc, bt)
        nc_pad = steps * bt
        x3 = x.reshape(nc, H, W)
        if nc_pad != nc:
            x3 = jnp.pad(x3, ((0, nc_pad - nc), (0, 0), (0, 0)))
        x2d = x3.reshape(nc_pad * H, W)
        flops = 2 * nc_pad * (H * W * W_out + H_out * H * W_out)
        bytes_accessed = (nc_pad * (H * W + H_out * W_out) * x_bytes
                          + (H_out * H) * 4 + (W * W_out) * mat_bytes)
        out2d = pl.pallas_call(
            functools.partial(_separable_kernel, bt=bt, h_in=H, h_out=H_out,
                              w_out=W_out, precision=precision),
            out_shape=jax.ShapeDtypeStruct((nc_pad * H_out, W_out), x_dtype),
            grid_spec=pltpu.PrefetchScalarGridSpec(
                num_scalar_prefetch=0,
                grid=(steps,),
                in_specs=[
                    pl.BlockSpec((H_out, H), lambda i: (0, 0)),   # resident interp matrices
                    pl.BlockSpec((W, W_out), lambda i: (0, 0)),
                    pl.BlockSpec((bt * H, W), lambda i: (i, 0)),
                ],
                out_specs=pl.BlockSpec((bt * H_out, W_out), lambda i: (i, 0)),
            ),
            compiler_params=pltpu.CompilerParams(
                dimension_semantics=("parallel",),
                vmem_limit_bytes=min(vmem_cap, max(vmem_base, blk_bytes + (4 << 20))),
            ),
            cost_estimate=pl.CostEstimate(flops=flops, transcendentals=0,
                                          bytes_accessed=bytes_accessed),
        )(a_h, awt, x2d)
        out = out2d.reshape(nc_pad, H_out, W_out)[:nc].reshape(N, C, H_out, W_out)
    return out


if __name__ == "__main__":
    key = jax.random.PRNGKey(0)
    # small shape consistent with the module's forward: NCHW
    x = jax.random.normal(key, (2, 4, 16, 16), dtype=jnp.float32)

    # --- Kronecker-fused path (small spatial maps) --------------------------
    # typical unet_transfer usage: Interpolate(scale_factor=2, mode='bilinear')
    y_bilinear = interpolate(x, scale_factor=2, mode="bilinear", align_corners=False)
    # module defaults: mode='nearest'
    y_nearest = interpolate(x, scale_factor=2, mode="nearest")
    jax.block_until_ready((y_bilinear, y_nearest))
    assert y_bilinear.shape == (2, 4, 32, 32)
    assert y_nearest.shape == (2, 4, 32, 32)

    idx = jnp.arange(32) // 2
    ref_nearest = x[:, :, idx, :][:, :, :, idx]
    assert bool(jnp.allclose(y_nearest, ref_nearest, atol=2e-2, rtol=2e-2))

    ah = _interp_matrix(32, 16, "bilinear", False, jnp.float32)
    aw = _interp_matrix(32, 16, "bilinear", False, jnp.float32)
    ref_bilinear = jnp.einsum("oh,nchw,vw->ncov", ah, x, aw,
                              precision=lax.Precision.HIGHEST)
    assert bool(jnp.allclose(y_bilinear, ref_bilinear, atol=2e-2, rtol=2e-2))

    # --- Separable path (kron matrix too large -> two-matmul kernel) --------
    x2 = jax.random.normal(jax.random.PRNGKey(1), (1, 2, 48, 40), dtype=jnp.float32)
    y2 = interpolate(x2, scale_factor=2, mode="bilinear", align_corners=True)
    jax.block_until_ready(y2)
    assert y2.shape == (1, 2, 96, 80)
    ah2 = _interp_matrix(96, 48, "bilinear", True, jnp.float32)
    aw2 = _interp_matrix(80, 40, "bilinear", True, jnp.float32)
    ref2 = jnp.einsum("oh,nchw,vw->ncov", ah2, x2, aw2,
                      precision=lax.Precision.HIGHEST)
    assert bool(jnp.allclose(y2, ref2, atol=2e-2, rtol=2e-2))

    # --- bf16 path (operands stay bf16, f32 accumulation) -------------------
    xb = x.astype(jnp.bfloat16)
    yb = interpolate(xb, scale_factor=2, mode="nearest")
    jax.block_until_ready(yb)
    assert yb.shape == (2, 4, 32, 32)
    ref_b = ref_nearest.astype(jnp.bfloat16).astype(jnp.float32)
    assert bool(jnp.allclose(yb.astype(jnp.float32), ref_b, atol=2e-2, rtol=2e-2))

    print("KERNEL_OK")
</pallas_src>

<mosaic_0001>
module attributes {stable_mosaic.version = 11 : i64} {
  func.func @_kron_kernel(%arg0: i32, %arg1: memref<256x1024xf32, #tpu.memory_space<vmem>>, %arg2: memref<8x256xf32, #tpu.memory_space<vmem>>, %arg3: memref<8x1024xf32, #tpu.memory_space<vmem>>) attributes {dimension_semantics = [#tpu.dimension_semantics<parallel>], iteration_bounds = array<i64: 1>, scalar_prefetch = 0 : i64, scratch_operands = 0 : i64, tpu.core_type = #tpu.core_type<tc>, window_params = [{pipeline_mode = #tpu.pipeline_mode<synchronous>, transform_indices = @transform_0, window_bounds = array<i64: 256, 1024>}, {transform_indices = @transform_1, window_bounds = array<i64: 8, 256>}, {transform_indices = @transform_2, window_bounds = array<i64: 8, 1024>}]} {
    %c0 = arith.constant 0 : index
    %c0_0 = arith.constant 0 : index
    %0 = vector.load %arg2[%c0, %c0_0] : memref<8x256xf32, #tpu.memory_space<vmem>>, vector<8x256xf32>
    %c0_1 = arith.constant 0 : index
    %c0_2 = arith.constant 0 : index
    %1 = vector.load %arg1[%c0_1, %c0_2] : memref<256x1024xf32, #tpu.memory_space<vmem>>, vector<256x1024xf32>
    %cst = arith.constant dense<0.000000e+00> : vector<8x1024xf32>
    %2 = tpu.matmul %0, %1, %cst {dimension_numbers = #tpu.dot_dimension_numbers<[1], [0], [0], [1], [0, 0, 1, 1], [], []>, precision = #tpu.contract_precision<fp32>} : vector<8x256xf32>, vector<256x1024xf32>, vector<8x1024xf32> -> vector<8x1024xf32>
    %c0_3 = arith.constant 0 : index
    %c0_4 = arith.constant 0 : index
    %3 = vector.load %arg3[%c0_3, %c0_4] : memref<8x1024xf32, #tpu.memory_space<vmem>>, vector<8x1024xf32>
    tpu.vector_store %arg3[%c0_3, %c0_4], %2 {strides = array<i32>} : memref<8x1024xf32, #tpu.memory_space<vmem>>, vector<8x1024xf32>,
    return
  }
  func.func @transform_0(%arg0: i32) -> (i32, i32) {
    %c0_i32 = arith.constant 0 : i32
    %c0_i32_0 = arith.constant 0 : i32
    %c0_i32_1 = arith.constant 0 : i32
    return %c0_i32, %c0_i32_0 : i32, i32
  }
  func.func @transform_1(%arg0: i32) -> (i32, i32) {
    %c0_i32 = arith.constant 0 : i32
    %c0_i32_0 = arith.constant 0 : i32
    return %arg0, %c0_i32 : i32, i32
  }
  func.func @transform_2(%arg0: i32) -> (i32, i32) {
    %c0_i32 = arith.constant 0 : i32
    %c0_i32_0 = arith.constant 0 : i32
    return %arg0, %c0_i32 : i32, i32
  }
}

</mosaic_0001>

<llo_original>
// kernel: interpolate.1
$region0: #{interpolate.1}
  #allocation0 [shape = 'u32[]', space=smem, size = 0x4, offset = 0x4, fixed_abs, tag = 'smem constant byte address 0x4 - core index']
  #allocation1 [shape = 'u32[72,128]{1,0:T(1,128)}', space=vmem, size = 0x9000, scoped, tag = 'internal scratch']
  %s0 = inlined_call_operand.vmem [shape: f32[256,1024], index: 0, kind: input, shape index: {}]
  %s1 = inlined_call_operand.vmem [shape: f32[8,256], index: 1, kind: input, shape index: {}]
  %s2 = inlined_call_operand.vmem [shape: f32[8,1024], index: 2, kind: output, shape index: {}]
  %s3 = sld [smem:[#allocation0]]
  $region18: #{interpolate.1} parent=0
    _
  %s5 = ssub.s32 1, %s3
  %s6 = scalar_select 0, %s5, %s3
  // Predicated region
  $region2: #{interpolate.1} parent=0 // pred_check
    _
  $region3: #{interpolate.1} parent=0 // pred_check_branch
    %8 = sbr.rel (0) target = $region5
  $region4: #{interpolate.1} parent=0 // pred_region
    _
  $region5: #{interpolate.1} parent=0 // pred_fallthru
    _
  // Predicated region
  $region6: #{interpolate.1} parent=0 // pred_check
    _
  $region7: #{interpolate.1} parent=0 // pred_check_branch
    %10 = sbr.rel (0) target = $region9
  $region8: #{interpolate.1} parent=0 // pred_region
    _
  $region9: #{interpolate.1} parent=0 // pred_fallthru
    _
  %v11 = vld [vmem:[%s1] sm:$0xff]
  %v12 = vld [vmem:[%s1 + $0x8] sm:$0xff]
  %v13 = vld [vmem:[%s0] sm:$0xff]
  %v14 = vld [vmem:[%s0 + $0x8] sm:$0xff]
  %v15 = vld [vmem:[%s0 + $0x10] sm:$0xff]
  %v16 = vld [vmem:[%s0 + $0x18] sm:$0xff]
  %v17 = vld [vmem:[%s0 + $0x20] sm:$0xff]
  %v18 = vld [vmem:[%s0 + $0x28] sm:$0xff]
  %v19 = vld [vmem:[%s0 + $0x30] sm:$0xff]
  %v20 = vld [vmem:[%s0 + $0x38] sm:$0xff]
  %v21 = vld [vmem:[%s0 + $0x40] sm:$0xff]
  %v22 = vld [vmem:[%s0 + $0x48] sm:$0xff]
  %v23 = vld [vmem:[%s0 + $0x50] sm:$0xff]
  %v24 = vld [vmem:[%s0 + $0x58] sm:$0xff]
  %v25 = vld [vmem:[%s0 + $0x60] sm:$0xff]
  %v26 = vld [vmem:[%s0 + $0x68] sm:$0xff]
  %v27 = vld [vmem:[%s0 + $0x70] sm:$0xff]
  %v28 = vld [vmem:[%s0 + $0x78] sm:$0xff]
  %v29 = vld [vmem:[%s0 + $0x80] sm:$0xff]
  %v30 = vld [vmem:[%s0 + $0x88] sm:$0xff]
  %v31 = vld [vmem:[%s0 + $0x90] sm:$0xff]
  %v32 = vld [vmem:[%s0 + $0x98] sm:$0xff]
  %v33 = vld [vmem:[%s0 + $0xa0] sm:$0xff]
  %v34 = vld [vmem:[%s0 + $0xa8] sm:$0xff]
  %v35 = vld [vmem:[%s0 + $0xb0] sm:$0xff]
  %v36 = vld [vmem:[%s0 + $0xb8] sm:$0xff]
  %v37 = vld [vmem:[%s0 + $0xc0] sm:$0xff]
  %v38 = vld [vmem:[%s0 + $0xc8] sm:$0xff]
  %v39 = vld [vmem:[%s0 + $0xd0] sm:$0xff]
  %v40 = vld [vmem:[%s0 + $0xd8] sm:$0xff]
  %v41 = vld [vmem:[%s0 + $0xe0] sm:$0xff]
  %v42 = vld [vmem:[%s0 + $0xe8] sm:$0xff]
  %v43 = vld [vmem:[%s0 + $0xf0] sm:$0xff]
  %v44 = vld [vmem:[%s0 + $0xf8] sm:$0xff]
  %v45 = vld [vmem:[%s0 + $0x100] sm:$0xff]
  %v46 = vld [vmem:[%s0 + $0x108] sm:$0xff]
  %v47 = vld [vmem:[%s0 + $0x110] sm:$0xff]
  %v48 = vld [vmem:[%s0 + $0x118] sm:$0xff]
  %v49 = vld [vmem:[%s0 + $0x120] sm:$0xff]
  %v50 = vld [vmem:[%s0 + $0x128] sm:$0xff]
  %v51 = vld [vmem:[%s0 + $0x130] sm:$0xff]
  %v52 = vld [vmem:[%s0 + $0x138] sm:$0xff]
  %v53 = vld [vmem:[%s0 + $0x140] sm:$0xff]
  %v54 = vld [vmem:[%s0 + $0x148] sm:$0xff]
  %v55 = vld [vmem:[%s0 + $0x150] sm:$0xff]
  %v56 = vld [vmem:[%s0 + $0x158] sm:$0xff]
  %v57 = vld [vmem:[%s0 + $0x160] sm:$0xff]
  %v58 = vld [vmem:[%s0 + $0x168] sm:$0xff]
  %v59 = vld [vmem:[%s0 + $0x170] sm:$0xff]
  %v60 = vld [vmem:[%s0 + $0x178] sm:$0xff]
  %v61 = vld [vmem:[%s0 + $0x180] sm:$0xff]
  %v62 = vld [vmem:[%s0 + $0x188] sm:$0xff]
  %v63 = vld [vmem:[%s0 + $0x190] sm:$0xff]
  %v64 = vld [vmem:[%s0 + $0x198] sm:$0xff]
  %v65 = vld [vmem:[%s0 + $0x1a0] sm:$0xff]
  %v66 = vld [vmem:[%s0 + $0x1a8] sm:$0xff]
  %v67 = vld [vmem:[%s0 + $0x1b0] sm:$0xff]
  %v68 = vld [vmem:[%s0 + $0x1b8] sm:$0xff]
  %v69 = vld [vmem:[%s0 + $0x1c0] sm:$0xff]
  %v70 = vld [vmem:[%s0 + $0x1c8] sm:$0xff]
  %v71 = vld [vmem:[%s0 + $0x1d0] sm:$0xff]
  %v72 = vld [vmem:[%s0 + $0x1d8] sm:$0xff]
  %v73 = vld [vmem:[%s0 + $0x1e0] sm:$0xff]
  %v74 = vld [vmem:[%s0 + $0x1e8] sm:$0xff]
  %v75 = vld [vmem:[%s0 + $0x1f0] sm:$0xff]
  %v76 = vld [vmem:[%s0 + $0x1f8] sm:$0xff]
  %v77 = vld [vmem:[%s0 + $0x200] sm:$0xff]
  %v78 = vld [vmem:[%s0 + $0x208] sm:$0xff]
  %v79 = vld [vmem:[%s0 + $0x210] sm:$0xff]
  %v80 = vld [vmem:[%s0 + $0x218] sm:$0xff]
  %v81 = vld [vmem:[%s0 + $0x220] sm:$0xff]
  %v82 = vld [vmem:[%s0 + $0x228] sm:$0xff]
  %v83 = vld [vmem:[%s0 + $0x230] sm:$0xff]
  %v84 = vld [vmem:[%s0 + $0x238] sm:$0xff]
  %v85 = vld [vmem:[%s0 + $0x240] sm:$0xff]
  %v86 = vld [vmem:[%s0 + $0x248] sm:$0xff]
  %v87 = vld [vmem:[%s0 + $0x250] sm:$0xff]
  %v88 = vld [vmem:[%s0 + $0x258] sm:$0xff]
  %v89 = vld [vmem:[%s0 + $0x260] sm:$0xff]
  %v90 = vld [vmem:[%s0 + $0x268] sm:$0xff]
  %v91 = vld [vmem:[%s0 + $0x270] sm:$0xff]
  %v92 = vld [vmem:[%s0 + $0x278] sm:$0xff]
  %v93 = vld [vmem:[%s0 + $0x280] sm:$0xff]
  %v94 = vld [vmem:[%s0 + $0x288] sm:$0xff]
  %v95 = vld [vmem:[%s0 + $0x290] sm:$0xff]
  %v96 = vld [vmem:[%s0 + $0x298] sm:$0xff]
  %v97 = vld [vmem:[%s0 + $0x2a0] sm:$0xff]
  %v98 = vld [vmem:[%s0 + $0x2a8] sm:$0xff]
  %v99 = vld [vmem:[%s0 + $0x2b0] sm:$0xff]
  %v100 = vld [vmem:[%s0 + $0x2b8] sm:$0xff]
  %v101 = vld [vmem:[%s0 + $0x2c0] sm:$0xff]
  %v102 = vld [vmem:[%s0 + $0x2c8] sm:$0xff]
  %v103 = vld [vmem:[%s0 + $0x2d0] sm:$0xff]
  %v104 = vld [vmem:[%s0 + $0x2d8] sm:$0xff]
  %v105 = vld [vmem:[%s0 + $0x2e0] sm:$0xff]
  %v106 = vld [vmem:[%s0 + $0x2e8] sm:$0xff]
  %v107 = vld [vmem:[%s0 + $0x2f0] sm:$0xff]
  %v108 = vld [vmem:[%s0 + $0x2f8] sm:$0xff]
  %v109 = vld [vmem:[%s0 + $0x300] sm:$0xff]
  %v110 = vld [vmem:[%s0 + $0x308] sm:$0xff]
  %v111 = vld [vmem:[%s0 + $0x310] sm:$0xff]
  %v112 = vld [vmem:[%s0 + $0x318] sm:$0xff]
  %v113 = vld [vmem:[%s0 + $0x320] sm:$0xff]
  %v114 = vld [vmem:[%s0 + $0x328] sm:$0xff]
  %v115 = vld [vmem:[%s0 + $0x330] sm:$0xff]
  %v116 = vld [vmem:[%s0 + $0x338] sm:$0xff]
  %v117 = vld [vmem:[%s0 + $0x340] sm:$0xff]
  %v118 = vld [vmem:[%s0 + $0x348] sm:$0xff]
  %v119 = vld [vmem:[%s0 + $0x350] sm:$0xff]
  %v120 = vld [vmem:[%s0 + $0x358] sm:$0xff]
  %v121 = vld [vmem:[%s0 + $0x360] sm:$0xff]
  %v122 = vld [vmem:[%s0 + $0x368] sm:$0xff]
  %v123 = vld [vmem:[%s0 + $0x370] sm:$0xff]
  %v124 = vld [vmem:[%s0 + $0x378] sm:$0xff]
  %v125 = vld [vmem:[%s0 + $0x380] sm:$0xff]
  %v126 = vld [vmem:[%s0 + $0x388] sm:$0xff]
  %v127 = vld [vmem:[%s0 + $0x390] sm:$0xff]
  %v128 = vld [vmem:[%s0 + $0x398] sm:$0xff]
  %v129 = vld [vmem:[%s0 + $0x3a0] sm:$0xff]
  %v130 = vld [vmem:[%s0 + $0x3a8] sm:$0xff]
  %v131 = vld [vmem:[%s0 + $0x3b0] sm:$0xff]
  %v132 = vld [vmem:[%s0 + $0x3b8] sm:$0xff]
  %v133 = vld [vmem:[%s0 + $0x3c0] sm:$0xff]
  %v134 = vld [vmem:[%s0 + $0x3c8] sm:$0xff]
  %v135 = vld [vmem:[%s0 + $0x3d0] sm:$0xff]
  %v136 = vld [vmem:[%s0 + $0x3d8] sm:$0xff]
  %v137 = vld [vmem:[%s0 + $0x3e0] sm:$0xff]
  %v138 = vld [vmem:[%s0 + $0x3e8] sm:$0xff]
  %v139 = vld [vmem:[%s0 + $0x3f0] sm:$0xff]
  %v140 = vld [vmem:[%s0 + $0x3f8] sm:$0xff]
  %v141 = vld [vmem:[%s0 + $0x400] sm:$0xff]
  %v142 = vld [vmem:[%s0 + $0x408] sm:$0xff]
  %v143 = vld [vmem:[%s0 + $0x410] sm:$0xff]
  %v144 = vld [vmem:[%s0 + $0x418] sm:$0xff]
  %v145 = vld [vmem:[%s0 + $0x420] sm:$0xff]
  %v146 = vld [vmem:[%s0 + $0x428] sm:$0xff]
  %v147 = vld [vmem:[%s0 + $0x430] sm:$0xff]
  %v148 = vld [vmem:[%s0 + $0x438] sm:$0xff]
  %v149 = vld [vmem:[%s0 + $0x440] sm:$0xff]
  %v150 = vld [vmem:[%s0 + $0x448] sm:$0xff]
  %v151 = vld [vmem:[%s0 + $0x450] sm:$0xff]
  %v152 = vld [vmem:[%s0 + $0x458] sm:$0xff]
  %v153 = vld [vmem:[%s0 + $0x460] sm:$0xff]
  %v154 = vld [vmem:[%s0 + $0x468] sm:$0xff]
  %v155 = vld [vmem:[%s0 + $0x470] sm:$0xff]
  %v156 = vld [vmem:[%s0 + $0x478] sm:$0xff]
  %v157 = vld [vmem:[%s0 + $0x480] sm:$0xff]
  %v158 = vld [vmem:[%s0 + $0x488] sm:$0xff]
  %v159 = vld [vmem:[%s0 + $0x490] sm:$0xff]
  %v160 = vld [vmem:[%s0 + $0x498] sm:$0xff]
  %v161 = vld [vmem:[%s0 + $0x4a0] sm:$0xff]
  %v162 = vld [vmem:[%s0 + $0x4a8] sm:$0xff]
  %v163 = vld [vmem:[%s0 + $0x4b0] sm:$0xff]
  %v164 = vld [vmem:[%s0 + $0x4b8] sm:$0xff]
  %v165 = vld [vmem:[%s0 + $0x4c0] sm:$0xff]
  %v166 = vld [vmem:[%s0 + $0x4c8] sm:$0xff]
  %v167 = vld [vmem:[%s0 + $0x4d0] sm:$0xff]
  %v168 = vld [vmem:[%s0 + $0x4d8] sm:$0xff]
  %v169 = vld [vmem:[%s0 + $0x4e0] sm:$0xff]
  %v170 = vld [vmem:[%s0 + $0x4e8] sm:$0xff]
  %v171 = vld [vmem:[%s0 + $0x4f0] sm:$0xff]
  %v172 = vld [vmem:[%s0 + $0x4f8] sm:$0xff]
  %v173 = vld [vmem:[%s0 + $0x500] sm:$0xff]
  %v174 = vld [vmem:[%s0 + $0x508] sm:$0xff]
  %v175 = vld [vmem:[%s0 + $0x510] sm:$0xff]
  %v176 = vld [vmem:[%s0 + $0x518] sm:$0xff]
  %v177 = vld [vmem:[%s0 + $0x520] sm:$0xff]
  %v178 = vld [vmem:[%s0 + $0x528] sm:$0xff]
  %v179 = vld [vmem:[%s0 + $0x530] sm:$0xff]
  %v180 = vld [vmem:[%s0 + $0x538] sm:$0xff]
  %v181 = vld [vmem:[%s0 + $0x540] sm:$0xff]
  %v182 = vld [vmem:[%s0 + $0x548] sm:$0xff]
  %v183 = vld [vmem:[%s0 + $0x550] sm:$0xff]
  %v184 = vld [vmem:[%s0 + $0x558] sm:$0xff]
  %v185 = vld [vmem:[%s0 + $0x560] sm:$0xff]
  %v186 = vld [vmem:[%s0 + $0x568] sm:$0xff]
  %v187 = vld [vmem:[%s0 + $0x570] sm:$0xff]
  %v188 = vld [vmem:[%s0 + $0x578] sm:$0xff]
  %v189 = vld [vmem:[%s0 + $0x580] sm:$0xff]
  %v190 = vld [vmem:[%s0 + $0x588] sm:$0xff]
  %v191 = vld [vmem:[%s0 + $0x590] sm:$0xff]
  %v192 = vld [vmem:[%s0 + $0x598] sm:$0xff]
  %v193 = vld [vmem:[%s0 + $0x5a0] sm:$0xff]
  %v194 = vld [vmem:[%s0 + $0x5a8] sm:$0xff]
  %v195 = vld [vmem:[%s0 + $0x5b0] sm:$0xff]
  %v196 = vld [vmem:[%s0 + $0x5b8] sm:$0xff]
  %v197 = vld [vmem:[%s0 + $0x5c0] sm:$0xff]
  %v198 = vld [vmem:[%s0 + $0x5c8] sm:$0xff]
  %v199 = vld [vmem:[%s0 + $0x5d0] sm:$0xff]
  %v200 = vld [vmem:[%s0 + $0x5d8] sm:$0xff]
  %v201 = vld [vmem:[%s0 + $0x5e0] sm:$0xff]
  %v202 = vld [vmem:[%s0 + $0x5e8] sm:$0xff]
  %v203 = vld [vmem:[%s0 + $0x5f0] sm:$0xff]
  %v204 = vld [vmem:[%s0 + $0x5f8] sm:$0xff]
  %v205 = vld [vmem:[%s0 + $0x600] sm:$0xff]
  %v206 = vld [vmem:[%s0 + $0x608] sm:$0xff]
  %v207 = vld [vmem:[%s0 + $0x610] sm:$0xff]
  %v208 = vld [vmem:[%s0 + $0x618] sm:$0xff]
  %v209 = vld [vmem:[%s0 + $0x620] sm:$0xff]
  %v210 = vld [vmem:[%s0 + $0x628] sm:$0xff]
  %v211 = vld [vmem:[%s0 + $0x630] sm:$0xff]
  %v212 = vld [vmem:[%s0 + $0x638] sm:$0xff]
  %v213 = vld [vmem:[%s0 + $0x640] sm:$0xff]
  %v214 = vld [vmem:[%s0 + $0x648] sm:$0xff]
  %v215 = vld [vmem:[%s0 + $0x650] sm:$0xff]
  %v216 = vld [vmem:[%s0 + $0x658] sm:$0xff]
  %v217 = vld [vmem:[%s0 + $0x660] sm:$0xff]
  %v218 = vld [vmem:[%s0 + $0x668] sm:$0xff]
  %v219 = vld [vmem:[%s0 + $0x670] sm:$0xff]
  %v220 = vld [vmem:[%s0 + $0x678] sm:$0xff]
  %v221 = vld [vmem:[%s0 + $0x680] sm:$0xff]
  %v222 = vld [vmem:[%s0 + $0x688] sm:$0xff]
  %v223 = vld [vmem:[%s0 + $0x690] sm:$0xff]
  %v224 = vld [vmem:[%s0 + $0x698] sm:$0xff]
  %v225 = vld [vmem:[%s0 + $0x6a0] sm:$0xff]
  %v226 = vld [vmem:[%s0 + $0x6a8] sm:$0xff]
  %v227 = vld [vmem:[%s0 + $0x6b0] sm:$0xff]
  %v228 = vld [vmem:[%s0 + $0x6b8] sm:$0xff]
  %v229 = vld [vmem:[%s0 + $0x6c0] sm:$0xff]
  %v230 = vld [vmem:[%s0 + $0x6c8] sm:$0xff]
  %v231 = vld [vmem:[%s0 + $0x6d0] sm:$0xff]
  %v232 = vld [vmem:[%s0 + $0x6d8] sm:$0xff]
  %v233 = vld [vmem:[%s0 + $0x6e0] sm:$0xff]
  %v234 = vld [vmem:[%s0 + $0x6e8] sm:$0xff]
  %v235 = vld [vmem:[%s0 + $0x6f0] sm:$0xff]
  %v236 = vld [vmem:[%s0 + $0x6f8] sm:$0xff]
  %v237 = vld [vmem:[%s0 + $0x700] sm:$0xff]
  %v238 = vld [vmem:[%s0 + $0x708] sm:$0xff]
  %v239 = vld [vmem:[%s0 + $0x710] sm:$0xff]
  %v240 = vld [vmem:[%s0 + $0x718] sm:$0xff]
  %v241 = vld [vmem:[%s0 + $0x720] sm:$0xff]
  %v242 = vld [vmem:[%s0 + $0x728] sm:$0xff]
  %v243 = vld [vmem:[%s0 + $0x730] sm:$0xff]
  %v244 = vld [vmem:[%s0 + $0x738] sm:$0xff]
  %v245 = vld [vmem:[%s0 + $0x740] sm:$0xff]
  %v246 = vld [vmem:[%s0 + $0x748] sm:$0xff]
  %v247 = vld [vmem:[%s0 + $0x750] sm:$0xff]
  %v248 = vld [vmem:[%s0 + $0x758] sm:$0xff]
  %v249 = vld [vmem:[%s0 + $0x760] sm:$0xff]
  %v250 = vld [vmem:[%s0 + $0x768] sm:$0xff]
  %v251 = vld [vmem:[%s0 + $0x770] sm:$0xff]
  %v252 = vld [vmem:[%s0 + $0x778] sm:$0xff]
  %v253 = vld [vmem:[%s0 + $0x780] sm:$0xff]
  %v254 = vld [vmem:[%s0 + $0x788] sm:$0xff]
  %v255 = vld [vmem:[%s0 + $0x790] sm:$0xff]
  %v256 = vld [vmem:[%s0 + $0x798] sm:$0xff]
  %v257 = vld [vmem:[%s0 + $0x7a0] sm:$0xff]
  %v258 = vld [vmem:[%s0 + $0x7a8] sm:$0xff]
  %v259 = vld [vmem:[%s0 + $0x7b0] sm:$0xff]
  %v260 = vld [vmem:[%s0 + $0x7b8] sm:$0xff]
  %v261 = vld [vmem:[%s0 + $0x7c0] sm:$0xff]
  %v262 = vld [vmem:[%s0 + $0x7c8] sm:$0xff]
  %v263 = vld [vmem:[%s0 + $0x7d0] sm:$0xff]
  %v264 = vld [vmem:[%s0 + $0x7d8] sm:$0xff]
  %v265 = vld [vmem:[%s0 + $0x7e0] sm:$0xff]
  %v266 = vld [vmem:[%s0 + $0x7e8] sm:$0xff]
  %v267 = vld [vmem:[%s0 + $0x7f0] sm:$0xff]
  %v268 = vld [vmem:[%s0 + $0x7f8] sm:$0xff]
  %v269 = vand.u32 %v133, 4294901760
  %270 = vmatpush.msra.mxu0 %v269
  %v271 = vand.u32 %v125, 4294901760
  %272 = vmatpush.msra.mxu0 %v271
  %v273 = vand.u32 %v117, 4294901760
  %274 = vmatpush.msra.mxu0 %v273
  %v275 = vand.u32 %v109, 4294901760
  %276 = vmatpush.msra.mxu0 %v275
  %v277 = vand.u32 %v101, 4294901760
  %278 = vmatpush.msra.mxu0 %v277
  %v279 = vand.u32 %v93, 4294901760
  %280 = vmatpush.msra.mxu0 %v279
  %v281 = vand.u32 %v85, 4294901760
  %282 = vmatpush.msra.mxu0 %v281
  %v283 = vand.u32 %v77, 4294901760
  %284 = vmatpush.msra.mxu0 %v283
  %v285 = vand.u32 %v69, 4294901760
  %286 = vmatpush.msra.mxu0 %v285
  %v287 = vand.u32 %v61, 4294901760
  %288 = vmatpush.msra.mxu0 %v287
  %v289 = vand.u32 %v53, 4294901760
  %290 = vmatpush.msra.mxu0 %v289
  %v291 = vand.u32 %v45, 4294901760
  %292 = vmatpush.msra.mxu0 %v291
  %v293 = vand.u32 %v37, 4294901760
  %294 = vmatpush.msra.mxu0 %v293
  %v295 = vand.u32 %v29, 4294901760
  %296 = vmatpush.msra.mxu0 %v295
  %v297 = vand.u32 %v21, 4294901760
  %298 = vmatpush.msra.mxu0 %v297
  %v299 = vand.u32 %v13, 4294901760
  %300 = vmatpush.msra.mxu0 %v299
  %v301 = vand.u32 %v11, 4294901760
  %v302 = vsub.f32 %v11, %v301
  %v303 = vand.u32 %v302, 4294901760
  %v304 = vsub.f32 %v302, %v303
  %v305 = vand.u32 %v304, 4294901760
  %306 = vmatmul.f32.gmra.mxu0 %v305
  %v307 = vpop.f32.mrf.mxu0
  %v308 = vadd.f32 0.0, %v307
  %309 = vdwg.mxu0
  %v310 = vand.u32 %v133, 4294901760
  %v311 = vsub.f32 %v133, %v310
  %v312 = vand.u32 %v311, 4294901760
  %v313 = vsub.f32 %v311, %v312
  %v314 = vand.u32 %v313, 4294901760
  %315 = vmatpush.msra.mxu0 %v314
  %v316 = vand.u32 %v125, 4294901760
  %v317 = vsub.f32 %v125, %v316
  %v318 = vand.u32 %v317, 4294901760
  %v319 = vsub.f32 %v317, %v318
  %v320 = vand.u32 %v319, 4294901760
  %321 = vmatpush.msra.mxu0 %v320
  %v322 = vand.u32 %v117, 4294901760
  %v323 = vsub.f32 %v117, %v322
  %v324 = vand.u32 %v323, 4294901760
  %v325 = vsub.f32 %v323, %v324
  %v326 = vand.u32 %v325, 4294901760
  %327 = vmatpush.msra.mxu0 %v326
  %v328 = vand.u32 %v109, 4294901760
  %v329 = vsub.f32 %v109, %v328
  %v330 = vand.u32 %v329, 4294901760
  %v331 = vsub.f32 %v329, %v330
  %v332 = vand.u32 %v331, 4294901760
  %333 = vmatpush.msra.mxu0 %v332
  %v334 = vand.u32 %v101, 4294901760
  %v335 = vsub.f32 %v101, %v334
  %v336 = vand.u32 %v335, 4294901760
  %v337 = vsub.f32 %v335, %v336
  %v338 = vand.u32 %v337, 4294901760
  %339 = vmatpush.msra.mxu0 %v338
  %v340 = vand.u32 %v93, 4294901760
  %v341 = vsub.f32 %v93, %v340
  %v342 = vand.u32 %v341, 4294901760
  %v343 = vsub.f32 %v341, %v342
  %v344 = vand.u32 %v343, 4294901760
  %345 = vmatpush.msra.mxu0 %v344
  %v346 = vand.u32 %v85, 4294901760
  %v347 = vsub.f32 %v85, %v346
  %v348 = vand.u32 %v347, 4294901760
  %v349 = vsub.f32 %v347, %v348
  %v350 = vand.u32 %v349, 4294901760
  %351 = vmatpush.msra.mxu0 %v350
  %v352 = vand.u32 %v77, 4294901760
  %v353 = vsub.f32 %v77, %v352
  %v354 = vand.u32 %v353, 4294901760
  %v355 = vsub.f32 %v353, %v354
  %v356 = vand.u32 %v355, 4294901760
  %357 = vmatpush.msra.mxu0 %v356
  %v358 = vand.u32 %v69, 4294901760
  %v359 = vsub.f32 %v69, %v358
  %v360 = vand.u32 %v359, 4294901760
  %v361 = vsub.f32 %v359, %v360
  %v362 = vand.u32 %v361, 4294901760
  %363 = vmatpush.msra.mxu0 %v362
  %v364 = vand.u32 %v61, 4294901760
  %v365 = vsub.f32 %v61, %v364
  %v366 = vand.u32 %v365, 4294901760
  %v367 = vsub.f32 %v365, %v366
  %v368 = vand.u32 %v367, 4294901760
  %369 = vmatpush.msra.mxu0 %v368
  %v370 = vand.u32 %v53, 4294901760
  %v371 = vsub.f32 %v53, %v370
  %v372 = vand.u32 %v371, 4294901760
  %v373 = vsub.f32 %v371, %v372
  %v374 = vand.u32 %v373, 4294901760
  %375 = vmatpush.msra.mxu0 %v374
  %v376 = vand.u32 %v45, 4294901760
  %v377 = vsub.f32 %v45, %v376
  %v378 = vand.u32 %v377, 4294901760
  %v379 = vsub.f32 %v377, %v378
  %v380 = vand.u32 %v379, 4294901760
  %381 = vmatpush.msra.mxu0 %v380
  %v382 = vand.u32 %v37, 4294901760
  %v383 = vsub.f32 %v37, %v382
  %v384 = vand.u32 %v383, 4294901760
  %v385 = vsub.f32 %v383, %v384
  %v386 = vand.u32 %v385, 4294901760
  %387 = vmatpush.msra.mxu0 %v386
  %v388 = vand.u32 %v29, 4294901760
  %v389 = vsub.f32 %v29, %v388
  %v390 = vand.u32 %v389, 4294901760
  %v391 = vsub.f32 %v389, %v390
  %v392 = vand.u32 %v391, 4294901760
  %393 = vmatpush.msra.mxu0 %v392
  %v394 = vand.u32 %v21, 4294901760
  %v395 = vsub.f32 %v21, %v394
  %v396 = vand.u32 %v395, 4294901760
  %v397 = vsub.f32 %v395, %v396
  %v398 = vand.u32 %v397, 4294901760
  %399 = vmatpush.msra.mxu0 %v398
  %v400 = vand.u32 %v13, 4294901760
  %v401 = vsub.f32 %v13, %v400
  %v402 = vand.u32 %v401, 4294901760
  %v403 = vsub.f32 %v401, %v402
  %v404 = vand.u32 %v403, 4294901760
  %405 = vmatpush.msra.mxu0 %v404
  %v406 = vand.u32 %v11, 4294901760
  %407 = vmatmul.f32.gmra.mxu0 %v406
  %v408 = vpop.f32.mrf.mxu0
  %v409 = vadd.f32 %v308, %v408
  %410 = vdwg.mxu0
  %v411 = vand.u32 %v133, 4294901760
  %v412 = vsub.f32 %v133, %v411
  %413 = vmatpush.msra.mxu0 %v412
  %v414 = vand.u32 %v125, 4294901760
  %v415 = vsub.f32 %v125, %v414
  %416 = vmatpush.msra.mxu0 %v415
  %v417 = vand.u32 %v117, 4294901760
  %v418 = vsub.f32 %v117, %v417
  %419 = vmatpush.msra.mxu0 %v418
  %v420 = vand.u32 %v109, 4294901760
  %v421 = vsub.f32 %v109, %v420
  %422 = vmatpush.msra.mxu0 %v421
  %v423 = vand.u32 %v101, 4294901760
  %v424 = vsub.f32 %v101, %v423
  %425 = vmatpush.msra.mxu0 %v424
  %v426 = vand.u32 %v93, 4294901760
  %v427 = vsub.f32 %v93, %v426
  %428 = vmatpush.msra.mxu0 %v427
  %v429 = vand.u32 %v85, 4294901760
  %v430 = vsub.f32 %v85, %v429
  %431 = vmatpush.msra.mxu0 %v430
  %v432 = vand.u32 %v77, 4294901760
  %v433 = vsub.f32 %v77, %v432
  %434 = vmatpush.msra.mxu0 %v433
  %v435 = vand.u32 %v69, 4294901760
  %v436 = vsub.f32 %v69, %v435
  %437 = vmatpush.msra.mxu0 %v436
  %v438 = vand.u32 %v61, 4294901760
  %v439 = vsub.f32 %v61, %v438
  %440 = vmatpush.msra.mxu0 %v439
  %v441 = vand.u32 %v53, 4294901760
  %v442 = vsub.f32 %v53, %v441
  %443 = vmatpush.msra.mxu0 %v442
  %v444 = vand.u32 %v45, 4294901760
  %v445 = vsub.f32 %v45, %v444
  %446 = vmatpush.msra.mxu0 %v445
  %v447 = vand.u32 %v37, 4294901760
  %v448 = vsub.f32 %v37, %v447
  %449 = vmatpush.msra.mxu0 %v448
  %v450 = vand.u32 %v29, 4294901760
  %v451 = vsub.f32 %v29, %v450
  %452 = vmatpush.msra.mxu0 %v451
  %v453 = vand.u32 %v21, 4294901760
  %v454 = vsub.f32 %v21, %v453
  %455 = vmatpush.msra.mxu0 %v454
  %v456 = vand.u32 %v13, 4294901760
  %v457 = vsub.f32 %v13, %v456
  %458 = vmatpush.msra.mxu0 %v457
  %v459 = vand.u32 %v11, 4294901760
  %v460 = vsub.f32 %v11, %v459
  %461 = vmatmul.f32.gmra.mxu0 %v460
  %v462 = vpop.f32.mrf.mxu0
  %v463 = vadd.f32 %v409, %v462
  %464 = vdwg.mxu0
  %v465 = vand.u32 %v133, 4294901760
  %466 = vmatpush.msra.mxu0 %v465
  %v467 = vand.u32 %v125, 4294901760
  %468 = vmatpush.msra.mxu0 %v467
  %v469 = vand.u32 %v117, 4294901760
  %470 = vmatpush.msra.mxu0 %v469
  %v471 = vand.u32 %v109, 4294901760
  %472 = vmatpush.msra.mxu0 %v471
  %v473 = vand.u32 %v101, 4294901760
  %474 = vmatpush.msra.mxu0 %v473
  %v475 = vand.u32 %v93, 4294901760
  %476 = vmatpush.msra.mxu0 %v475
  %v477 = vand.u32 %v85, 4294901760
  %478 = vmatpush.msra.mxu0 %v477
  %v479 = vand.u32 %v77, 4294901760
  %480 = vmatpush.msra.mxu0 %v479
  %v481 = vand.u32 %v69, 4294901760
  %482 = vmatpush.msra.mxu0 %v481
  %v483 = vand.u32 %v61, 4294901760
  %484 = vmatpush.msra.mxu0 %v483
  %v485 = vand.u32 %v53, 4294901760
  %486 = vmatpush.msra.mxu0 %v485
  %v487 = vand.u32 %v45, 4294901760
  %488 = vmatpush.msra.mxu0 %v487
  %v489 = vand.u32 %v37, 4294901760
  %490 = vmatpush.msra.mxu0 %v489
  %v491 = vand.u32 %v29, 4294901760
  %492 = vmatpush.msra.mxu0 %v491
  %v493 = vand.u32 %v21, 4294901760
  %494 = vmatpush.msra.mxu0 %v493
  %v495 = vand.u32 %v13, 4294901760
  %496 = vmatpush.msra.mxu0 %v495
  %v497 = vand.u32 %v11, 4294901760
  %v498 = vsub.f32 %v11, %v497
  %v499 = vand.u32 %v498, 4294901760
  %500 = vmatmul.f32.gmra.mxu0 %v499
  %v501 = vpop.f32.mrf.mxu0
  %v502 = vadd.f32 %v463, %v501
  %503 = vdwg.mxu0
  %v504 = vand.u32 %v133, 4294901760
  %v505 = vsub.f32 %v133, %v504
  %v506 = vand.u32 %v505, 4294901760
  %507 = vmatpush.msra.mxu0 %v506
  %v508 = vand.u32 %v125, 4294901760
  %v509 = vsub.f32 %v125, %v508
  %v510 = vand.u32 %v509, 4294901760
  %511 = vmatpush.msra.mxu0 %v510
  %v512 = vand.u32 %v117, 4294901760
  %v513 = vsub.f32 %v117, %v512
  %v514 = vand.u32 %v513, 4294901760
  %515 = vmatpush.msra.mxu0 %v514
  %v516 = vand.u32 %v109, 4294901760
  %v517 = vsub.f32 %v109, %v516
  %v518 = vand.u32 %v517, 4294901760
  %519 = vmatpush.msra.mxu0 %v518
  %v520 = vand.u32 %v101, 4294901760
  %v521 = vsub.f32 %v101, %v520
  %v522 = vand.u32 %v521, 4294901760
  %523 = vmatpush.msra.mxu0 %v522
  %v524 = vand.u32 %v93, 4294901760
  %v525 = vsub.f32 %v93, %v524
  %v526 = vand.u32 %v525, 4294901760
  %527 = vmatpush.msra.mxu0 %v526
  %v528 = vand.u32 %v85, 4294901760
  %v529 = vsub.f32 %v85, %v528
  %v530 = vand.u32 %v529, 4294901760
  %531 = vmatpush.msra.mxu0 %v530
  %v532 = vand.u32 %v77, 4294901760
  %v533 = vsub.f32 %v77, %v532
  %v534 = vand.u32 %v533, 4294901760
  %535 = vmatpush.msra.mxu0 %v534
  %v536 = vand.u32 %v69, 4294901760
  %v537 = vsub.f32 %v69, %v536
  %v538 = vand.u32 %v537, 4294901760
  %539 = vmatpush.msra.mxu0 %v538
  %v540 = vand.u32 %v61, 4294901760
  %v541 = vsub.f32 %v61, %v540
  %v542 = vand.u32 %v541, 4294901760
  %543 = vmatpush.msra.mxu0 %v542
  %v544 = vand.u32 %v53, 4294901760
  %v545 = vsub.f32 %v53, %v544
  %v546 = vand.u32 %v545, 4294901760
  %547 = vmatpush.msra.mxu0 %v546
  %v548 = vand.u32 %v45, 4294901760
  %v549 = vsub.f32 %v45, %v548
  %v550 = vand.u32 %v549, 4294901760
  %551 = vmatpush.msra.mxu0 %v550
  %v552 = vand.u32 %v37, 4294901760
  %v553 = vsub.f32 %v37, %v552
  %v554 = vand.u32 %v553, 4294901760
  %555 = vmatpush.msra.mxu0 %v554
  %v556 = vand.u32 %v29, 4294901760
  %v557 = vsub.f32 %v29, %v556
  %v558 = vand.u32 %v557, 4294901760
  %559 = vmatpush.msra.mxu0 %v558
  %v560 = vand.u32 %v21, 4294901760
  %v561 = vsub.f32 %v21, %v560
  %v562 = vand.u32 %v561, 4294901760
  %563 = vmatpush.msra.mxu0 %v562
  %v564 = vand.u32 %v13, 4294901760
  %v565 = vsub.f32 %v13, %v564
  %v566 = vand.u32 %v565, 4294901760
  %567 = vmatpush.msra.mxu0 %v566
  %v568 = vand.u32 %v11, 4294901760
  %569 = vmatmul.f32.gmra.mxu0 %v568
  %v570 = vpop.f32.mrf.mxu0
  %v571 = vadd.f32 %v502, %v570
  %572 = vdwg.mxu0
  %v573 = vand.u32 %v133, 4294901760
  %574 = vmatpush.msra.mxu0 %v573
  %v575 = vand.u32 %v125, 4294901760
  %576 = vmatpush.msra.mxu0 %v575
  %v577 = vand.u32 %v117, 4294901760
  %578 = vmatpush.msra.mxu0 %v577
  %v579 = vand.u32 %v109, 4294901760
  %580 = vmatpush.msra.mxu0 %v579
  %v581 = vand.u32 %v101, 4294901760
  %582 = vmatpush.msra.mxu0 %v581
  %v583 = vand.u32 %v93, 4294901760
  %584 = vmatpush.msra.mxu0 %v583
  %v585 = vand.u32 %v85, 4294901760
  %586 = vmatpush.msra.mxu0 %v585
  %v587 = vand.u32 %v77, 4294901760
  %588 = vmatpush.msra.mxu0 %v587
  %v589 = vand.u32 %v69, 4294901760
  %590 = vmatpush.msra.mxu0 %v589
  %v591 = vand.u32 %v61, 4294901760
  %592 = vmatpush.msra.mxu0 %v591
  %v593 = vand.u32 %v53, 4294901760
  %594 = vmatpush.msra.mxu0 %v593
  %v595 = vand.u32 %v45, 4294901760
  %596 = vmatpush.msra.mxu0 %v595
  %v597 = vand.u32 %v37, 4294901760
  %598 = vmatpush.msra.mxu0 %v597
  %v599 = vand.u32 %v29, 4294901760
  %600 = vmatpush.msra.mxu0 %v599
  %v601 = vand.u32 %v21, 4294901760
  %602 = vmatpush.msra.mxu0 %v601
  %v603 = vand.u32 %v13, 4294901760
  %604 = vmatpush.msra.mxu0 %v603
  %v605 = vand.u32 %v11, 4294901760
  %606 = vmatmul.f32.gmra.mxu0 %v605
  %v607 = vpop.f32.mrf.mxu0
  %v608 = vadd.f32 %v571, %v607
  %609 = vdwg.mxu0
  %v610 = vand.u32 %v261, 4294901760
  %611 = vmatpush.msra.mxu0 %v610
  %v612 = vand.u32 %v253, 4294901760
  %613 = vmatpush.msra.mxu0 %v612
  %v614 = vand.u32 %v245, 4294901760
  %615 = vmatpush.msra.mxu0 %v614
  %v616 = vand.u32 %v237, 4294901760
  %617 = vmatpush.msra.mxu0 %v616
  %v618 = vand.u32 %v229, 4294901760
  %619 = vmatpush.msra.mxu0 %v618
  %v620 = vand.u32 %v221, 4294901760
  %621 = vmatpush.msra.mxu0 %v620
  %v622 = vand.u32 %v213, 4294901760
  %623 = vmatpush.msra.mxu0 %v622
  %v624 = vand.u32 %v205, 4294901760
  %625 = vmatpush.msra.mxu0 %v624
  %v626 = vand.u32 %v197, 4294901760
  %627 = vmatpush.msra.mxu0 %v626
  %v628 = vand.u32 %v189, 4294901760
  %629 = vmatpush.msra.mxu0 %v628
  %v630 = vand.u32 %v181, 4294901760
  %631 = vmatpush.msra.mxu0 %v630
  %v632 = vand.u32 %v173, 4294901760
  %633 = vmatpush.msra.mxu0 %v632
  %v634 = vand.u32 %v165, 4294901760
  %635 = vmatpush.msra.mxu0 %v634
  %v636 = vand.u32 %v157, 4294901760
  %637 = vmatpush.msra.mxu0 %v636
  %v638 = vand.u32 %v149, 4294901760
  %639 = vmatpush.msra.mxu0 %v638
  %v640 = vand.u32 %v141, 4294901760
  %641 = vmatpush.msra.mxu0 %v640
  %v642 = vand.u32 %v12, 4294901760
  %v643 = vsub.f32 %v12, %v642
  %v644 = vand.u32 %v643, 4294901760
  %v645 = vsub.f32 %v643, %v644
  %v646 = vand.u32 %v645, 4294901760
  %647 = vmatmul.f32.gmra.mxu0 %v646
  %v648 = vpop.f32.mrf.mxu0
  %v649 = vadd.f32 %v608, %v648
  %650 = vdwg.mxu0
  %v651 = vand.u32 %v261, 4294901760
  %v652 = vsub.f32 %v261, %v651
  %v653 = vand.u32 %v652, 4294901760
  %v654 = vsub.f32 %v652, %v653
  %v655 = vand.u32 %v654, 4294901760
  %656 = vmatpush.msra.mxu0 %v655
  %v657 = vand.u32 %v253, 4294901760
  %v658 = vsub.f32 %v253, %v657
  %v659 = vand.u32 %v658, 4294901760
  %v660 = vsub.f32 %v658, %v659
  %v661 = vand.u32 %v660, 4294901760
  %662 = vmatpush.msra.mxu0 %v661
  %v663 = vand.u32 %v245, 4294901760
  %v664 = vsub.f32 %v245, %v663
  %v665 = vand.u32 %v664, 4294901760
  %v666 = vsub.f32 %v664, %v665
  %v667 = vand.u32 %v666, 4294901760
  %668 = vmatpush.msra.mxu0 %v667
  %v669 = vand.u32 %v237, 4294901760
  %v670 = vsub.f32 %v237, %v669
  %v671 = vand.u32 %v670, 4294901760
  %v672 = vsub.f32 %v670, %v671
  %v673 = vand.u32 %v672, 4294901760
  %674 = vmatpush.msra.mxu0 %v673
  %v675 = vand.u32 %v229, 4294901760
  %v676 = vsub.f32 %v229, %v675
  %v677 = vand.u32 %v676, 4294901760
  %v678 = vsub.f32 %v676, %v677
  %v679 = vand.u32 %v678, 4294901760
  %680 = vmatpush.msra.mxu0 %v679
  %v681 = vand.u32 %v221, 4294901760
  %v682 = vsub.f32 %v221, %v681
  %v683 = vand.u32 %v682, 4294901760
  %v684 = vsub.f32 %v682, %v683
  %v685 = vand.u32 %v684, 4294901760
  %686 = vmatpush.msra.mxu0 %v685
  %v687 = vand.u32 %v213, 4294901760
  %v688 = vsub.f32 %v213, %v687
  %v689 = vand.u32 %v688, 4294901760
  %v690 = vsub.f32 %v688, %v689
  %v691 = vand.u32 %v690, 4294901760
  %692 = vmatpush.msra.mxu0 %v691
  %v693 = vand.u32 %v205, 4294901760
  %v694 = vsub.f32 %v205, %v693
  %v695 = vand.u32 %v694, 4294901760
  %v696 = vsub.f32 %v694, %v695
  %v697 = vand.u32 %v696, 4294901760
  %698 = vmatpush.msra.mxu0 %v697
  %v699 = vand.u32 %v197, 4294901760
  %v700 = vsub.f32 %v197, %v699
  %v701 = vand.u32 %v700, 4294901760
  %v702 = vsub.f32 %v700, %v701
  %v703 = vand.u32 %v702, 4294901760
  %704 = vmatpush.msra.mxu0 %v703
  %v705 = vand.u32 %v189, 4294901760
  %v706 = vsub.f32 %v189, %v705
  %v707 = vand.u32 %v706, 4294901760
  %v708 = vsub.f32 %v706, %v707
  %v709 = vand.u32 %v708, 4294901760
  %710 = vmatpush.msra.mxu0 %v709
  %v711 = vand.u32 %v181, 4294901760
  %v712 = vsub.f32 %v181, %v711
  %v713 = vand.u32 %v712, 4294901760
  %v714 = vsub.f32 %v712, %v713
  %v715 = vand.u32 %v714, 4294901760
  %716 = vmatpush.msra.mxu0 %v715
  %v717 = vand.u32 %v173, 4294901760
  %v718 = vsub.f32 %v173, %v717
  %v719 = vand.u32 %v718, 4294901760
  %v720 = vsub.f32 %v718, %v719
  %v721 = vand.u32 %v720, 4294901760
  %722 = vmatpush.msra.mxu0 %v721
  %v723 = vand.u32 %v165, 4294901760
  %v724 = vsub.f32 %v165, %v723
  %v725 = vand.u32 %v724, 4294901760
  %v726 = vsub.f32 %v724, %v725
  %v727 = vand.u32 %v726, 4294901760
  %728 = vmatpush.msra.mxu0 %v727
  %v729 = vand.u32 %v157, 4294901760
  %v730 = vsub.f32 %v157, %v729
  %v731 = vand.u32 %v730, 4294901760
  %v732 = vsub.f32 %v730, %v731
  %v733 = vand.u32 %v732, 4294901760
  %734 = vmatpush.msra.mxu0 %v733
  %v735 = vand.u32 %v149, 4294901760
  %v736 = vsub.f32 %v149, %v735
  %v737 = vand.u32 %v736, 4294901760
  %v738 = vsub.f32 %v736, %v737
  %v739 = vand.u32 %v738, 4294901760
  %740 = vmatpush.msra.mxu0 %v739
  %v741 = vand.u32 %v141, 4294901760
  %v742 = vsub.f32 %v141, %v741
  %v743 = vand.u32 %v742, 4294901760
  %v744 = vsub.f32 %v742, %v743
  %v745 = vand.u32 %v744, 4294901760
  %746 = vmatpush.msra.mxu0 %v745
  %v747 = vand.u32 %v12, 4294901760
  %748 = vmatmul.f32.gmra.mxu0 %v747
  %v749 = vpop.f32.mrf.mxu0
  %v750 = vadd.f32 %v649, %v749
  %751 = vdwg.mxu0
  %v752 = vand.u32 %v261, 4294901760
  %v753 = vsub.f32 %v261, %v752
  %754 = vmatpush.msra.mxu0 %v753
  %v755 = vand.u32 %v253, 4294901760
  %v756 = vsub.f32 %v253, %v755
  %757 = vmatpush.msra.mxu0 %v756
  %v758 = vand.u32 %v245, 4294901760
  %v759 = vsub.f32 %v245, %v758
  %760 = vmatpush.msra.mxu0 %v759
  %v761 = vand.u32 %v237, 4294901760
  %v762 = vsub.f32 %v237, %v761
  %763 = vmatpush.msra.mxu0 %v762
  %v764 = vand.u32 %v229, 4294901760
  %v765 = vsub.f32 %v229, %v764
  %766 = vmatpush.msra.mxu0 %v765
  %v767 = vand.u32 %v221, 4294901760
  %v768 = vsub.f32 %v221, %v767
  %769 = vmatpush.msra.mxu0 %v768
  %v770 = vand.u32 %v213, 4294901760
  %v771 = vsub.f32 %v213, %v770
  %772 = vmatpush.msra.mxu0 %v771
  %v773 = vand.u32 %v205, 4294901760
  %v774 = vsub.f32 %v205, %v773
  %775 = vmatpush.msra.mxu0 %v774
  %v776 = vand.u32 %v197, 4294901760
  %v777 = vsub.f32 %v197, %v776
  %778 = vmatpush.msra.mxu0 %v777
  %v779 = vand.u32 %v189, 4294901760
  %v780 = vsub.f32 %v189, %v779
  %781 = vmatpush.msra.mxu0 %v780
  %v782 = vand.u32 %v181, 4294901760
  %v783 = vsub.f32 %v181, %v782
  %784 = vmatpush.msra.mxu0 %v783
  %v785 = vand.u32 %v173, 4294901760
  %v786 = vsub.f32 %v173, %v785
  %787 = vmatpush.msra.mxu0 %v786
  %v788 = vand.u32 %v165, 4294901760
  %v789 = vsub.f32 %v165, %v788
  %790 = vmatpush.msra.mxu0 %v789
  %v791 = vand.u32 %v157, 4294901760
  %v792 = vsub.f32 %v157, %v791
  %793 = vmatpush.msra.mxu0 %v792
  %v794 = vand.u32 %v149, 4294901760
  %v795 = vsub.f32 %v149, %v794
  %796 = vmatpush.msra.mxu0 %v795
  %v797 = vand.u32 %v141, 4294901760
  %v798 = vsub.f32 %v141, %v797
  %799 = vmatpush.msra.mxu0 %v798
  %v800 = vand.u32 %v12, 4294901760
  %v801 = vsub.f32 %v12, %v800
  %802 = vmatmul.f32.gmra.mxu0 %v801
  %v803 = vpop.f32.mrf.mxu0
  %v804 = vadd.f32 %v750, %v803
  %805 = vdwg.mxu0
  %v806 = vand.u32 %v261, 4294901760
  %807 = vmatpush.msra.mxu0 %v806
  %v808 = vand.u32 %v253, 4294901760
  %809 = vmatpush.msra.mxu0 %v808
  %v810 = vand.u32 %v245, 4294901760
  %811 = vmatpush.msra.mxu0 %v810
  %v812 = vand.u32 %v237, 4294901760
  %813 = vmatpush.msra.mxu0 %v812
  %v814 = vand.u32 %v229, 4294901760
  %815 = vmatpush.msra.mxu0 %v814
  %v816 = vand.u32 %v221, 4294901760
  %817 = vmatpush.msra.mxu0 %v816
  %v818 = vand.u32 %v213, 4294901760
  %819 = vmatpush.msra.mxu0 %v818
  %v820 = vand.u32 %v205, 4294901760
  %821 = vmatpush.msra.mxu0 %v820
  %v822 = vand.u32 %v197, 4294901760
  %823 = vmatpush.msra.mxu0 %v822
  %v824 = vand.u32 %v189, 4294901760
  %825 = vmatpush.msra.mxu0 %v824
  %v826 = vand.u32 %v181, 4294901760
  %827 = vmatpush.msra.mxu0 %v826
  %v828 = vand.u32 %v173, 4294901760
  %829 = vmatpush.msra.mxu0 %v828
  %v830 = vand.u32 %v165, 4294901760
  %831 = vmatpush.msra.mxu0 %v830
  %v832 = vand.u32 %v157, 4294901760
  %833 = vmatpush.msra.mxu0 %v832
  %v834 = vand.u32 %v149, 4294901760
  %835 = vmatpush.msra.mxu0 %v834
  %v836 = vand.u32 %v141, 4294901760
  %837 = vmatpush.msra.mxu0 %v836
  %v838 = vand.u32 %v12, 4294901760
  %v839 = vsub.f32 %v12, %v838
  %v840 = vand.u32 %v839, 4294901760
  %841 = vmatmul.f32.gmra.mxu0 %v840
  %v842 = vpop.f32.mrf.mxu0
  %v843 = vadd.f32 %v804, %v842
  %844 = vdwg.mxu0
  %v845 = vand.u32 %v261, 4294901760
  %v846 = vsub.f32 %v261, %v845
  %v847 = vand.u32 %v846, 4294901760
  %848 = vmatpush.msra.mxu0 %v847
  %v849 = vand.u32 %v253, 4294901760
  %v850 = vsub.f32 %v253, %v849
  %v851 = vand.u32 %v850, 4294901760
  %852 = vmatpush.msra.mxu0 %v851
  %v853 = vand.u32 %v245, 4294901760
  %v854 = vsub.f32 %v245, %v853
  %v855 = vand.u32 %v854, 4294901760
  %856 = vmatpush.msra.mxu0 %v855
  %v857 = vand.u32 %v237, 4294901760
  %v858 = vsub.f32 %v237, %v857
  %v859 = vand.u32 %v858, 4294901760
  %860 = vmatpush.msra.mxu0 %v859
  %v861 = vand.u32 %v229, 4294901760
  %v862 = vsub.f32 %v229, %v861
  %v863 = vand.u32 %v862, 4294901760
  %864 = vmatpush.msra.mxu0 %v863
  %v865 = vand.u32 %v221, 4294901760
  %v866 = vsub.f32 %v221, %v865
  %v867 = vand.u32 %v866, 4294901760
  %868 = vmatpush.msra.mxu0 %v867
  %v869 = vand.u32 %v213, 4294901760
  %v870 = vsub.f32 %v213, %v869
  %v871 = vand.u32 %v870, 4294901760
  %872 = vmatpush.msra.mxu0 %v871
  %v873 = vand.u32 %v205, 4294901760
  %v874 = vsub.f32 %v205, %v873
  %v875 = vand.u32 %v874, 4294901760
  %876 = vmatpush.msra.mxu0 %v875
  %v877 = vand.u32 %v197, 4294901760
  %v878 = vsub.f32 %v197, %v877
  %v879 = vand.u32 %v878, 4294901760
  %880 = vmatpush.msra.mxu0 %v879
  %v881 = vand.u32 %v189, 4294901760
  %v882 = vsub.f32 %v189, %v881
  %v883 = vand.u32 %v882, 4294901760
  %884 = vmatpush.msra.mxu0 %v883
  %v885 = vand.u32 %v181, 4294901760
  %v886 = vsub.f32 %v181, %v885
  %v887 = vand.u32 %v886, 4294901760
  %888 = vmatpush.msra.mxu0 %v887
  %v889 = vand.u32 %v173, 4294901760
  %v890 = vsub.f32 %v173, %v889
  %v891 = vand.u32 %v890, 4294901760
  %892 = vmatpush.msra.mxu0 %v891
  %v893 = vand.u32 %v165, 4294901760
  %v894 = vsub.f32 %v165, %v893
  %v895 = vand.u32 %v894, 4294901760
  %896 = vmatpush.msra.mxu0 %v895
  %v897 = vand.u32 %v157, 4294901760
  %v898 = vsub.f32 %v157, %v897
  %v899 = vand.u32 %v898, 4294901760
  %900 = vmatpush.msra.mxu0 %v899
  %v901 = vand.u32 %v149, 4294901760
  %v902 = vsub.f32 %v149, %v901
  %v903 = vand.u32 %v902, 4294901760
  %904 = vmatpush.msra.mxu0 %v903
  %v905 = vand.u32 %v141, 4294901760
  %v906 = vsub.f32 %v141, %v905
  %v907 = vand.u32 %v906, 4294901760
  %908 = vmatpush.msra.mxu0 %v907
  %v909 = vand.u32 %v12, 4294901760
  %910 = vmatmul.f32.gmra.mxu0 %v909
  %v911 = vpop.f32.mrf.mxu0
  %v912 = vadd.f32 %v843, %v911
  %913 = vdwg.mxu0
  %v914 = vand.u32 %v261, 4294901760
  %915 = vmatpush.msra.mxu0 %v914
  %v916 = vand.u32 %v253, 4294901760
  %917 = vmatpush.msra.mxu0 %v916
  %v918 = vand.u32 %v245, 4294901760
  %919 = vmatpush.msra.mxu0 %v918
  %v920 = vand.u32 %v237, 4294901760
  %921 = vmatpush.msra.mxu0 %v920
  %v922 = vand.u32 %v229, 4294901760
  %923 = vmatpush.msra.mxu0 %v922
  %v924 = vand.u32 %v221, 4294901760
  %925 = vmatpush.msra.mxu0 %v924
  %v926 = vand.u32 %v213, 4294901760
  %927 = vmatpush.msra.mxu0 %v926
  %v928 = vand.u32 %v205, 4294901760
  %929 = vmatpush.msra.mxu0 %v928
  %v930 = vand.u32 %v197, 4294901760
  %931 = vmatpush.msra.mxu0 %v930
  %v932 = vand.u32 %v189, 4294901760
  %933 = vmatpush.msra.mxu0 %v932
  %v934 = vand.u32 %v181, 4294901760
  %935 = vmatpush.msra.mxu0 %v934
  %v936 = vand.u32 %v173, 4294901760
  %937 = vmatpush.msra.mxu0 %v936
  %v938 = vand.u32 %v165, 4294901760
  %939 = vmatpush.msra.mxu0 %v938
  %v940 = vand.u32 %v157, 4294901760
  %941 = vmatpush.msra.mxu0 %v940
  %v942 = vand.u32 %v149, 4294901760
  %943 = vmatpush.msra.mxu0 %v942
  %v944 = vand.u32 %v141, 4294901760
  %945 = vmatpush.msra.mxu0 %v944
  %v946 = vand.u32 %v12, 4294901760
  %947 = vmatmul.f32.gmra.mxu0 %v946
  %v948 = vpop.f32.mrf.mxu0
  %v949 = vadd.f32 %v912, %v948
  %950 = vdwg.mxu0
  %v951 = vand.u32 %v134, 4294901760
  %952 = vmatpush.msra.mxu0 %v951
  %v953 = vand.u32 %v126, 4294901760
  %954 = vmatpush.msra.mxu0 %v953
  %v955 = vand.u32 %v118, 4294901760
  %956 = vmatpush.msra.mxu0 %v955
  %v957 = vand.u32 %v110, 4294901760
  %958 = vmatpush.msra.mxu0 %v957
  %v959 = vand.u32 %v102, 4294901760
  %960 = vmatpush.msra.mxu0 %v959
  %v961 = vand.u32 %v94, 4294901760
  %962 = vmatpush.msra.mxu0 %v961
  %v963 = vand.u32 %v86, 4294901760
  %964 = vmatpush.msra.mxu0 %v963
  %v965 = vand.u32 %v78, 4294901760
  %966 = vmatpush.msra.mxu0 %v965
  %v967 = vand.u32 %v70, 4294901760
  %968 = vmatpush.msra.mxu0 %v967
  %v969 = vand.u32 %v62, 4294901760
  %970 = vmatpush.msra.mxu0 %v969
  %v971 = vand.u32 %v54, 4294901760
  %972 = vmatpush.msra.mxu0 %v971
  %v973 = vand.u32 %v46, 4294901760
  %974 = vmatpush.msra.mxu0 %v973
  %v975 = vand.u32 %v38, 4294901760
  %976 = vmatpush.msra.mxu0 %v975
  %v977 = vand.u32 %v30, 4294901760
  %978 = vmatpush.msra.mxu0 %v977
  %v979 = vand.u32 %v22, 4294901760
  %980 = vmatpush.msra.mxu0 %v979
  %v981 = vand.u32 %v14, 4294901760
  %982 = vmatpush.msra.mxu0 %v981
  %v983 = vand.u32 %v11, 4294901760
  %v984 = vsub.f32 %v11, %v983
  %v985 = vand.u32 %v984, 4294901760
  %v986 = vsub.f32 %v984, %v985
  %v987 = vand.u32 %v986, 4294901760
  %988 = vmatmul.f32.gmra.mxu0 %v987
  %v989 = vpop.f32.mrf.mxu0
  %v990 = vadd.f32 0.0, %v989
  %991 = vdwg.mxu0
  %v992 = vand.u32 %v134, 4294901760
  %v993 = vsub.f32 %v134, %v992
  %v994 = vand.u32 %v993, 4294901760
  %v995 = vsub.f32 %v993, %v994
  %v996 = vand.u32 %v995, 4294901760
  %997 = vmatpush.msra.mxu0 %v996
  %v998 = vand.u32 %v126, 4294901760
  %v999 = vsub.f32 %v126, %v998
  %v1000 = vand.u32 %v999, 4294901760
  %v1001 = vsub.f32 %v999, %v1000
  %v1002 = vand.u32 %v1001, 4294901760
  %1003 = vmatpush.msra.mxu0 %v1002
  %v1004 = vand.u32 %v118, 4294901760
  %v1005 = vsub.f32 %v118, %v1004
  %v1006 = vand.u32 %v1005, 4294901760
  %v1007 = vsub.f32 %v1005, %v1006
  %v1008 = vand.u32 %v1007, 4294901760
  %1009 = vmatpush.msra.mxu0 %v1008
  %v1010 = vand.u32 %v110, 4294901760
  %v1011 = vsub.f32 %v110, %v1010
  %v1012 = vand.u32 %v1011, 4294901760
  %v1013 = vsub.f32 %v1011, %v1012
  %v1014 = vand.u32 %v1013, 4294901760
  %1015 = vmatpush.msra.mxu0 %v1014
  %v1016 = vand.u32 %v102, 4294901760
  %v1017 = vsub.f32 %v102, %v1016
  %v1018 = vand.u32 %v1017, 4294901760
  %v1019 = vsub.f32 %v1017, %v1018
  %v1020 = vand.u32 %v1019, 4294901760
  %1021 = vmatpush.msra.mxu0 %v1020
  %v1022 = vand.u32 %v94, 4294901760
  %v1023 = vsub.f32 %v94, %v1022
  %v1024 = vand.u32 %v1023, 4294901760
  %v1025 = vsub.f32 %v1023, %v1024
  %v1026 = vand.u32 %v1025, 4294901760
  %1027 = vmatpush.msra.mxu0 %v1026
  %v1028 = vand.u32 %v86, 4294901760
  %v1029 = vsub.f32 %v86, %v1028
  %v1030 = vand.u32 %v1029, 4294901760
  %v1031 = vsub.f32 %v1029, %v1030
  %v1032 = vand.u32 %v1031, 4294901760
  %1033 = vmatpush.msra.mxu0 %v1032
  %v1034 = vand.u32 %v78, 4294901760
  %v1035 = vsub.f32 %v78, %v1034
  %v1036 = vand.u32 %v1035, 4294901760
  %v1037 = vsub.f32 %v1035, %v1036
  %v1038 = vand.u32 %v1037, 4294901760
  %1039 = vmatpush.msra.mxu0 %v1038
  %v1040 = vand.u32 %v70, 4294901760
  %v1041 = vsub.f32 %v70, %v1040
  %v1042 = vand.u32 %v1041, 4294901760
  %v1043 = vsub.f32 %v1041, %v1042
  %v1044 = vand.u32 %v1043, 4294901760
  %1045 = vmatpush.msra.mxu0 %v1044
  %v1046 = vand.u32 %v62, 4294901760
  %v1047 = vsub.f32 %v62, %v1046
  %v1048 = vand.u32 %v1047, 4294901760
  %v1049 = vsub.f32 %v1047, %v1048
  %v1050 = vand.u32 %v1049, 4294901760
  %1051 = vmatpush.msra.mxu0 %v1050
  %v1052 = vand.u32 %v54, 4294901760
  %v1053 = vsub.f32 %v54, %v1052
  %v1054 = vand.u32 %v1053, 4294901760
  %v1055 = vsub.f32 %v1053, %v1054
  %v1056 = vand.u32 %v1055, 4294901760
  %1057 = vmatpush.msra.mxu0 %v1056
  %v1058 = vand.u32 %v46, 4294901760
  %v1059 = vsub.f32 %v46, %v1058
  %v1060 = vand.u32 %v1059, 4294901760
  %v1061 = vsub.f32 %v1059, %v1060
  %v1062 = vand.u32 %v1061, 4294901760
  %1063 = vmatpush.msra.mxu0 %v1062
  %v1064 = vand.u32 %v38, 4294901760
  %v1065 = vsub.f32 %v38, %v1064
  %v1066 = vand.u32 %v1065, 4294901760
  %v1067 = vsub.f32 %v1065, %v1066
  %v1068 = vand.u32 %v1067, 4294901760
  %1069 = vmatpush.msra.mxu0 %v1068
  %v1070 = vand.u32 %v30, 4294901760
  %v1071 = vsub.f32 %v30, %v1070
  %v1072 = vand.u32 %v1071, 4294901760
  %v1073 = vsub.f32 %v1071, %v1072
  %v1074 = vand.u32 %v1073, 4294901760
  %1075 = vmatpush.msra.mxu0 %v1074
  %v1076 = vand.u32 %v22, 4294901760
  %v1077 = vsub.f32 %v22, %v1076
  %v1078 = vand.u32 %v1077, 4294901760
  %v1079 = vsub.f32 %v1077, %v1078
  %v1080 = vand.u32 %v1079, 4294901760
  %1081 = vmatpush.msra.mxu0 %v1080
  %v1082 = vand.u32 %v14, 4294901760
  %v1083 = vsub.f32 %v14, %v1082
  %v1084 = vand.u32 %v1083, 4294901760
  %v1085 = vsub.f32 %v1083, %v1084
  %v1086 = vand.u32 %v1085, 4294901760
  %1087 = vmatpush.msra.mxu0 %v1086
  %v1088 = vand.u32 %v11, 4294901760
  %1089 = vmatmul.f32.gmra.mxu0 %v1088
  %v1090 = vpop.f32.mrf.mxu0
  %v1091 = vadd.f32 %v990, %v1090
  %1092 = vdwg.mxu0
  %v1093 = vand.u32 %v134, 4294901760
  %v1094 = vsub.f32 %v134, %v1093
  %1095 = vmatpush.msra.mxu0 %v1094
  %v1096 = vand.u32 %v126, 4294901760
  %v1097 = vsub.f32 %v126, %v1096
  %1098 = vmatpush.msra.mxu0 %v1097
  %v1099 = vand.u32 %v118, 4294901760
  %v1100 = vsub.f32 %v118, %v1099
  %1101 = vmatpush.msra.mxu0 %v1100
  %v1102 = vand.u32 %v110, 4294901760
  %v1103 = vsub.f32 %v110, %v1102
  %1104 = vmatpush.msra.mxu0 %v1103
  %v1105 = vand.u32 %v102, 4294901760
  %v1106 = vsub.f32 %v102, %v1105
  %1107 = vmatpush.msra.mxu0 %v1106
  %v1108 = vand.u32 %v94, 4294901760
  %v1109 = vsub.f32 %v94, %v1108
  %1110 = vmatpush.msra.mxu0 %v1109
  %v1111 = vand.u32 %v86, 4294901760
  %v1112 = vsub.f32 %v86, %v1111
  %1113 = vmatpush.msra.mxu0 %v1112
  %v1114 = vand.u32 %v78, 4294901760
  %v1115 = vsub.f32 %v78, %v1114
  %1116 = vmatpush.msra.mxu0 %v1115
  %v1117 = vand.u32 %v70, 4294901760
  %v1118 = vsub.f32 %v70, %v1117
  %1119 = vmatpush.msra.mxu0 %v1118
  %v1120 = vand.u32 %v62, 4294901760
  %v1121 = vsub.f32 %v62, %v1120
  %1122 = vmatpush.msra.mxu0 %v1121
  %v1123 = vand.u32 %v54, 4294901760
  %v1124 = vsub.f32 %v54, %v1123
  %1125 = vmatpush.msra.mxu0 %v1124
  %v1126 = vand.u32 %v46, 4294901760
  %v1127 = vsub.f32 %v46, %v1126
  %1128 = vmatpush.msra.mxu0 %v1127
  %v1129 = vand.u32 %v38, 4294901760
  %v1130 = vsub.f32 %v38, %v1129
  %1131 = vmatpush.msra.mxu0 %v1130
  %v1132 = vand.u32 %v30, 4294901760
  %v1133 = vsub.f32 %v30, %v1132
  %1134 = vmatpush.msra.mxu0 %v1133
  %v1135 = vand.u32 %v22, 4294901760
  %v1136 = vsub.f32 %v22, %v1135
  %1137 = vmatpush.msra.mxu0 %v1136
  %v1138 = vand.u32 %v14, 4294901760
  %v1139 = vsub.f32 %v14, %v1138
  %1140 = vmatpush.msra.mxu0 %v1139
  %v1141 = vand.u32 %v11, 4294901760
  %v1142 = vsub.f32 %v11, %v1141
  %1143 = vmatmul.f32.gmra.mxu0 %v1142
  %v1144 = vpop.f32.mrf.mxu0
  %v1145 = vadd.f32 %v1091, %v1144
  %1146 = vdwg.mxu0
  %v1147 = vand.u32 %v134, 4294901760
  %1148 = vmatpush.msra.mxu0 %v1147
  %v1149 = vand.u32 %v126, 4294901760
  %1150 = vmatpush.msra.mxu0 %v1149
  %v1151 = vand.u32 %v118, 4294901760
  %1152 = vmatpush.msra.mxu0 %v1151
  %v1153 = vand.u32 %v110, 4294901760
  %1154 = vmatpush.msra.mxu0 %v1153
  %v1155 = vand.u32 %v102, 4294901760
  %1156 = vmatpush.msra.mxu0 %v1155
  %v1157 = vand.u32 %v94, 4294901760
  %1158 = vmatpush.msra.mxu0 %v1157
  %v1159 = vand.u32 %v86, 4294901760
  %1160 = vmatpush.msra.mxu0 %v1159
  %v1161 = vand.u32 %v78, 4294901760
  %1162 = vmatpush.msra.mxu0 %v1161
  %v1163 = vand.u32 %v70, 4294901760
  %1164 = vmatpush.msra.mxu0 %v1163
  %v1165 = vand.u32 %v62, 4294901760
  %1166 = vmatpush.msra.mxu0 %v1165
  %v1167 = vand.u32 %v54, 4294901760
  %1168 = vmatpush.msra.mxu0 %v1167
  %v1169 = vand.u32 %v46, 4294901760
  %1170 = vmatpush.msra.mxu0 %v1169
  %v1171 = vand.u32 %v38, 4294901760
  %1172 = vmatpush.msra.mxu0 %v1171
  %v1173 = vand.u32 %v30, 4294901760
  %1174 = vmatpush.msra.mxu0 %v1173
  %v1175 = vand.u32 %v22, 4294901760
  %1176 = vmatpush.msra.mxu0 %v1175
  %v1177 = vand.u32 %v14, 4294901760
  %1178 = vmatpush.msra.mxu0 %v1177
  %v1179 = vand.u32 %v11, 4294901760
  %v1180 = vsub.f32 %v11, %v1179
  %v1181 = vand.u32 %v1180, 4294901760
  %1182 = vmatmul.f32.gmra.mxu0 %v1181
  %v1183 = vpop.f32.mrf.mxu0
  %v1184 = vadd.f32 %v1145, %v1183
  %1185 = vdwg.mxu0
  %v1186 = vand.u32 %v134, 4294901760
  %v1187 = vsub.f32 %v134, %v1186
  %v1188 = vand.u32 %v1187, 4294901760
  %1189 = vmatpush.msra.mxu0 %v1188
  %v1190 = vand.u32 %v126, 4294901760
  %v1191 = vsub.f32 %v126, %v1190
  %v1192 = vand.u32 %v1191, 4294901760
  %1193 = vmatpush.msra.mxu0 %v1192
  %v1194 = vand.u32 %v118, 4294901760
  %v1195 = vsub.f32 %v118, %v1194
  %v1196 = vand.u32 %v1195, 4294901760
  %1197 = vmatpush.msra.mxu0 %v1196
  %v1198 = vand.u32 %v110, 4294901760
  %v1199 = vsub.f32 %v110, %v1198
  %v1200 = vand.u32 %v1199, 4294901760
  %1201 = vmatpush.msra.mxu0 %v1200
  %v1202 = vand.u32 %v102, 4294901760
  %v1203 = vsub.f32 %v102, %v1202
  %v1204 = vand.u32 %v1203, 4294901760
  %1205 = vmatpush.msra.mxu0 %v1204
  %v1206 = vand.u32 %v94, 4294901760
  %v1207 = vsub.f32 %v94, %v1206
  %v1208 = vand.u32 %v1207, 4294901760
  %1209 = vmatpush.msra.mxu0 %v1208
  %v1210 = vand.u32 %v86, 4294901760
  %v1211 = vsub.f32 %v86, %v1210
  %v1212 = vand.u32 %v1211, 4294901760
  %1213 = vmatpush.msra.mxu0 %v1212
  %v1214 = vand.u32 %v78, 4294901760
  %v1215 = vsub.f32 %v78, %v1214
  %v1216 = vand.u32 %v1215, 4294901760
  %1217 = vmatpush.msra.mxu0 %v1216
  %v1218 = vand.u32 %v70, 4294901760
  %v1219 = vsub.f32 %v70, %v1218
  %v1220 = vand.u32 %v1219, 4294901760
  %1221 = vmatpush.msra.mxu0 %v1220
  %v1222 = vand.u32 %v62, 4294901760
  %v1223 = vsub.f32 %v62, %v1222
  %v1224 = vand.u32 %v1223, 4294901760
  %1225 = vmatpush.msra.mxu0 %v1224
  %v1226 = vand.u32 %v54, 4294901760
  %v1227 = vsub.f32 %v54, %v1226
  %v1228 = vand.u32 %v1227, 4294901760
  %1229 = vmatpush.msra.mxu0 %v1228
  %v1230 = vand.u32 %v46, 4294901760
  %v1231 = vsub.f32 %v46, %v1230
  %v1232 = vand.u32 %v1231, 4294901760
  %1233 = vmatpush.msra.mxu0 %v1232
  %v1234 = vand.u32 %v38, 4294901760
  %v1235 = vsub.f32 %v38, %v1234
  %v1236 = vand.u32 %v1235, 4294901760
  %1237 = vmatpush.msra.mxu0 %v1236
  %v1238 = vand.u32 %v30, 4294901760
  %v1239 = vsub.f32 %v30, %v1238
  %v1240 = vand.u32 %v1239, 4294901760
  %1241 = vmatpush.msra.mxu0 %v1240
  %v1242 = vand.u32 %v22, 4294901760
  %v1243 = vsub.f32 %v22, %v1242
  %v1244 = vand.u32 %v1243, 4294901760
  %1245 = vmatpush.msra.mxu0 %v1244
  %v1246 = vand.u32 %v14, 4294901760
  %v1247 = vsub.f32 %v14, %v1246
  %v1248 = vand.u32 %v1247, 4294901760
  %1249 = vmatpush.msra.mxu0 %v1248
  %v1250 = vand.u32 %v11, 4294901760
  %1251 = vmatmul.f32.gmra.mxu0 %v1250
  %v1252 = vpop.f32.mrf.mxu0
  %v1253 = vadd.f32 %v1184, %v1252
  %1254 = vdwg.mxu0
  %v1255 = vand.u32 %v134, 4294901760
  %1256 = vmatpush.msra.mxu0 %v1255
  %v1257 = vand.u32 %v126, 4294901760
  %1258 = vmatpush.msra.mxu0 %v1257
  %v1259 = vand.u32 %v118, 4294901760
  %1260 = vmatpush.msra.mxu0 %v1259
  %v1261 = vand.u32 %v110, 4294901760
  %1262 = vmatpush.msra.mxu0 %v1261
  %v1263 = vand.u32 %v102, 4294901760
  %1264 = vmatpush.msra.mxu0 %v1263
  %v1265 = vand.u32 %v94, 4294901760
  %1266 = vmatpush.msra.mxu0 %v1265
  %v1267 = vand.u32 %v86, 4294901760
  %1268 = vmatpush.msra.mxu0 %v1267
  %v1269 = vand.u32 %v78, 4294901760
  %1270 = vmatpush.msra.mxu0 %v1269
  %v1271 = vand.u32 %v70, 4294901760
  %1272 = vmatpush.msra.mxu0 %v1271
  %v1273 = vand.u32 %v62, 4294901760
  %1274 = vmatpush.msra.mxu0 %v1273
  %v1275 = vand.u32 %v54, 4294901760
  %1276 = vmatpush.msra.mxu0 %v1275
  %v1277 = vand.u32 %v46, 4294901760
  %1278 = vmatpush.msra.mxu0 %v1277
  %v1279 = vand.u32 %v38, 4294901760
  %1280 = vmatpush.msra.mxu0 %v1279
  %v1281 = vand.u32 %v30, 4294901760
  %1282 = vmatpush.msra.mxu0 %v1281
  %v1283 = vand.u32 %v22, 4294901760
  %1284 = vmatpush.msra.mxu0 %v1283
  %v1285 = vand.u32 %v14, 4294901760
  %1286 = vmatpush.msra.mxu0 %v1285
  %v1287 = vand.u32 %v11, 4294901760
  %1288 = vmatmul.f32.gmra.mxu0 %v1287
  %v1289 = vpop.f32.mrf.mxu0
  %v1290 = vadd.f32 %v1253, %v1289
  %1291 = vdwg.mxu0
  %v1292 = vand.u32 %v262, 4294901760
  %1293 = vmatpush.msra.mxu0 %v1292
  %v1294 = vand.u32 %v254, 4294901760
  %1295 = vmatpush.msra.mxu0 %v1294
  %v1296 = vand.u32 %v246, 4294901760
  %1297 = vmatpush.msra.mxu0 %v1296
  %v1298 = vand.u32 %v238, 4294901760
  %1299 = vmatpush.msra.mxu0 %v1298
  %v1300 = vand.u32 %v230, 4294901760
  %1301 = vmatpush.msra.mxu0 %v1300
  %v1302 = vand.u32 %v222, 4294901760
  %1303 = vmatpush.msra.mxu0 %v1302
  %v1304 = vand.u32 %v214, 4294901760
  %1305 = vmatpush.msra.mxu0 %v1304
  %v1306 = vand.u32 %v206, 4294901760
  %1307 = vmatpush.msra.mxu0 %v1306
  %v1308 = vand.u32 %v198, 4294901760
  %1309 = vmatpush.msra.mxu0 %v1308
  %v1310 = vand.u32 %v190, 4294901760
  %1311 = vmatpush.msra.mxu0 %v1310
  %v1312 = vand.u32 %v182, 4294901760
  %1313 = vmatpush.msra.mxu0 %v1312
  %v1314 = vand.u32 %v174, 4294901760
  %1315 = vmatpush.msra.mxu0 %v1314
  %v1316 = vand.u32 %v166, 4294901760
  %1317 = vmatpush.msra.mxu0 %v1316
  %v1318 = vand.u32 %v158, 4294901760
  %1319 = vmatpush.msra.mxu0 %v1318
  %v1320 = vand.u32 %v150, 4294901760
  %1321 = vmatpush.msra.mxu0 %v1320
  %v1322 = vand.u32 %v142, 4294901760
  %1323 = vmatpush.msra.mxu0 %v1322
  %v1324 = vand.u32 %v12, 4294901760
  %v1325 = vsub.f32 %v12, %v1324
  %v1326 = vand.u32 %v1325, 4294901760
  %v1327 = vsub.f32 %v1325, %v1326
  %v1328 = vand.u32 %v1327, 4294901760
  %1329 = vmatmul.f32.gmra.mxu0 %v1328
  %v1330 = vpop.f32.mrf.mxu0
  %v1331 = vadd.f32 %v1290, %v1330
  %1332 = vdwg.mxu0
  %v1333 = vand.u32 %v262, 4294901760
  %v1334 = vsub.f32 %v262, %v1333
  %v1335 = vand.u32 %v1334, 4294901760
  %v1336 = vsub.f32 %v1334, %v1335
  %v1337 = vand.u32 %v1336, 4294901760
  %1338 = vmatpush.msra.mxu0 %v1337
  %v1339 = vand.u32 %v254, 4294901760
  %v1340 = vsub.f32 %v254, %v1339
  %v1341 = vand.u32 %v1340, 4294901760
  %v1342 = vsub.f32 %v1340, %v1341
  %v1343 = vand.u32 %v1342, 4294901760
  %1344 = vmatpush.msra.mxu0 %v1343
  %v1345 = vand.u32 %v246, 4294901760
  %v1346 = vsub.f32 %v246, %v1345
  %v1347 = vand.u32 %v1346, 4294901760
  %v1348 = vsub.f32 %v1346, %v1347
  %v1349 = vand.u32 %v1348, 4294901760
  %1350 = vmatpush.msra.mxu0 %v1349
  %v1351 = vand.u32 %v238, 4294901760
  %v1352 = vsub.f32 %v238, %v1351
  %v1353 = vand.u32 %v1352, 4294901760
  %v1354 = vsub.f32 %v1352, %v1353
  %v1355 = vand.u32 %v1354, 4294901760
  %1356 = vmatpush.msra.mxu0 %v1355
  %v1357 = vand.u32 %v230, 4294901760
  %v1358 = vsub.f32 %v230, %v1357
  %v1359 = vand.u32 %v1358, 4294901760
  %v1360 = vsub.f32 %v1358, %v1359
  %v1361 = vand.u32 %v1360, 4294901760
  %1362 = vmatpush.msra.mxu0 %v1361
  %v1363 = vand.u32 %v222, 4294901760
  %v1364 = vsub.f32 %v222, %v1363
  %v1365 = vand.u32 %v1364, 4294901760
  %v1366 = vsub.f32 %v1364, %v1365
  %v1367 = vand.u32 %v1366, 4294901760
  %1368 = vmatpush.msra.mxu0 %v1367
  %v1369 = vand.u32 %v214, 4294901760
  %v1370 = vsub.f32 %v214, %v1369
  %v1371 = vand.u32 %v1370, 4294901760
  %v1372 = vsub.f32 %v1370, %v1371
  %v1373 = vand.u32 %v1372, 4294901760
  %1374 = vmatpush.msra.mxu0 %v1373
  %v1375 = vand.u32 %v206, 4294901760
  %v1376 = vsub.f32 %v206, %v1375
  %v1377 = vand.u32 %v1376, 4294901760
  %v1378 = vsub.f32 %v1376, %v1377
  %v1379 = vand.u32 %v1378, 4294901760
  %1380 = vmatpush.msra.mxu0 %v1379
  %v1381 = vand.u32 %v198, 4294901760
  %v1382 = vsub.f32 %v198, %v1381
  %v1383 = vand.u32 %v1382, 4294901760
  %v1384 = vsub.f32 %v1382, %v1383
  %v1385 = vand.u32 %v1384, 4294901760
  %1386 = vmatpush.msra.mxu0 %v1385
  %v1387 = vand.u32 %v190, 4294901760
  %v1388 = vsub.f32 %v190, %v1387
  %v1389 = vand.u32 %v1388, 4294901760
  %v1390 = vsub.f32 %v1388, %v1389
  %v1391 = vand.u32 %v1390, 4294901760
  %1392 = vmatpush.msra.mxu0 %v1391
  %v1393 = vand.u32 %v182, 4294901760
  %v1394 = vsub.f32 %v182, %v1393
  %v1395 = vand.u32 %v1394, 4294901760
  %v1396 = vsub.f32 %v1394, %v1395
  %v1397 = vand.u32 %v1396, 4294901760
  %1398 = vmatpush.msra.mxu0 %v1397
  %v1399 = vand.u32 %v174, 4294901760
  %v1400 = vsub.f32 %v174, %v1399
  %v1401 = vand.u32 %v1400, 4294901760
  %v1402 = vsub.f32 %v1400, %v1401
  %v1403 = vand.u32 %v1402, 4294901760
  %1404 = vmatpush.msra.mxu0 %v1403
  %v1405 = vand.u32 %v166, 4294901760
  %v1406 = vsub.f32 %v166, %v1405
  %v1407 = vand.u32 %v1406, 4294901760
  %v1408 = vsub.f32 %v1406, %v1407
  %v1409 = vand.u32 %v1408, 4294901760
  %1410 = vmatpush.msra.mxu0 %v1409
  %v1411 = vand.u32 %v158, 4294901760
  %v1412 = vsub.f32 %v158, %v1411
  %v1413 = vand.u32 %v1412, 4294901760
  %v1414 = vsub.f32 %v1412, %v1413
  %v1415 = vand.u32 %v1414, 4294901760
  %1416 = vmatpush.msra.mxu0 %v1415
  %v1417 = vand.u32 %v150, 4294901760
  %v1418 = vsub.f32 %v150, %v1417
  %v1419 = vand.u32 %v1418, 4294901760
  %v1420 = vsub.f32 %v1418, %v1419
  %v1421 = vand.u32 %v1420, 4294901760
  %1422 = vmatpush.msra.mxu0 %v1421
  %v1423 = vand.u32 %v142, 4294901760
  %v1424 = vsub.f32 %v142, %v1423
  %v1425 = vand.u32 %v1424, 4294901760
  %v1426 = vsub.f32 %v1424, %v1425
  %v1427 = vand.u32 %v1426, 4294901760
  %1428 = vmatpush.msra.mxu0 %v1427
  %v1429 = vand.u32 %v12, 4294901760
  %1430 = vmatmul.f32.gmra.mxu0 %v1429
  %v1431 = vpop.f32.mrf.mxu0
  %v1432 = vadd.f32 %v1331, %v1431
  %1433 = vdwg.mxu0
  %v1434 = vand.u32 %v262, 4294901760
  %v1435 = vsub.f32 %v262, %v1434
  %1436 = vmatpush.msra.mxu0 %v1435
  %v1437 = vand.u32 %v254, 4294901760
  %v1438 = vsub.f32 %v254, %v1437
  %1439 = vmatpush.msra.mxu0 %v1438
  %v1440 = vand.u32 %v246, 4294901760
  %v1441 = vsub.f32 %v246, %v1440
  %1442 = vmatpush.msra.mxu0 %v1441
  %v1443 = vand.u32 %v238, 4294901760
  %v1444 = vsub.f32 %v238, %v1443
  %1445 = vmatpush.msra.mxu0 %v1444
  %v1446 = vand.u32 %v230, 4294901760
  %v1447 = vsub.f32 %v230, %v1446
  %1448 = vmatpush.msra.mxu0 %v1447
  %v1449 = vand.u32 %v222, 4294901760
  %v1450 = vsub.f32 %v222, %v1449
  %1451 = vmatpush.msra.mxu0 %v1450
  %v1452 = vand.u32 %v214, 4294901760
  %v1453 = vsub.f32 %v214, %v1452
  %1454 = vmatpush.msra.mxu0 %v1453
  %v1455 = vand.u32 %v206, 4294901760
  %v1456 = vsub.f32 %v206, %v1455
  %1457 = vmatpush.msra.mxu0 %v1456
  %v1458 = vand.u32 %v198, 4294901760
  %v1459 = vsub.f32 %v198, %v1458
  %1460 = vmatpush.msra.mxu0 %v1459
  %v1461 = vand.u32 %v190, 4294901760
  %v1462 = vsub.f32 %v190, %v1461
  %1463 = vmatpush.msra.mxu0 %v1462
  %v1464 = vand.u32 %v182, 4294901760
  %v1465 = vsub.f32 %v182, %v1464
  %1466 = vmatpush.msra.mxu0 %v1465
  %v1467 = vand.u32 %v174, 4294901760
  %v1468 = vsub.f32 %v174, %v1467
  %1469 = vmatpush.msra.mxu0 %v1468
  %v1470 = vand.u32 %v166, 4294901760
  %v1471 = vsub.f32 %v166, %v1470
  %1472 = vmatpush.msra.mxu0 %v1471
  %v1473 = vand.u32 %v158, 4294901760
  %v1474 = vsub.f32 %v158, %v1473
  %1475 = vmatpush.msra.mxu0 %v1474
  %v1476 = vand.u32 %v150, 4294901760
  %v1477 = vsub.f32 %v150, %v1476
  %1478 = vmatpush.msra.mxu0 %v1477
  %v1479 = vand.u32 %v142, 4294901760
  %v1480 = vsub.f32 %v142, %v1479
  %1481 = vmatpush.msra.mxu0 %v1480
  %v1482 = vand.u32 %v12, 4294901760
  %v1483 = vsub.f32 %v12, %v1482
  %1484 = vmatmul.f32.gmra.mxu0 %v1483
  %v1485 = vpop.f32.mrf.mxu0
  %v1486 = vadd.f32 %v1432, %v1485
  %1487 = vdwg.mxu0
  %v1488 = vand.u32 %v262, 4294901760
  %1489 = vmatpush.msra.mxu0 %v1488
  %v1490 = vand.u32 %v254, 4294901760
  %1491 = vmatpush.msra.mxu0 %v1490
  %v1492 = vand.u32 %v246, 4294901760
  %1493 = vmatpush.msra.mxu0 %v1492
  %v1494 = vand.u32 %v238, 4294901760
  %1495 = vmatpush.msra.mxu0 %v1494
  %v1496 = vand.u32 %v230, 4294901760
  %1497 = vmatpush.msra.mxu0 %v1496
  %v1498 = vand.u32 %v222, 4294901760
  %1499 = vmatpush.msra.mxu0 %v1498
  %v1500 = vand.u32 %v214, 4294901760
  %1501 = vmatpush.msra.mxu0 %v1500
  %v1502 = vand.u32 %v206, 4294901760
  %1503 = vmatpush.msra.mxu0 %v1502
  %v1504 = vand.u32 %v198, 4294901760
  %1505 = vmatpush.msra.mxu0 %v1504
  %v1506 = vand.u32 %v190, 4294901760
  %1507 = vmatpush.msra.mxu0 %v1506
  %v1508 = vand.u32 %v182, 4294901760
  %1509 = vmatpush.msra.mxu0 %v1508
  %v1510 = vand.u32 %v174, 4294901760
  %1511 = vmatpush.msra.mxu0 %v1510
  %v1512 = vand.u32 %v166, 4294901760
  %1513 = vmatpush.msra.mxu0 %v1512
  %v1514 = vand.u32 %v158, 4294901760
  %1515 = vmatpush.msra.mxu0 %v1514
  %v1516 = vand.u32 %v150, 4294901760
  %1517 = vmatpush.msra.mxu0 %v1516
  %v1518 = vand.u32 %v142, 4294901760
  %1519 = vmatpush.msra.mxu0 %v1518
  %v1520 = vand.u32 %v12, 4294901760
  %v1521 = vsub.f32 %v12, %v1520
  %v1522 = vand.u32 %v1521, 4294901760
  %1523 = vmatmul.f32.gmra.mxu0 %v1522
  %v1524 = vpop.f32.mrf.mxu0
  %v1525 = vadd.f32 %v1486, %v1524
  %1526 = vdwg.mxu0
  %v1527 = vand.u32 %v262, 4294901760
  %v1528 = vsub.f32 %v262, %v1527
  %v1529 = vand.u32 %v1528, 4294901760
  %1530 = vmatpush.msra.mxu0 %v1529
  %v1531 = vand.u32 %v254, 4294901760
  %v1532 = vsub.f32 %v254, %v1531
  %v1533 = vand.u32 %v1532, 4294901760
  %1534 = vmatpush.msra.mxu0 %v1533
  %v1535 = vand.u32 %v246, 4294901760
  %v1536 = vsub.f32 %v246, %v1535
  %v1537 = vand.u32 %v1536, 4294901760
  %1538 = vmatpush.msra.mxu0 %v1537
  %v1539 = vand.u32 %v238, 4294901760
  %v1540 = vsub.f32 %v238, %v1539
  %v1541 = vand.u32 %v1540, 4294901760
  %1542 = vmatpush.msra.mxu0 %v1541
  %v1543 = vand.u32 %v230, 4294901760
  %v1544 = vsub.f32 %v230, %v1543
  %v1545 = vand.u32 %v1544, 4294901760
  %1546 = vmatpush.msra.mxu0 %v1545
  %v1547 = vand.u32 %v222, 4294901760
  %v1548 = vsub.f32 %v222, %v1547
  %v1549 = vand.u32 %v1548, 4294901760
  %1550 = vmatpush.msra.mxu0 %v1549
  %v1551 = vand.u32 %v214, 4294901760
  %v1552 = vsub.f32 %v214, %v1551
  %v1553 = vand.u32 %v1552, 4294901760
  %1554 = vmatpush.msra.mxu0 %v1553
  %v1555 = vand.u32 %v206, 4294901760
  %v1556 = vsub.f32 %v206, %v1555
  %v1557 = vand.u32 %v1556, 4294901760
  %1558 = vmatpush.msra.mxu0 %v1557
  %v1559 = vand.u32 %v198, 4294901760
  %v1560 = vsub.f32 %v198, %v1559
  %v1561 = vand.u32 %v1560, 4294901760
  %1562 = vmatpush.msra.mxu0 %v1561
  %v1563 = vand.u32 %v190, 4294901760
  %v1564 = vsub.f32 %v190, %v1563
  %v1565 = vand.u32 %v1564, 4294901760
  %1566 = vmatpush.msra.mxu0 %v1565
  %v1567 = vand.u32 %v182, 4294901760
  %v1568 = vsub.f32 %v182, %v1567
  %v1569 = vand.u32 %v1568, 4294901760
  %1570 = vmatpush.msra.mxu0 %v1569
  %v1571 = vand.u32 %v174, 4294901760
  %v1572 = vsub.f32 %v174, %v1571
  %v1573 = vand.u32 %v1572, 4294901760
  %1574 = vmatpush.msra.mxu0 %v1573
  %v1575 = vand.u32 %v166, 4294901760
  %v1576 = vsub.f32 %v166, %v1575
  %v1577 = vand.u32 %v1576, 4294901760
  %1578 = vmatpush.msra.mxu0 %v1577
  %v1579 = vand.u32 %v158, 4294901760
  %v1580 = vsub.f32 %v158, %v1579
  %v1581 = vand.u32 %v1580, 4294901760
  %1582 = vmatpush.msra.mxu0 %v1581
  %v1583 = vand.u32 %v150, 4294901760
  %v1584 = vsub.f32 %v150, %v1583
  %v1585 = vand.u32 %v1584, 4294901760
  %1586 = vmatpush.msra.mxu0 %v1585
  %v1587 = vand.u32 %v142, 4294901760
  %v1588 = vsub.f32 %v142, %v1587
  %v1589 = vand.u32 %v1588, 4294901760
  %1590 = vmatpush.msra.mxu0 %v1589
  %v1591 = vand.u32 %v12, 4294901760
  %1592 = vmatmul.f32.gmra.mxu0 %v1591
  %v1593 = vpop.f32.mrf.mxu0
  %v1594 = vadd.f32 %v1525, %v1593
  %1595 = vdwg.mxu0
  %v1596 = vand.u32 %v262, 4294901760
  %1597 = vmatpush.msra.mxu0 %v1596
  %v1598 = vand.u32 %v254, 4294901760
  %1599 = vmatpush.msra.mxu0 %v1598
  %v1600 = vand.u32 %v246, 4294901760
  %1601 = vmatpush.msra.mxu0 %v1600
  %v1602 = vand.u32 %v238, 4294901760
  %1603 = vmatpush.msra.mxu0 %v1602
  %v1604 = vand.u32 %v230, 4294901760
  %1605 = vmatpush.msra.mxu0 %v1604
  %v1606 = vand.u32 %v222, 4294901760
  %1607 = vmatpush.msra.mxu0 %v1606
  %v1608 = vand.u32 %v214, 4294901760
  %1609 = vmatpush.msra.mxu0 %v1608
  %v1610 = vand.u32 %v206, 4294901760
  %1611 = vmatpush.msra.mxu0 %v1610
  %v1612 = vand.u32 %v198, 4294901760
  %1613 = vmatpush.msra.mxu0 %v1612
  %v1614 = vand.u32 %v190, 4294901760
  %1615 = vmatpush.msra.mxu0 %v1614
  %v1616 = vand.u32 %v182, 4294901760
  %1617 = vmatpush.msra.mxu0 %v1616
  %v1618 = vand.u32 %v174, 4294901760
  %1619 = vmatpush.msra.mxu0 %v1618
  %v1620 = vand.u32 %v166, 4294901760
  %1621 = vmatpush.msra.mxu0 %v1620
  %v1622 = vand.u32 %v158, 4294901760
  %1623 = vmatpush.msra.mxu0 %v1622
  %v1624 = vand.u32 %v150, 4294901760
  %1625 = vmatpush.msra.mxu0 %v1624
  %v1626 = vand.u32 %v142, 4294901760
  %1627 = vmatpush.msra.mxu0 %v1626
  %v1628 = vand.u32 %v12, 4294901760
  %1629 = vmatmul.f32.gmra.mxu0 %v1628
  %v1630 = vpop.f32.mrf.mxu0
  %v1631 = vadd.f32 %v1594, %v1630
  %1632 = vdwg.mxu0
  %v1633 = vand.u32 %v135, 4294901760
  %1634 = vmatpush.msra.mxu0 %v1633
  %v1635 = vand.u32 %v127, 4294901760
  %1636 = vmatpush.msra.mxu0 %v1635
  %v1637 = vand.u32 %v119, 4294901760
  %1638 = vmatpush.msra.mxu0 %v1637
  %v1639 = vand.u32 %v111, 4294901760
  %1640 = vmatpush.msra.mxu0 %v1639
  %v1641 = vand.u32 %v103, 4294901760
  %1642 = vmatpush.msra.mxu0 %v1641
  %v1643 = vand.u32 %v95, 4294901760
  %1644 = vmatpush.msra.mxu0 %v1643
  %v1645 = vand.u32 %v87, 4294901760
  %1646 = vmatpush.msra.mxu0 %v1645
  %v1647 = vand.u32 %v79, 4294901760
  %1648 = vmatpush.msra.mxu0 %v1647
  %v1649 = vand.u32 %v71, 4294901760
  %1650 = vmatpush.msra.mxu0 %v1649
  %v1651 = vand.u32 %v63, 4294901760
  %1652 = vmatpush.msra.mxu0 %v1651
  %v1653 = vand.u32 %v55, 4294901760
  %1654 = vmatpush.msra.mxu0 %v1653
  %v1655 = vand.u32 %v47, 4294901760
  %1656 = vmatpush.msra.mxu0 %v1655
  %v1657 = vand.u32 %v39, 4294901760
  %1658 = vmatpush.msra.mxu0 %v1657
  %v1659 = vand.u32 %v31, 4294901760
  %1660 = vmatpush.msra.mxu0 %v1659
  %v1661 = vand.u32 %v23, 4294901760
  %1662 = vmatpush.msra.mxu0 %v1661
  %v1663 = vand.u32 %v15, 4294901760
  %1664 = vmatpush.msra.mxu0 %v1663
  %v1665 = vand.u32 %v11, 4294901760
  %v1666 = vsub.f32 %v11, %v1665
  %v1667 = vand.u32 %v1666, 4294901760
  %v1668 = vsub.f32 %v1666, %v1667
  %v1669 = vand.u32 %v1668, 4294901760
  %1670 = vmatmul.f32.gmra.mxu0 %v1669
  %v1671 = vpop.f32.mrf.mxu0
  %v1672 = vadd.f32 0.0, %v1671
  %1673 = vdwg.mxu0
  %v1674 = vand.u32 %v135, 4294901760
  %v1675 = vsub.f32 %v135, %v1674
  %v1676 = vand.u32 %v1675, 4294901760
  %v1677 = vsub.f32 %v1675, %v1676
  %v1678 = vand.u32 %v1677, 4294901760
  %1679 = vmatpush.msra.mxu0 %v1678
  %v1680 = vand.u32 %v127, 4294901760
  %v1681 = vsub.f32 %v127, %v1680
  %v1682 = vand.u32 %v1681, 4294901760
  %v1683 = vsub.f32 %v1681, %v1682
  %v1684 = vand.u32 %v1683, 4294901760
  %1685 = vmatpush.msra.mxu0 %v1684
  %v1686 = vand.u32 %v119, 4294901760
  %v1687 = vsub.f32 %v119, %v1686
  %v1688 = vand.u32 %v1687, 4294901760
  %v1689 = vsub.f32 %v1687, %v1688
  %v1690 = vand.u32 %v1689, 4294901760
  %1691 = vmatpush.msra.mxu0 %v1690
  %v1692 = vand.u32 %v111, 4294901760
  %v1693 = vsub.f32 %v111, %v1692
  %v1694 = vand.u32 %v1693, 4294901760
  %v1695 = vsub.f32 %v1693, %v1694
  %v1696 = vand.u32 %v1695, 4294901760
  %1697 = vmatpush.msra.mxu0 %v1696
  %v1698 = vand.u32 %v103, 4294901760
  %v1699 = vsub.f32 %v103, %v1698
  %v1700 = vand.u32 %v1699, 4294901760
  %v1701 = vsub.f32 %v1699, %v1700
  %v1702 = vand.u32 %v1701, 4294901760
  %1703 = vmatpush.msra.mxu0 %v1702
  %v1704 = vand.u32 %v95, 4294901760
  %v1705 = vsub.f32 %v95, %v1704
  %v1706 = vand.u32 %v1705, 4294901760
  %v1707 = vsub.f32 %v1705, %v1706
  %v1708 = vand.u32 %v1707, 4294901760
  %1709 = vmatpush.msra.mxu0 %v1708
  %v1710 = vand.u32 %v87, 4294901760
  %v1711 = vsub.f32 %v87, %v1710
  %v1712 = vand.u32 %v1711, 4294901760
  %v1713 = vsub.f32 %v1711, %v1712
  %v1714 = vand.u32 %v1713, 4294901760
  %1715 = vmatpush.msra.mxu0 %v1714
  %v1716 = vand.u32 %v79, 4294901760
  %v1717 = vsub.f32 %v79, %v1716
  %v1718 = vand.u32 %v1717, 4294901760
  %v1719 = vsub.f32 %v1717, %v1718
  %v1720 = vand.u32 %v1719, 4294901760
  %1721 = vmatpush.msra.mxu0 %v1720
  %v1722 = vand.u32 %v71, 4294901760
  %v1723 = vsub.f32 %v71, %v1722
  %v1724 = vand.u32 %v1723, 4294901760
  %v1725 = vsub.f32 %v1723, %v1724
  %v1726 = vand.u32 %v1725, 4294901760
  %1727 = vmatpush.msra.mxu0 %v1726
  %v1728 = vand.u32 %v63, 4294901760
  %v1729 = vsub.f32 %v63, %v1728
  %v1730 = vand.u32 %v1729, 4294901760
  %v1731 = vsub.f32 %v1729, %v1730
  %v1732 = vand.u32 %v1731, 4294901760
  %1733 = vmatpush.msra.mxu0 %v1732
  %v1734 = vand.u32 %v55, 4294901760
  %v1735 = vsub.f32 %v55, %v1734
  %v1736 = vand.u32 %v1735, 4294901760
  %v1737 = vsub.f32 %v1735, %v1736
  %v1738 = vand.u32 %v1737, 4294901760
  %1739 = vmatpush.msra.mxu0 %v1738
  %v1740 = vand.u32 %v47, 4294901760
  %v1741 = vsub.f32 %v47, %v1740
  %v1742 = vand.u32 %v1741, 4294901760
  %v1743 = vsub.f32 %v1741, %v1742
  %v1744 = vand.u32 %v1743, 4294901760
  %1745 = vmatpush.msra.mxu0 %v1744
  %v1746 = vand.u32 %v39, 4294901760
  %v1747 = vsub.f32 %v39, %v1746
  %v1748 = vand.u32 %v1747, 4294901760
  %v1749 = vsub.f32 %v1747, %v1748
  %v1750 = vand.u32 %v1749, 4294901760
  %1751 = vmatpush.msra.mxu0 %v1750
  %v1752 = vand.u32 %v31, 4294901760
  %v1753 = vsub.f32 %v31, %v1752
  %v1754 = vand.u32 %v1753, 4294901760
  %v1755 = vsub.f32 %v1753, %v1754
  %v1756 = vand.u32 %v1755, 4294901760
  %1757 = vmatpush.msra.mxu0 %v1756
  %v1758 = vand.u32 %v23, 4294901760
  %v1759 = vsub.f32 %v23, %v1758
  %v1760 = vand.u32 %v1759, 4294901760
  %v1761 = vsub.f32 %v1759, %v1760
  %v1762 = vand.u32 %v1761, 4294901760
  %1763 = vmatpush.msra.mxu0 %v1762
  %v1764 = vand.u32 %v15, 4294901760
  %v1765 = vsub.f32 %v15, %v1764
  %v1766 = vand.u32 %v1765, 4294901760
  %v1767 = vsub.f32 %v1765, %v1766
  %v1768 = vand.u32 %v1767, 4294901760
  %1769 = vmatpush.msra.mxu0 %v1768
  %v1770 = vand.u32 %v11, 4294901760
  %1771 = vmatmul.f32.gmra.mxu0 %v1770
  %v1772 = vpop.f32.mrf.mxu0
  %v1773 = vadd.f32 %v1672, %v1772
  %1774 = vdwg.mxu0
  %v1775 = vand.u32 %v135, 4294901760
  %v1776 = vsub.f32 %v135, %v1775
  %1777 = vmatpush.msra.mxu0 %v1776
  %v1778 = vand.u32 %v127, 4294901760
  %v1779 = vsub.f32 %v127, %v1778
  %1780 = vmatpush.msra.mxu0 %v1779
  %v1781 = vand.u32 %v119, 4294901760
  %v1782 = vsub.f32 %v119, %v1781
  %1783 = vmatpush.msra.mxu0 %v1782
  %v1784 = vand.u32 %v111, 4294901760
  %v1785 = vsub.f32 %v111, %v1784
  %1786 = vmatpush.msra.mxu0 %v1785
  %v1787 = vand.u32 %v103, 4294901760
  %v1788 = vsub.f32 %v103, %v1787
  %1789 = vmatpush.msra.mxu0 %v1788
  %v1790 = vand.u32 %v95, 4294901760
  %v1791 = vsub.f32 %v95, %v1790
  %1792 = vmatpush.msra.mxu0 %v1791
  %v1793 = vand.u32 %v87, 4294901760
  %v1794 = vsub.f32 %v87, %v1793
  %1795 = vmatpush.msra.mxu0 %v1794
  %v1796 = vand.u32 %v79, 4294901760
  %v1797 = vsub.f32 %v79, %v1796
  %1798 = vmatpush.msra.mxu0 %v1797
  %v1799 = vand.u32 %v71, 4294901760
  %v1800 = vsub.f32 %v71, %v1799
  %1801 = vmatpush.msra.mxu0 %v1800
  %v1802 = vand.u32 %v63, 4294901760
  %v1803 = vsub.f32 %v63, %v1802
  %1804 = vmatpush.msra.mxu0 %v1803
  %v1805 = vand.u32 %v55, 4294901760
  %v1806 = vsub.f32 %v55, %v1805
  %1807 = vmatpush.msra.mxu0 %v1806
  %v1808 = vand.u32 %v47, 4294901760
  %v1809 = vsub.f32 %v47, %v1808
  %1810 = vmatpush.msra.mxu0 %v1809
  %v1811 = vand.u32 %v39, 4294901760
  %v1812 = vsub.f32 %v39, %v1811
  %1813 = vmatpush.msra.mxu0 %v1812
  %v1814 = vand.u32 %v31, 4294901760
  %v1815 = vsub.f32 %v31, %v1814
  %1816 = vmatpush.msra.mxu0 %v1815
  %v1817 = vand.u32 %v23, 4294901760
  %v1818 = vsub.f32 %v23, %v1817
  %1819 = vmatpush.msra.mxu0 %v1818
  %v1820 = vand.u32 %v15, 4294901760
  %v1821 = vsub.f32 %v15, %v1820
  %1822 = vmatpush.msra.mxu0 %v1821
  %v1823 = vand.u32 %v11, 4294901760
  %v1824 = vsub.f32 %v11, %v1823
  %1825 = vmatmul.f32.gmra.mxu0 %v1824
  %v1826 = vpop.f32.mrf.mxu0
  %v1827 = vadd.f32 %v1773, %v1826
  %1828 = vdwg.mxu0
  %v1829 = vand.u32 %v135, 4294901760
  %1830 = vmatpush.msra.mxu0 %v1829
  %v1831 = vand.u32 %v127, 4294901760
  %1832 = vmatpush.msra.mxu0 %v1831
  %v1833 = vand.u32 %v119, 4294901760
  %1834 = vmatpush.msra.mxu0 %v1833
  %v1835 = vand.u32 %v111, 4294901760
  %1836 = vmatpush.msra.mxu0 %v1835
  %v1837 = vand.u32 %v103, 4294901760
  %1838 = vmatpush.msra.mxu0 %v1837
  %v1839 = vand.u32 %v95, 4294901760
  %1840 = vmatpush.msra.mxu0 %v1839
  %v1841 = vand.u32 %v87, 4294901760
  %1842 = vmatpush.msra.mxu0 %v1841
  %v1843 = vand.u32 %v79, 4294901760
  %1844 = vmatpush.msra.mxu0 %v1843
  %v1845 = vand.u32 %v71, 4294901760
  %1846 = vmatpush.msra.mxu0 %v1845
  %v1847 = vand.u32 %v63, 4294901760
  %1848 = vmatpush.msra.mxu0 %v1847
  %v1849 = vand.u32 %v55, 4294901760
  %1850 = vmatpush.msra.mxu0 %v1849
  %v1851 = vand.u32 %v47, 4294901760
  %1852 = vmatpush.msra.mxu0 %v1851
  %v1853 = vand.u32 %v39, 4294901760
  %1854 = vmatpush.msra.mxu0 %v1853
  %v1855 = vand.u32 %v31, 4294901760
  %1856 = vmatpush.msra.mxu0 %v1855
  %v1857 = vand.u32 %v23, 4294901760
  %1858 = vmatpush.msra.mxu0 %v1857
  %v1859 = vand.u32 %v15, 4294901760
  %1860 = vmatpush.msra.mxu0 %v1859
  %v1861 = vand.u32 %v11, 4294901760
  %v1862 = vsub.f32 %v11, %v1861
  %v1863 = vand.u32 %v1862, 4294901760
  %1864 = vmatmul.f32.gmra.mxu0 %v1863
  %v1865 = vpop.f32.mrf.mxu0
  %v1866 = vadd.f32 %v1827, %v1865
  %1867 = vdwg.mxu0
  %v1868 = vand.u32 %v135, 4294901760
  %v1869 = vsub.f32 %v135, %v1868
  %v1870 = vand.u32 %v1869, 4294901760
  %1871 = vmatpush.msra.mxu0 %v1870
  %v1872 = vand.u32 %v127, 4294901760
  %v1873 = vsub.f32 %v127, %v1872
  %v1874 = vand.u32 %v1873, 4294901760
  %1875 = vmatpush.msra.mxu0 %v1874
  %v1876 = vand.u32 %v119, 4294901760
  %v1877 = vsub.f32 %v119, %v1876
  %v1878 = vand.u32 %v1877, 4294901760
  %1879 = vmatpush.msra.mxu0 %v1878
  %v1880 = vand.u32 %v111, 4294901760
  %v1881 = vsub.f32 %v111, %v1880
  %v1882 = vand.u32 %v1881, 4294901760
  %1883 = vmatpush.msra.mxu0 %v1882
  %v1884 = vand.u32 %v103, 4294901760
  %v1885 = vsub.f32 %v103, %v1884
  %v1886 = vand.u32 %v1885, 4294901760
  %1887 = vmatpush.msra.mxu0 %v1886
  %v1888 = vand.u32 %v95, 4294901760
  %v1889 = vsub.f32 %v95, %v1888
  %v1890 = vand.u32 %v1889, 4294901760
  %1891 = vmatpush.msra.mxu0 %v1890
  %v1892 = vand.u32 %v87, 4294901760
  %v1893 = vsub.f32 %v87, %v1892
  %v1894 = vand.u32 %v1893, 4294901760
  %1895 = vmatpush.msra.mxu0 %v1894
  %v1896 = vand.u32 %v79, 4294901760
  %v1897 = vsub.f32 %v79, %v1896
  %v1898 = vand.u32 %v1897, 4294901760
  %1899 = vmatpush.msra.mxu0 %v1898
  %v1900 = vand.u32 %v71, 4294901760
  %v1901 = vsub.f32 %v71, %v1900
  %v1902 = vand.u32 %v1901, 4294901760
  %1903 = vmatpush.msra.mxu0 %v1902
  %v1904 = vand.u32 %v63, 4294901760
  %v1905 = vsub.f32 %v63, %v1904
  %v1906 = vand.u32 %v1905, 4294901760
  %1907 = vmatpush.msra.mxu0 %v1906
  %v1908 = vand.u32 %v55, 4294901760
  %v1909 = vsub.f32 %v55, %v1908
  %v1910 = vand.u32 %v1909, 4294901760
  %1911 = vmatpush.msra.mxu0 %v1910
  %v1912 = vand.u32 %v47, 4294901760
  %v1913 = vsub.f32 %v47, %v1912
  %v1914 = vand.u32 %v1913, 4294901760
  %1915 = vmatpush.msra.mxu0 %v1914
  %v1916 = vand.u32 %v39, 4294901760
  %v1917 = vsub.f32 %v39, %v1916
  %v1918 = vand.u32 %v1917, 4294901760
  %1919 = vmatpush.msra.mxu0 %v1918
  %v1920 = vand.u32 %v31, 4294901760
  %v1921 = vsub.f32 %v31, %v1920
  %v1922 = vand.u32 %v1921, 4294901760
  %1923 = vmatpush.msra.mxu0 %v1922
  %v1924 = vand.u32 %v23, 4294901760
  %v1925 = vsub.f32 %v23, %v1924
  %v1926 = vand.u32 %v1925, 4294901760
  %1927 = vmatpush.msra.mxu0 %v1926
  %v1928 = vand.u32 %v15, 4294901760
  %v1929 = vsub.f32 %v15, %v1928
  %v1930 = vand.u32 %v1929, 4294901760
  %1931 = vmatpush.msra.mxu0 %v1930
  %v1932 = vand.u32 %v11, 4294901760
  %1933 = vmatmul.f32.gmra.mxu0 %v1932
  %v1934 = vpop.f32.mrf.mxu0
  %v1935 = vadd.f32 %v1866, %v1934
  %1936 = vdwg.mxu0
  %v1937 = vand.u32 %v135, 4294901760
  %1938 = vmatpush.msra.mxu0 %v1937
  %v1939 = vand.u32 %v127, 4294901760
  %1940 = vmatpush.msra.mxu0 %v1939
  %v1941 = vand.u32 %v119, 4294901760
  %1942 = vmatpush.msra.mxu0 %v1941
  %v1943 = vand.u32 %v111, 4294901760
  %1944 = vmatpush.msra.mxu0 %v1943
  %v1945 = vand.u32 %v103, 4294901760
  %1946 = vmatpush.msra.mxu0 %v1945
  %v1947 = vand.u32 %v95, 4294901760
  %1948 = vmatpush.msra.mxu0 %v1947
  %v1949 = vand.u32 %v87, 4294901760
  %1950 = vmatpush.msra.mxu0 %v1949
  %v1951 = vand.u32 %v79, 4294901760
  %1952 = vmatpush.msra.mxu0 %v1951
  %v1953 = vand.u32 %v71, 4294901760
  %1954 = vmatpush.msra.mxu0 %v1953
  %v1955 = vand.u32 %v63, 4294901760
  %1956 = vmatpush.msra.mxu0 %v1955
  %v1957 = vand.u32 %v55, 4294901760
  %1958 = vmatpush.msra.mxu0 %v1957
  %v1959 = vand.u32 %v47, 4294901760
  %1960 = vmatpush.msra.mxu0 %v1959
  %v1961 = vand.u32 %v39, 4294901760
  %1962 = vmatpush.msra.mxu0 %v1961
  %v1963 = vand.u32 %v31, 4294901760
  %1964 = vmatpush.msra.mxu0 %v1963
  %v1965 = vand.u32 %v23, 4294901760
  %1966 = vmatpush.msra.mxu0 %v1965
  %v1967 = vand.u32 %v15, 4294901760
  %1968 = vmatpush.msra.mxu0 %v1967
  %v1969 = vand.u32 %v11, 4294901760
  %1970 = vmatmul.f32.gmra.mxu0 %v1969
  %v1971 = vpop.f32.mrf.mxu0
  %v1972 = vadd.f32 %v1935, %v1971
  %1973 = vdwg.mxu0
  %v1974 = vand.u32 %v263, 4294901760
  %1975 = vmatpush.msra.mxu0 %v1974
  %v1976 = vand.u32 %v255, 4294901760
  %1977 = vmatpush.msra.mxu0 %v1976
  %v1978 = vand.u32 %v247, 4294901760
  %1979 = vmatpush.msra.mxu0 %v1978
  %v1980 = vand.u32 %v239, 4294901760
  %1981 = vmatpush.msra.mxu0 %v1980
  %v1982 = vand.u32 %v231, 4294901760
  %1983 = vmatpush.msra.mxu0 %v1982
  %v1984 = vand.u32 %v223, 4294901760
  %1985 = vmatpush.msra.mxu0 %v1984
  %v1986 = vand.u32 %v215, 4294901760
  %1987 = vmatpush.msra.mxu0 %v1986
  %v1988 = vand.u32 %v207, 4294901760
  %1989 = vmatpush.msra.mxu0 %v1988
  %v1990 = vand.u32 %v199, 4294901760
  %1991 = vmatpush.msra.mxu0 %v1990
  %v1992 = vand.u32 %v191, 4294901760
  %1993 = vmatpush.msra.mxu0 %v1992
  %v1994 = vand.u32 %v183, 4294901760
  %1995 = vmatpush.msra.mxu0 %v1994
  %v1996 = vand.u32 %v175, 4294901760
  %1997 = vmatpush.msra.mxu0 %v1996
  %v1998 = vand.u32 %v167, 4294901760
  %1999 = vmatpush.msra.mxu0 %v1998
  %v2000 = vand.u32 %v159, 4294901760
  %2001 = vmatpush.msra.mxu0 %v2000
  %v2002 = vand.u32 %v151, 4294901760
  %2003 = vmatpush.msra.mxu0 %v2002
  %v2004 = vand.u32 %v143, 4294901760
  %2005 = vmatpush.msra.mxu0 %v2004
  %v2006 = vand.u32 %v12, 4294901760
  %v2007 = vsub.f32 %v12, %v2006
  %v2008 = vand.u32 %v2007, 4294901760
  %v2009 = vsub.f32 %v2007, %v2008
  %v2010 = vand.u32 %v2009, 4294901760
  %2011 = vmatmul.f32.gmra.mxu0 %v2010
  %v2012 = vpop.f32.mrf.mxu0
  %v2013 = vadd.f32 %v1972, %v2012
  %2014 = vdwg.mxu0
  %v2015 = vand.u32 %v263, 4294901760
  %v2016 = vsub.f32 %v263, %v2015
  %v2017 = vand.u32 %v2016, 4294901760
  %v2018 = vsub.f32 %v2016, %v2017
  %v2019 = vand.u32 %v2018, 4294901760
  %2020 = vmatpush.msra.mxu0 %v2019
  %v2021 = vand.u32 %v255, 4294901760
  %v2022 = vsub.f32 %v255, %v2021
  %v2023 = vand.u32 %v2022, 4294901760
  %v2024 = vsub.f32 %v2022, %v2023
  %v2025 = vand.u32 %v2024, 4294901760
  %2026 = vmatpush.msra.mxu0 %v2025
  %v2027 = vand.u32 %v247, 4294901760
  %v2028 = vsub.f32 %v247, %v2027
  %v2029 = vand.u32 %v2028, 4294901760
  %v2030 = vsub.f32 %v2028, %v2029
  %v2031 = vand.u32 %v2030, 4294901760
  %2032 = vmatpush.msra.mxu0 %v2031
  %v2033 = vand.u32 %v239, 4294901760
  %v2034 = vsub.f32 %v239, %v2033
  %v2035 = vand.u32 %v2034, 4294901760
  %v2036 = vsub.f32 %v2034, %v2035
  %v2037 = vand.u32 %v2036, 4294901760
  %2038 = vmatpush.msra.mxu0 %v2037
  %v2039 = vand.u32 %v231, 4294901760
  %v2040 = vsub.f32 %v231, %v2039
  %v2041 = vand.u32 %v2040, 4294901760
  %v2042 = vsub.f32 %v2040, %v2041
  %v2043 = vand.u32 %v2042, 4294901760
  %2044 = vmatpush.msra.mxu0 %v2043
  %v2045 = vand.u32 %v223, 4294901760
  %v2046 = vsub.f32 %v223, %v2045
  %v2047 = vand.u32 %v2046, 4294901760
  %v2048 = vsub.f32 %v2046, %v2047
  %v2049 = vand.u32 %v2048, 4294901760
  %2050 = vmatpush.msra.mxu0 %v2049
  %v2051 = vand.u32 %v215, 4294901760
  %v2052 = vsub.f32 %v215, %v2051
  %v2053 = vand.u32 %v2052, 4294901760
  %v2054 = vsub.f32 %v2052, %v2053
  %v2055 = vand.u32 %v2054, 4294901760
  %2056 = vmatpush.msra.mxu0 %v2055
  %v2057 = vand.u32 %v207, 4294901760
  %v2058 = vsub.f32 %v207, %v2057
  %v2059 = vand.u32 %v2058, 4294901760
  %v2060 = vsub.f32 %v2058, %v2059
  %v2061 = vand.u32 %v2060, 4294901760
  %2062 = vmatpush.msra.mxu0 %v2061
  %v2063 = vand.u32 %v199, 4294901760
  %v2064 = vsub.f32 %v199, %v2063
  %v2065 = vand.u32 %v2064, 4294901760
  %v2066 = vsub.f32 %v2064, %v2065
  %v2067 = vand.u32 %v2066, 4294901760
  %2068 = vmatpush.msra.mxu0 %v2067
  %v2069 = vand.u32 %v191, 4294901760
  %v2070 = vsub.f32 %v191, %v2069
  %v2071 = vand.u32 %v2070, 4294901760
  %v2072 = vsub.f32 %v2070, %v2071
  %v2073 = vand.u32 %v2072, 4294901760
  %2074 = vmatpush.msra.mxu0 %v2073
  %v2075 = vand.u32 %v183, 4294901760
  %v2076 = vsub.f32 %v183, %v2075
  %v2077 = vand.u32 %v2076, 4294901760
  %v2078 = vsub.f32 %v2076, %v2077
  %v2079 = vand.u32 %v2078, 4294901760
  %2080 = vmatpush.msra.mxu0 %v2079
  %v2081 = vand.u32 %v175, 4294901760
  %v2082 = vsub.f32 %v175, %v2081
  %v2083 = vand.u32 %v2082, 4294901760
  %v2084 = vsub.f32 %v2082, %v2083
  %v2085 = vand.u32 %v2084, 4294901760
  %2086 = vmatpush.msra.mxu0 %v2085
  %v2087 = vand.u32 %v167, 4294901760
  %v2088 = vsub.f32 %v167, %v2087
  %v2089 = vand.u32 %v2088, 4294901760
  %v2090 = vsub.f32 %v2088, %v2089
  %v2091 = vand.u32 %v2090, 4294901760
  %2092 = vmatpush.msra.mxu0 %v2091
  %v2093 = vand.u32 %v159, 4294901760
  %v2094 = vsub.f32 %v159, %v2093
  %v2095 = vand.u32 %v2094, 4294901760
  %v2096 = vsub.f32 %v2094, %v2095
  %v2097 = vand.u32 %v2096, 4294901760
  %2098 = vmatpush.msra.mxu0 %v2097
  %v2099 = vand.u32 %v151, 4294901760
  %v2100 = vsub.f32 %v151, %v2099
  %v2101 = vand.u32 %v2100, 4294901760
  %v2102 = vsub.f32 %v2100, %v2101
  %v2103 = vand.u32 %v2102, 4294901760
  %2104 = vmatpush.msra.mxu0 %v2103
  %v2105 = vand.u32 %v143, 4294901760
  %v2106 = vsub.f32 %v143, %v2105
  %v2107 = vand.u32 %v2106, 4294901760
  %v2108 = vsub.f32 %v2106, %v2107
  %v2109 = vand.u32 %v2108, 4294901760
  %2110 = vmatpush.msra.mxu0 %v2109
  %v2111 = vand.u32 %v12, 4294901760
  %2112 = vmatmul.f32.gmra.mxu0 %v2111
  %v2113 = vpop.f32.mrf.mxu0
  %v2114 = vadd.f32 %v2013, %v2113
  %2115 = vdwg.mxu0
  %v2116 = vand.u32 %v263, 4294901760
  %v2117 = vsub.f32 %v263, %v2116
  %2118 = vmatpush.msra.mxu0 %v2117
  %v2119 = vand.u32 %v255, 4294901760
  %v2120 = vsub.f32 %v255, %v2119
  %2121 = vmatpush.msra.mxu0 %v2120
  %v2122 = vand.u32 %v247, 4294901760
  %v2123 = vsub.f32 %v247, %v2122
  %2124 = vmatpush.msra.mxu0 %v2123
  %v2125 = vand.u32 %v239, 4294901760
  %v2126 = vsub.f32 %v239, %v2125
  %2127 = vmatpush.msra.mxu0 %v2126
  %v2128 = vand.u32 %v231, 4294901760
  %v2129 = vsub.f32 %v231, %v2128
  %2130 = vmatpush.msra.mxu0 %v2129
  %v2131 = vand.u32 %v223, 4294901760
  %v2132 = vsub.f32 %v223, %v2131
  %2133 = vmatpush.msra.mxu0 %v2132
  %v2134 = vand.u32 %v215, 4294901760
  %v2135 = vsub.f32 %v215, %v2134
  %2136 = vmatpush.msra.mxu0 %v2135
  %v2137 = vand.u32 %v207, 4294901760
  %v2138 = vsub.f32 %v207, %v2137
  %2139 = vmatpush.msra.mxu0 %v2138
  %v2140 = vand.u32 %v199, 4294901760
  %v2141 = vsub.f32 %v199, %v2140
  %2142 = vmatpush.msra.mxu0 %v2141
  %v2143 = vand.u32 %v191, 4294901760
  %v2144 = vsub.f32 %v191, %v2143
  %2145 = vmatpush.msra.mxu0 %v2144
  %v2146 = vand.u32 %v183, 4294901760
  %v2147 = vsub.f32 %v183, %v2146
  %2148 = vmatpush.msra.mxu0 %v2147
  %v2149 = vand.u32 %v175, 4294901760
  %v2150 = vsub.f32 %v175, %v2149
  %2151 = vmatpush.msra.mxu0 %v2150
  %v2152 = vand.u32 %v167, 4294901760
  %v2153 = vsub.f32 %v167, %v2152
  %2154 = vmatpush.msra.mxu0 %v2153
  %v2155 = vand.u32 %v159, 4294901760
  %v2156 = vsub.f32 %v159, %v2155
  %2157 = vmatpush.msra.mxu0 %v2156
  %v2158 = vand.u32 %v151, 4294901760
  %v2159 = vsub.f32 %v151, %v2158
  %2160 = vmatpush.msra.mxu0 %v2159
  %v2161 = vand.u32 %v143, 4294901760
  %v2162 = vsub.f32 %v143, %v2161
  %2163 = vmatpush.msra.mxu0 %v2162
  %v2164 = vand.u32 %v12, 4294901760
  %v2165 = vsub.f32 %v12, %v2164
  %2166 = vmatmul.f32.gmra.mxu0 %v2165
  %v2167 = vpop.f32.mrf.mxu0
  %v2168 = vadd.f32 %v2114, %v2167
  %2169 = vdwg.mxu0
  %v2170 = vand.u32 %v263, 4294901760
  %2171 = vmatpush.msra.mxu0 %v2170
  %v2172 = vand.u32 %v255, 4294901760
  %2173 = vmatpush.msra.mxu0 %v2172
  %v2174 = vand.u32 %v247, 4294901760
  %2175 = vmatpush.msra.mxu0 %v2174
  %v2176 = vand.u32 %v239, 4294901760
  %2177 = vmatpush.msra.mxu0 %v2176
  %v2178 = vand.u32 %v231, 4294901760
  %2179 = vmatpush.msra.mxu0 %v2178
  %v2180 = vand.u32 %v223, 4294901760
  %2181 = vmatpush.msra.mxu0 %v2180
  %v2182 = vand.u32 %v215, 4294901760
  %2183 = vmatpush.msra.mxu0 %v2182
  %v2184 = vand.u32 %v207, 4294901760
  %2185 = vmatpush.msra.mxu0 %v2184
  %v2186 = vand.u32 %v199, 4294901760
  %2187 = vmatpush.msra.mxu0 %v2186
  %v2188 = vand.u32 %v191, 4294901760
  %2189 = vmatpush.msra.mxu0 %v2188
  %v2190 = vand.u32 %v183, 4294901760
  %2191 = vmatpush.msra.mxu0 %v2190
  %v2192 = vand.u32 %v175, 4294901760
  %2193 = vmatpush.msra.mxu0 %v2192
  %v2194 = vand.u32 %v167, 4294901760
  %2195 = vmatpush.msra.mxu0 %v2194
  %v2196 = vand.u32 %v159, 4294901760
  %2197 = vmatpush.msra.mxu0 %v2196
  %v2198 = vand.u32 %v151, 4294901760
  %2199 = vmatpush.msra.mxu0 %v2198
  %v2200 = vand.u32 %v143, 4294901760
  %2201 = vmatpush.msra.mxu0 %v2200
  %v2202 = vand.u32 %v12, 4294901760
  %v2203 = vsub.f32 %v12, %v2202
  %v2204 = vand.u32 %v2203, 4294901760
  %2205 = vmatmul.f32.gmra.mxu0 %v2204
  %v2206 = vpop.f32.mrf.mxu0
  %v2207 = vadd.f32 %v2168, %v2206
  %2208 = vdwg.mxu0
  %v2209 = vand.u32 %v263, 4294901760
  %v2210 = vsub.f32 %v263, %v2209
  %v2211 = vand.u32 %v2210, 4294901760
  %2212 = vmatpush.msra.mxu0 %v2211
  %v2213 = vand.u32 %v255, 4294901760
  %v2214 = vsub.f32 %v255, %v2213
  %v2215 = vand.u32 %v2214, 4294901760
  %2216 = vmatpush.msra.mxu0 %v2215
  %v2217 = vand.u32 %v247, 4294901760
  %v2218 = vsub.f32 %v247, %v2217
  %v2219 = vand.u32 %v2218, 4294901760
  %2220 = vmatpush.msra.mxu0 %v2219
  %v2221 = vand.u32 %v239, 4294901760
  %v2222 = vsub.f32 %v239, %v2221
  %v2223 = vand.u32 %v2222, 4294901760
  %2224 = vmatpush.msra.mxu0 %v2223
  %v2225 = vand.u32 %v231, 4294901760
  %v2226 = vsub.f32 %v231, %v2225
  %v2227 = vand.u32 %v2226, 4294901760
  %2228 = vmatpush.msra.mxu0 %v2227
  %v2229 = vand.u32 %v223, 4294901760
  %v2230 = vsub.f32 %v223, %v2229
  %v2231 = vand.u32 %v2230, 4294901760
  %2232 = vmatpush.msra.mxu0 %v2231
  %v2233 = vand.u32 %v215, 4294901760
  %v2234 = vsub.f32 %v215, %v2233
  %v2235 = vand.u32 %v2234, 4294901760
  %2236 = vmatpush.msra.mxu0 %v2235
  %v2237 = vand.u32 %v207, 4294901760
  %v2238 = vsub.f32 %v207, %v2237
  %v2239 = vand.u32 %v2238, 4294901760
  %2240 = vmatpush.msra.mxu0 %v2239
  %v2241 = vand.u32 %v199, 4294901760
  %v2242 = vsub.f32 %v199, %v2241
  %v2243 = vand.u32 %v2242, 4294901760
  %2244 = vmatpush.msra.mxu0 %v2243
  %v2245 = vand.u32 %v191, 4294901760
  %v2246 = vsub.f32 %v191, %v2245
  %v2247 = vand.u32 %v2246, 4294901760
  %2248 = vmatpush.msra.mxu0 %v2247
  %v2249 = vand.u32 %v183, 4294901760
  %v2250 = vsub.f32 %v183, %v2249
  %v2251 = vand.u32 %v2250, 4294901760
  %2252 = vmatpush.msra.mxu0 %v2251
  %v2253 = vand.u32 %v175, 4294901760
  %v2254 = vsub.f32 %v175, %v2253
  %v2255 = vand.u32 %v2254, 4294901760
  %2256 = vmatpush.msra.mxu0 %v2255
  %v2257 = vand.u32 %v167, 4294901760
  %v2258 = vsub.f32 %v167, %v2257
  %v2259 = vand.u32 %v2258, 4294901760
  %2260 = vmatpush.msra.mxu0 %v2259
  %v2261 = vand.u32 %v159, 4294901760
  %v2262 = vsub.f32 %v159, %v2261
  %v2263 = vand.u32 %v2262, 4294901760
  %2264 = vmatpush.msra.mxu0 %v2263
  %v2265 = vand.u32 %v151, 4294901760
  %v2266 = vsub.f32 %v151, %v2265
  %v2267 = vand.u32 %v2266, 4294901760
  %2268 = vmatpush.msra.mxu0 %v2267
  %v2269 = vand.u32 %v143, 4294901760
  %v2270 = vsub.f32 %v143, %v2269
  %v2271 = vand.u32 %v2270, 4294901760
  %2272 = vmatpush.msra.mxu0 %v2271
  %v2273 = vand.u32 %v12, 4294901760
  %2274 = vmatmul.f32.gmra.mxu0 %v2273
  %v2275 = vpop.f32.mrf.mxu0
  %v2276 = vadd.f32 %v2207, %v2275
  %2277 = vdwg.mxu0
  %v2278 = vand.u32 %v263, 4294901760
  %2279 = vmatpush.msra.mxu0 %v2278
  %v2280 = vand.u32 %v255, 4294901760
  %2281 = vmatpush.msra.mxu0 %v2280
  %v2282 = vand.u32 %v247, 4294901760
  %2283 = vmatpush.msra.mxu0 %v2282
  %v2284 = vand.u32 %v239, 4294901760
  %2285 = vmatpush.msra.mxu0 %v2284
  %v2286 = vand.u32 %v231, 4294901760
  %2287 = vmatpush.msra.mxu0 %v2286
  %v2288 = vand.u32 %v223, 4294901760
  %2289 = vmatpush.msra.mxu0 %v2288
  %v2290 = vand.u32 %v215, 4294901760
  %2291 = vmatpush.msra.mxu0 %v2290
  %v2292 = vand.u32 %v207, 4294901760
  %2293 = vmatpush.msra.mxu0 %v2292
  %v2294 = vand.u32 %v199, 4294901760
  %2295 = vmatpush.msra.mxu0 %v2294
  %v2296 = vand.u32 %v191, 4294901760
  %2297 = vmatpush.msra.mxu0 %v2296
  %v2298 = vand.u32 %v183, 4294901760
  %2299 = vmatpush.msra.mxu0 %v2298
  %v2300 = vand.u32 %v175, 4294901760
  %2301 = vmatpush.msra.mxu0 %v2300
  %v2302 = vand.u32 %v167, 4294901760
  %2303 = vmatpush.msra.mxu0 %v2302
  %v2304 = vand.u32 %v159, 4294901760
  %2305 = vmatpush.msra.mxu0 %v2304
  %v2306 = vand.u32 %v151, 4294901760
  %2307 = vmatpush.msra.mxu0 %v2306
  %v2308 = vand.u32 %v143, 4294901760
  %2309 = vmatpush.msra.mxu0 %v2308
  %v2310 = vand.u32 %v12, 4294901760
  %2311 = vmatmul.f32.gmra.mxu0 %v2310
  %v2312 = vpop.f32.mrf.mxu0
  %v2313 = vadd.f32 %v2276, %v2312
  %2314 = vdwg.mxu0
  %v2315 = vand.u32 %v136, 4294901760
  %2316 = vmatpush.msra.mxu0 %v2315
  %v2317 = vand.u32 %v128, 4294901760
  %2318 = vmatpush.msra.mxu0 %v2317
  %v2319 = vand.u32 %v120, 4294901760
  %2320 = vmatpush.msra.mxu0 %v2319
  %v2321 = vand.u32 %v112, 4294901760
  %2322 = vmatpush.msra.mxu0 %v2321
  %v2323 = vand.u32 %v104, 4294901760
  %2324 = vmatpush.msra.mxu0 %v2323
  %v2325 = vand.u32 %v96, 4294901760
  %2326 = vmatpush.msra.mxu0 %v2325
  %v2327 = vand.u32 %v88, 4294901760
  %2328 = vmatpush.msra.mxu0 %v2327
  %v2329 = vand.u32 %v80, 4294901760
  %2330 = vmatpush.msra.mxu0 %v2329
  %v2331 = vand.u32 %v72, 4294901760
  %2332 = vmatpush.msra.mxu0 %v2331
  %v2333 = vand.u32 %v64, 4294901760
  %2334 = vmatpush.msra.mxu0 %v2333
  %v2335 = vand.u32 %v56, 4294901760
  %2336 = vmatpush.msra.mxu0 %v2335
  %v2337 = vand.u32 %v48, 4294901760
  %2338 = vmatpush.msra.mxu0 %v2337
  %v2339 = vand.u32 %v40, 4294901760
  %2340 = vmatpush.msra.mxu0 %v2339
  %v2341 = vand.u32 %v32, 4294901760
  %2342 = vmatpush.msra.mxu0 %v2341
  %v2343 = vand.u32 %v24, 4294901760
  %2344 = vmatpush.msra.mxu0 %v2343
  %v2345 = vand.u32 %v16, 4294901760
  %2346 = vmatpush.msra.mxu0 %v2345
  %v2347 = vand.u32 %v11, 4294901760
  %v2348 = vsub.f32 %v11, %v2347
  %v2349 = vand.u32 %v2348, 4294901760
  %v2350 = vsub.f32 %v2348, %v2349
  %v2351 = vand.u32 %v2350, 4294901760
  %2352 = vmatmul.f32.gmra.mxu0 %v2351
  %v2353 = vpop.f32.mrf.mxu0
  %v2354 = vadd.f32 0.0, %v2353
  %2355 = vdwg.mxu0
  %v2356 = vand.u32 %v136, 4294901760
  %v2357 = vsub.f32 %v136, %v2356
  %v2358 = vand.u32 %v2357, 4294901760
  %v2359 = vsub.f32 %v2357, %v2358
  %v2360 = vand.u32 %v2359, 4294901760
  %2361 = vmatpush.msra.mxu0 %v2360
  %v2362 = vand.u32 %v128, 4294901760
  %v2363 = vsub.f32 %v128, %v2362
  %v2364 = vand.u32 %v2363, 4294901760
  %v2365 = vsub.f32 %v2363, %v2364
  %v2366 = vand.u32 %v2365, 4294901760
  %2367 = vmatpush.msra.mxu0 %v2366
  %v2368 = vand.u32 %v120, 4294901760
  %v2369 = vsub.f32 %v120, %v2368
  %v2370 = vand.u32 %v2369, 4294901760
  %v2371 = vsub.f32 %v2369, %v2370
  %v2372 = vand.u32 %v2371, 4294901760
  %2373 = vmatpush.msra.mxu0 %v2372
  %v2374 = vand.u32 %v112, 4294901760
  %v2375 = vsub.f32 %v112, %v2374
  %v2376 = vand.u32 %v2375, 4294901760
  %v2377 = vsub.f32 %v2375, %v2376
  %v2378 = vand.u32 %v2377, 4294901760
  %2379 = vmatpush.msra.mxu0 %v2378
  %v2380 = vand.u32 %v104, 4294901760
  %v2381 = vsub.f32 %v104, %v2380
  %v2382 = vand.u32 %v2381, 4294901760
  %v2383 = vsub.f32 %v2381, %v2382
  %v2384 = vand.u32 %v2383, 4294901760
  %2385 = vmatpush.msra.mxu0 %v2384
  %v2386 = vand.u32 %v96, 4294901760
  %v2387 = vsub.f32 %v96, %v2386
  %v2388 = vand.u32 %v2387, 4294901760
  %v2389 = vsub.f32 %v2387, %v2388
  %v2390 = vand.u32 %v2389, 4294901760
  %2391 = vmatpush.msra.mxu0 %v2390
  %v2392 = vand.u32 %v88, 4294901760
  %v2393 = vsub.f32 %v88, %v2392
  %v2394 = vand.u32 %v2393, 4294901760
  %v2395 = vsub.f32 %v2393, %v2394
  %v2396 = vand.u32 %v2395, 4294901760
  %2397 = vmatpush.msra.mxu0 %v2396
  %v2398 = vand.u32 %v80, 4294901760
  %v2399 = vsub.f32 %v80, %v2398
  %v2400 = vand.u32 %v2399, 4294901760
  %v2401 = vsub.f32 %v2399, %v2400
  %v2402 = vand.u32 %v2401, 4294901760
  %2403 = vmatpush.msra.mxu0 %v2402
  %v2404 = vand.u32 %v72, 4294901760
  %v2405 = vsub.f32 %v72, %v2404
  %v2406 = vand.u32 %v2405, 4294901760
  %v2407 = vsub.f32 %v2405, %v2406
  %v2408 = vand.u32 %v2407, 4294901760
  %2409 = vmatpush.msra.mxu0 %v2408
  %v2410 = vand.u32 %v64, 4294901760
  %v2411 = vsub.f32 %v64, %v2410
  %v2412 = vand.u32 %v2411, 4294901760
  %v2413 = vsub.f32 %v2411, %v2412
  %v2414 = vand.u32 %v2413, 4294901760
  %2415 = vmatpush.msra.mxu0 %v2414
  %v2416 = vand.u32 %v56, 4294901760
  %v2417 = vsub.f32 %v56, %v2416
  %v2418 = vand.u32 %v2417, 4294901760
  %v2419 = vsub.f32 %v2417, %v2418
  %v2420 = vand.u32 %v2419, 4294901760
  %2421 = vmatpush.msra.mxu0 %v2420
  %v2422 = vand.u32 %v48, 4294901760
  %v2423 = vsub.f32 %v48, %v2422
  %v2424 = vand.u32 %v2423, 4294901760
  %v2425 = vsub.f32 %v2423, %v2424
  %v2426 = vand.u32 %v2425, 4294901760
  %2427 = vmatpush.msra.mxu0 %v2426
  %v2428 = vand.u32 %v40, 4294901760
  %v2429 = vsub.f32 %v40, %v2428
  %v2430 = vand.u32 %v2429, 4294901760
  %v2431 = vsub.f32 %v2429, %v2430
  %v2432 = vand.u32 %v2431, 4294901760
  %2433 = vmatpush.msra.mxu0 %v2432
  %v2434 = vand.u32 %v32, 4294901760
  %v2435 = vsub.f32 %v32, %v2434
  %v2436 = vand.u32 %v2435, 4294901760
  %v2437 = vsub.f32 %v2435, %v2436
  %v2438 = vand.u32 %v2437, 4294901760
  %2439 = vmatpush.msra.mxu0 %v2438
  %v2440 = vand.u32 %v24, 4294901760
  %v2441 = vsub.f32 %v24, %v2440
  %v2442 = vand.u32 %v2441, 4294901760
  %v2443 = vsub.f32 %v2441, %v2442
  %v2444 = vand.u32 %v2443, 4294901760
  %2445 = vmatpush.msra.mxu0 %v2444
  %v2446 = vand.u32 %v16, 4294901760
  %v2447 = vsub.f32 %v16, %v2446
  %v2448 = vand.u32 %v2447, 4294901760
  %v2449 = vsub.f32 %v2447, %v2448
  %v2450 = vand.u32 %v2449, 4294901760
  %2451 = vmatpush.msra.mxu0 %v2450
  %v2452 = vand.u32 %v11, 4294901760
  %2453 = vmatmul.f32.gmra.mxu0 %v2452
  %v2454 = vpop.f32.mrf.mxu0
  %v2455 = vadd.f32 %v2354, %v2454
  %2456 = vdwg.mxu0
  %v2457 = vand.u32 %v136, 4294901760
  %v2458 = vsub.f32 %v136, %v2457
  %2459 = vmatpush.msra.mxu0 %v2458
  %v2460 = vand.u32 %v128, 4294901760
  %v2461 = vsub.f32 %v128, %v2460
  %2462 = vmatpush.msra.mxu0 %v2461
  %v2463 = vand.u32 %v120, 4294901760
  %v2464 = vsub.f32 %v120, %v2463
  %2465 = vmatpush.msra.mxu0 %v2464
  %v2466 = vand.u32 %v112, 4294901760
  %v2467 = vsub.f32 %v112, %v2466
  %2468 = vmatpush.msra.mxu0 %v2467
  %v2469 = vand.u32 %v104, 4294901760
  %v2470 = vsub.f32 %v104, %v2469
  %2471 = vmatpush.msra.mxu0 %v2470
  %v2472 = vand.u32 %v96, 4294901760
  %v2473 = vsub.f32 %v96, %v2472
  %2474 = vmatpush.msra.mxu0 %v2473
  %v2475 = vand.u32 %v88, 4294901760
  %v2476 = vsub.f32 %v88, %v2475
  %2477 = vmatpush.msra.mxu0 %v2476
  %v2478 = vand.u32 %v80, 4294901760
  %v2479 = vsub.f32 %v80, %v2478
  %2480 = vmatpush.msra.mxu0 %v2479
  %v2481 = vand.u32 %v72, 4294901760
  %v2482 = vsub.f32 %v72, %v2481
  %2483 = vmatpush.msra.mxu0 %v2482
  %v2484 = vand.u32 %v64, 4294901760
  %v2485 = vsub.f32 %v64, %v2484
  %2486 = vmatpush.msra.mxu0 %v2485
  %v2487 = vand.u32 %v56, 4294901760
  %v2488 = vsub.f32 %v56, %v2487
  %2489 = vmatpush.msra.mxu0 %v2488
  %v2490 = vand.u32 %v48, 4294901760
  %v2491 = vsub.f32 %v48, %v2490
  %2492 = vmatpush.msra.mxu0 %v2491
  %v2493 = vand.u32 %v40, 4294901760
  %v2494 = vsub.f32 %v40, %v2493
  %2495 = vmatpush.msra.mxu0 %v2494
  %v2496 = vand.u32 %v32, 4294901760
  %v2497 = vsub.f32 %v32, %v2496
  %2498 = vmatpush.msra.mxu0 %v2497
  %v2499 = vand.u32 %v24, 4294901760
  %v2500 = vsub.f32 %v24, %v2499
  %2501 = vmatpush.msra.mxu0 %v2500
  %v2502 = vand.u32 %v16, 4294901760
  %v2503 = vsub.f32 %v16, %v2502
  %2504 = vmatpush.msra.mxu0 %v2503
  %v2505 = vand.u32 %v11, 4294901760
  %v2506 = vsub.f32 %v11, %v2505
  %2507 = vmatmul.f32.gmra.mxu0 %v2506
  %v2508 = vpop.f32.mrf.mxu0
  %v2509 = vadd.f32 %v2455, %v2508
  %2510 = vdwg.mxu0
  %v2511 = vand.u32 %v136, 4294901760
  %2512 = vmatpush.msra.mxu0 %v2511
  %v2513 = vand.u32 %v128, 4294901760
  %2514 = vmatpush.msra.mxu0 %v2513
  %v2515 = vand.u32 %v120, 4294901760
  %2516 = vmatpush.msra.mxu0 %v2515
  %v2517 = vand.u32 %v112, 4294901760
  %2518 = vmatpush.msra.mxu0 %v2517
  %v2519 = vand.u32 %v104, 4294901760
  %2520 = vmatpush.msra.mxu0 %v2519
  %v2521 = vand.u32 %v96, 4294901760
  %2522 = vmatpush.msra.mxu0 %v2521
  %v2523 = vand.u32 %v88, 4294901760
  %2524 = vmatpush.msra.mxu0 %v2523
  %v2525 = vand.u32 %v80, 4294901760
  %2526 = vmatpush.msra.mxu0 %v2525
  %v2527 = vand.u32 %v72, 4294901760
  %2528 = vmatpush.msra.mxu0 %v2527
  %v2529 = vand.u32 %v64, 4294901760
  %2530 = vmatpush.msra.mxu0 %v2529
  %v2531 = vand.u32 %v56, 4294901760
  %2532 = vmatpush.msra.mxu0 %v2531
  %v2533 = vand.u32 %v48, 4294901760
  %2534 = vmatpush.msra.mxu0 %v2533
  %v2535 = vand.u32 %v40, 4294901760
  %2536 = vmatpush.msra.mxu0 %v2535
  %v2537 = vand.u32 %v32, 4294901760
  %2538 = vmatpush.msra.mxu0 %v2537
  %v2539 = vand.u32 %v24, 4294901760
  %2540 = vmatpush.msra.mxu0 %v2539
  %v2541 = vand.u32 %v16, 4294901760
  %2542 = vmatpush.msra.mxu0 %v2541
  %v2543 = vand.u32 %v11, 4294901760
  %v2544 = vsub.f32 %v11, %v2543
  %v2545 = vand.u32 %v2544, 4294901760
  %2546 = vmatmul.f32.gmra.mxu0 %v2545
  %v2547 = vpop.f32.mrf.mxu0
  %v2548 = vadd.f32 %v2509, %v2547
  %2549 = vdwg.mxu0
  %v2550 = vand.u32 %v136, 4294901760
  %v2551 = vsub.f32 %v136, %v2550
  %v2552 = vand.u32 %v2551, 4294901760
  %2553 = vmatpush.msra.mxu0 %v2552
  %v2554 = vand.u32 %v128, 4294901760
  %v2555 = vsub.f32 %v128, %v2554
  %v2556 = vand.u32 %v2555, 4294901760
  %2557 = vmatpush.msra.mxu0 %v2556
  %v2558 = vand.u32 %v120, 4294901760
  %v2559 = vsub.f32 %v120, %v2558
  %v2560 = vand.u32 %v2559, 4294901760
  %2561 = vmatpush.msra.mxu0 %v2560
  %v2562 = vand.u32 %v112, 4294901760
  %v2563 = vsub.f32 %v112, %v2562
  %v2564 = vand.u32 %v2563, 4294901760
  %2565 = vmatpush.msra.mxu0 %v2564
  %v2566 = vand.u32 %v104, 4294901760
  %v2567 = vsub.f32 %v104, %v2566
  %v2568 = vand.u32 %v2567, 4294901760
  %2569 = vmatpush.msra.mxu0 %v2568
  %v2570 = vand.u32 %v96, 4294901760
  %v2571 = vsub.f32 %v96, %v2570
  %v2572 = vand.u32 %v2571, 4294901760
  %2573 = vmatpush.msra.mxu0 %v2572
  %v2574 = vand.u32 %v88, 4294901760
  %v2575 = vsub.f32 %v88, %v2574
  %v2576 = vand.u32 %v2575, 4294901760
  %2577 = vmatpush.msra.mxu0 %v2576
  %v2578 = vand.u32 %v80, 4294901760
  %v2579 = vsub.f32 %v80, %v2578
  %v2580 = vand.u32 %v2579, 4294901760
  %2581 = vmatpush.msra.mxu0 %v2580
  %v2582 = vand.u32 %v72, 4294901760
  %v2583 = vsub.f32 %v72, %v2582
  %v2584 = vand.u32 %v2583, 4294901760
  %2585 = vmatpush.msra.mxu0 %v2584
  %v2586 = vand.u32 %v64, 4294901760
  %v2587 = vsub.f32 %v64, %v2586
  %v2588 = vand.u32 %v2587, 4294901760
  %2589 = vmatpush.msra.mxu0 %v2588
  %v2590 = vand.u32 %v56, 4294901760
  %v2591 = vsub.f32 %v56, %v2590
  %v2592 = vand.u32 %v2591, 4294901760
  %2593 = vmatpush.msra.mxu0 %v2592
  %v2594 = vand.u32 %v48, 4294901760
  %v2595 = vsub.f32 %v48, %v2594
  %v2596 = vand.u32 %v2595, 4294901760
  %2597 = vmatpush.msra.mxu0 %v2596
  %v2598 = vand.u32 %v40, 4294901760
  %v2599 = vsub.f32 %v40, %v2598
  %v2600 = vand.u32 %v2599, 4294901760
  %2601 = vmatpush.msra.mxu0 %v2600
  %v2602 = vand.u32 %v32, 4294901760
  %v2603 = vsub.f32 %v32, %v2602
  %v2604 = vand.u32 %v2603, 4294901760
  %2605 = vmatpush.msra.mxu0 %v2604
  %v2606 = vand.u32 %v24, 4294901760
  %v2607 = vsub.f32 %v24, %v2606
  %v2608 = vand.u32 %v2607, 4294901760
  %2609 = vmatpush.msra.mxu0 %v2608
  %v2610 = vand.u32 %v16, 4294901760
  %v2611 = vsub.f32 %v16, %v2610
  %v2612 = vand.u32 %v2611, 4294901760
  %2613 = vmatpush.msra.mxu0 %v2612
  %v2614 = vand.u32 %v11, 4294901760
  %2615 = vmatmul.f32.gmra.mxu0 %v2614
  %v2616 = vpop.f32.mrf.mxu0
  %v2617 = vadd.f32 %v2548, %v2616
  %2618 = vdwg.mxu0
  %v2619 = vand.u32 %v136, 4294901760
  %2620 = vmatpush.msra.mxu0 %v2619
  %v2621 = vand.u32 %v128, 4294901760
  %2622 = vmatpush.msra.mxu0 %v2621
  %v2623 = vand.u32 %v120, 4294901760
  %2624 = vmatpush.msra.mxu0 %v2623
  %v2625 = vand.u32 %v112, 4294901760
  %2626 = vmatpush.msra.mxu0 %v2625
  %v2627 = vand.u32 %v104, 4294901760
  %2628 = vmatpush.msra.mxu0 %v2627
  %v2629 = vand.u32 %v96, 4294901760
  %2630 = vmatpush.msra.mxu0 %v2629
  %v2631 = vand.u32 %v88, 4294901760
  %2632 = vmatpush.msra.mxu0 %v2631
  %v2633 = vand.u32 %v80, 4294901760
  %2634 = vmatpush.msra.mxu0 %v2633
  %v2635 = vand.u32 %v72, 4294901760
  %2636 = vmatpush.msra.mxu0 %v2635
  %v2637 = vand.u32 %v64, 4294901760
  %2638 = vmatpush.msra.mxu0 %v2637
  %v2639 = vand.u32 %v56, 4294901760
  %2640 = vmatpush.msra.mxu0 %v2639
  %v2641 = vand.u32 %v48, 4294901760
  %2642 = vmatpush.msra.mxu0 %v2641
  %v2643 = vand.u32 %v40, 4294901760
  %2644 = vmatpush.msra.mxu0 %v2643
  %v2645 = vand.u32 %v32, 4294901760
  %2646 = vmatpush.msra.mxu0 %v2645
  %v2647 = vand.u32 %v24, 4294901760
  %2648 = vmatpush.msra.mxu0 %v2647
  %v2649 = vand.u32 %v16, 4294901760
  %2650 = vmatpush.msra.mxu0 %v2649
  %v2651 = vand.u32 %v11, 4294901760
  %2652 = vmatmul.f32.gmra.mxu0 %v2651
  %v2653 = vpop.f32.mrf.mxu0
  %v2654 = vadd.f32 %v2617, %v2653
  %2655 = vdwg.mxu0
  %v2656 = vand.u32 %v264, 4294901760
  %2657 = vmatpush.msra.mxu0 %v2656
  %v2658 = vand.u32 %v256, 4294901760
  %2659 = vmatpush.msra.mxu0 %v2658
  %v2660 = vand.u32 %v248, 4294901760
  %2661 = vmatpush.msra.mxu0 %v2660
  %v2662 = vand.u32 %v240, 4294901760
  %2663 = vmatpush.msra.mxu0 %v2662
  %v2664 = vand.u32 %v232, 4294901760
  %2665 = vmatpush.msra.mxu0 %v2664
  %v2666 = vand.u32 %v224, 4294901760
  %2667 = vmatpush.msra.mxu0 %v2666
  %v2668 = vand.u32 %v216, 4294901760
  %2669 = vmatpush.msra.mxu0 %v2668
  %v2670 = vand.u32 %v208, 4294901760
  %2671 = vmatpush.msra.mxu0 %v2670
  %v2672 = vand.u32 %v200, 4294901760
  %2673 = vmatpush.msra.mxu0 %v2672
  %v2674 = vand.u32 %v192, 4294901760
  %2675 = vmatpush.msra.mxu0 %v2674
  %v2676 = vand.u32 %v184, 4294901760
  %2677 = vmatpush.msra.mxu0 %v2676
  %v2678 = vand.u32 %v176, 4294901760
  %2679 = vmatpush.msra.mxu0 %v2678
  %v2680 = vand.u32 %v168, 4294901760
  %2681 = vmatpush.msra.mxu0 %v2680
  %v2682 = vand.u32 %v160, 4294901760
  %2683 = vmatpush.msra.mxu0 %v2682
  %v2684 = vand.u32 %v152, 4294901760
  %2685 = vmatpush.msra.mxu0 %v2684
  %v2686 = vand.u32 %v144, 4294901760
  %2687 = vmatpush.msra.mxu0 %v2686
  %v2688 = vand.u32 %v12, 4294901760
  %v2689 = vsub.f32 %v12, %v2688
  %v2690 = vand.u32 %v2689, 4294901760
  %v2691 = vsub.f32 %v2689, %v2690
  %v2692 = vand.u32 %v2691, 4294901760
  %2693 = vmatmul.f32.gmra.mxu0 %v2692
  %v2694 = vpop.f32.mrf.mxu0
  %v2695 = vadd.f32 %v2654, %v2694
  %2696 = vdwg.mxu0
  %v2697 = vand.u32 %v264, 4294901760
  %v2698 = vsub.f32 %v264, %v2697
  %v2699 = vand.u32 %v2698, 4294901760
  %v2700 = vsub.f32 %v2698, %v2699
  %v2701 = vand.u32 %v2700, 4294901760
  %2702 = vmatpush.msra.mxu0 %v2701
  %v2703 = vand.u32 %v256, 4294901760
  %v2704 = vsub.f32 %v256, %v2703
  %v2705 = vand.u32 %v2704, 4294901760
  %v2706 = vsub.f32 %v2704, %v2705
  %v2707 = vand.u32 %v2706, 4294901760
  %2708 = vmatpush.msra.mxu0 %v2707
  %v2709 = vand.u32 %v248, 4294901760
  %v2710 = vsub.f32 %v248, %v2709
  %v2711 = vand.u32 %v2710, 4294901760
  %v2712 = vsub.f32 %v2710, %v2711
  %v2713 = vand.u32 %v2712, 4294901760
  %2714 = vmatpush.msra.mxu0 %v2713
  %v2715 = vand.u32 %v240, 4294901760
  %v2716 = vsub.f32 %v240, %v2715
  %v2717 = vand.u32 %v2716, 4294901760
  %v2718 = vsub.f32 %v2716, %v2717
  %v2719 = vand.u32 %v2718, 4294901760
  %2720 = vmatpush.msra.mxu0 %v2719
  %v2721 = vand.u32 %v232, 4294901760
  %v2722 = vsub.f32 %v232, %v2721
  %v2723 = vand.u32 %v2722, 4294901760
  %v2724 = vsub.f32 %v2722, %v2723
  %v2725 = vand.u32 %v2724, 4294901760
  %2726 = vmatpush.msra.mxu0 %v2725
  %v2727 = vand.u32 %v224, 4294901760
  %v2728 = vsub.f32 %v224, %v2727
  %v2729 = vand.u32 %v2728, 4294901760
  %v2730 = vsub.f32 %v2728, %v2729
  %v2731 = vand.u32 %v2730, 4294901760
  %2732 = vmatpush.msra.mxu0 %v2731
  %v2733 = vand.u32 %v216, 4294901760
  %v2734 = vsub.f32 %v216, %v2733
  %v2735 = vand.u32 %v2734, 4294901760
  %v2736 = vsub.f32 %v2734, %v2735
  %v2737 = vand.u32 %v2736, 4294901760
  %2738 = vmatpush.msra.mxu0 %v2737
  %v2739 = vand.u32 %v208, 4294901760
  %v2740 = vsub.f32 %v208, %v2739
  %v2741 = vand.u32 %v2740, 4294901760
  %v2742 = vsub.f32 %v2740, %v2741
  %v2743 = vand.u32 %v2742, 4294901760
  %2744 = vmatpush.msra.mxu0 %v2743
  %v2745 = vand.u32 %v200, 4294901760
  %v2746 = vsub.f32 %v200, %v2745
  %v2747 = vand.u32 %v2746, 4294901760
  %v2748 = vsub.f32 %v2746, %v2747
  %v2749 = vand.u32 %v2748, 4294901760
  %2750 = vmatpush.msra.mxu0 %v2749
  %v2751 = vand.u32 %v192, 4294901760
  %v2752 = vsub.f32 %v192, %v2751
  %v2753 = vand.u32 %v2752, 4294901760
  %v2754 = vsub.f32 %v2752, %v2753
  %v2755 = vand.u32 %v2754, 4294901760
  %2756 = vmatpush.msra.mxu0 %v2755
  %v2757 = vand.u32 %v184, 4294901760
  %v2758 = vsub.f32 %v184, %v2757
  %v2759 = vand.u32 %v2758, 4294901760
  %v2760 = vsub.f32 %v2758, %v2759
  %v2761 = vand.u32 %v2760, 4294901760
  %2762 = vmatpush.msra.mxu0 %v2761
  %v2763 = vand.u32 %v176, 4294901760
  %v2764 = vsub.f32 %v176, %v2763
  %v2765 = vand.u32 %v2764, 4294901760
  %v2766 = vsub.f32 %v2764, %v2765
  %v2767 = vand.u32 %v2766, 4294901760
  %2768 = vmatpush.msra.mxu0 %v2767
  %v2769 = vand.u32 %v168, 4294901760
  %v2770 = vsub.f32 %v168, %v2769
  %v2771 = vand.u32 %v2770, 4294901760
  %v2772 = vsub.f32 %v2770, %v2771
  %v2773 = vand.u32 %v2772, 4294901760
  %2774 = vmatpush.msra.mxu0 %v2773
  %v2775 = vand.u32 %v160, 4294901760
  %v2776 = vsub.f32 %v160, %v2775
  %v2777 = vand.u32 %v2776, 4294901760
  %v2778 = vsub.f32 %v2776, %v2777
  %v2779 = vand.u32 %v2778, 4294901760
  %2780 = vmatpush.msra.mxu0 %v2779
  %v2781 = vand.u32 %v152, 4294901760
  %v2782 = vsub.f32 %v152, %v2781
  %v2783 = vand.u32 %v2782, 4294901760
  %v2784 = vsub.f32 %v2782, %v2783
  %v2785 = vand.u32 %v2784, 4294901760
  %2786 = vmatpush.msra.mxu0 %v2785
  %v2787 = vand.u32 %v144, 4294901760
  %v2788 = vsub.f32 %v144, %v2787
  %v2789 = vand.u32 %v2788, 4294901760
  %v2790 = vsub.f32 %v2788, %v2789
  %v2791 = vand.u32 %v2790, 4294901760
  %2792 = vmatpush.msra.mxu0 %v2791
  %v2793 = vand.u32 %v12, 4294901760
  %2794 = vmatmul.f32.gmra.mxu0 %v2793
  %v2795 = vpop.f32.mrf.mxu0
  %v2796 = vadd.f32 %v2695, %v2795
  %2797 = vdwg.mxu0
  %v2798 = vand.u32 %v264, 4294901760
  %v2799 = vsub.f32 %v264, %v2798
  %2800 = vmatpush.msra.mxu0 %v2799
  %v2801 = vand.u32 %v256, 4294901760
  %v2802 = vsub.f32 %v256, %v2801
  %2803 = vmatpush.msra.mxu0 %v2802
  %v2804 = vand.u32 %v248, 4294901760
  %v2805 = vsub.f32 %v248, %v2804
  %2806 = vmatpush.msra.mxu0 %v2805
  %v2807 = vand.u32 %v240, 4294901760
  %v2808 = vsub.f32 %v240, %v2807
  %2809 = vmatpush.msra.mxu0 %v2808
  %v2810 = vand.u32 %v232, 4294901760
  %v2811 = vsub.f32 %v232, %v2810
  %2812 = vmatpush.msra.mxu0 %v2811
  %v2813 = vand.u32 %v224, 4294901760
  %v2814 = vsub.f32 %v224, %v2813
  %2815 = vmatpush.msra.mxu0 %v2814
  %v2816 = vand.u32 %v216, 4294901760
  %v2817 = vsub.f32 %v216, %v2816
  %2818 = vmatpush.msra.mxu0 %v2817
  %v2819 = vand.u32 %v208, 4294901760
  %v2820 = vsub.f32 %v208, %v2819
  %2821 = vmatpush.msra.mxu0 %v2820
  %v2822 = vand.u32 %v200, 4294901760
  %v2823 = vsub.f32 %v200, %v2822
  %2824 = vmatpush.msra.mxu0 %v2823
  %v2825 = vand.u32 %v192, 4294901760
  %v2826 = vsub.f32 %v192, %v2825
  %2827 = vmatpush.msra.mxu0 %v2826
  %v2828 = vand.u32 %v184, 4294901760
  %v2829 = vsub.f32 %v184, %v2828
  %2830 = vmatpush.msra.mxu0 %v2829
  %v2831 = vand.u32 %v176, 4294901760
  %v2832 = vsub.f32 %v176, %v2831
  %2833 = vmatpush.msra.mxu0 %v2832
  %v2834 = vand.u32 %v168, 4294901760
  %v2835 = vsub.f32 %v168, %v2834
  %2836 = vmatpush.msra.mxu0 %v2835
  %v2837 = vand.u32 %v160, 4294901760
  %v2838 = vsub.f32 %v160, %v2837
  %2839 = vmatpush.msra.mxu0 %v2838
  %v2840 = vand.u32 %v152, 4294901760
  %v2841 = vsub.f32 %v152, %v2840
  %2842 = vmatpush.msra.mxu0 %v2841
  %v2843 = vand.u32 %v144, 4294901760
  %v2844 = vsub.f32 %v144, %v2843
  %2845 = vmatpush.msra.mxu0 %v2844
  %v2846 = vand.u32 %v12, 4294901760
  %v2847 = vsub.f32 %v12, %v2846
  %2848 = vmatmul.f32.gmra.mxu0 %v2847
  %v2849 = vpop.f32.mrf.mxu0
  %v2850 = vadd.f32 %v2796, %v2849
  %2851 = vdwg.mxu0
  %v2852 = vand.u32 %v264, 4294901760
  %2853 = vmatpush.msra.mxu0 %v2852
  %v2854 = vand.u32 %v256, 4294901760
  %2855 = vmatpush.msra.mxu0 %v2854
  %v2856 = vand.u32 %v248, 4294901760
  %2857 = vmatpush.msra.mxu0 %v2856
  %v2858 = vand.u32 %v240, 4294901760
  %2859 = vmatpush.msra.mxu0 %v2858
  %v2860 = vand.u32 %v232, 4294901760
  %2861 = vmatpush.msra.mxu0 %v2860
  %v2862 = vand.u32 %v224, 4294901760
  %2863 = vmatpush.msra.mxu0 %v2862
  %v2864 = vand.u32 %v216, 4294901760
  %2865 = vmatpush.msra.mxu0 %v2864
  %v2866 = vand.u32 %v208, 4294901760
  %2867 = vmatpush.msra.mxu0 %v2866
  %v2868 = vand.u32 %v200, 4294901760
  %2869 = vmatpush.msra.mxu0 %v2868
  %v2870 = vand.u32 %v192, 4294901760
  %2871 = vmatpush.msra.mxu0 %v2870
  %v2872 = vand.u32 %v184, 4294901760
  %2873 = vmatpush.msra.mxu0 %v2872
  %v2874 = vand.u32 %v176, 4294901760
  %2875 = vmatpush.msra.mxu0 %v2874
  %v2876 = vand.u32 %v168, 4294901760
  %2877 = vmatpush.msra.mxu0 %v2876
  %v2878 = vand.u32 %v160, 4294901760
  %2879 = vmatpush.msra.mxu0 %v2878
  %v2880 = vand.u32 %v152, 4294901760
  %2881 = vmatpush.msra.mxu0 %v2880
  %v2882 = vand.u32 %v144, 4294901760
  %2883 = vmatpush.msra.mxu0 %v2882
  %v2884 = vand.u32 %v12, 4294901760
  %v2885 = vsub.f32 %v12, %v2884
  %v2886 = vand.u32 %v2885, 4294901760
  %2887 = vmatmul.f32.gmra.mxu0 %v2886
  %v2888 = vpop.f32.mrf.mxu0
  %v2889 = vadd.f32 %v2850, %v2888
  %2890 = vdwg.mxu0
  %v2891 = vand.u32 %v264, 4294901760
  %v2892 = vsub.f32 %v264, %v2891
  %v2893 = vand.u32 %v2892, 4294901760
  %2894 = vmatpush.msra.mxu0 %v2893
  %v2895 = vand.u32 %v256, 4294901760
  %v2896 = vsub.f32 %v256, %v2895
  %v2897 = vand.u32 %v2896, 4294901760
  %2898 = vmatpush.msra.mxu0 %v2897
  %v2899 = vand.u32 %v248, 4294901760
  %v2900 = vsub.f32 %v248, %v2899
  %v2901 = vand.u32 %v2900, 4294901760
  %2902 = vmatpush.msra.mxu0 %v2901
  %v2903 = vand.u32 %v240, 4294901760
  %v2904 = vsub.f32 %v240, %v2903
  %v2905 = vand.u32 %v2904, 4294901760
  %2906 = vmatpush.msra.mxu0 %v2905
  %v2907 = vand.u32 %v232, 4294901760
  %v2908 = vsub.f32 %v232, %v2907
  %v2909 = vand.u32 %v2908, 4294901760
  %2910 = vmatpush.msra.mxu0 %v2909
  %v2911 = vand.u32 %v224, 4294901760
  %v2912 = vsub.f32 %v224, %v2911
  %v2913 = vand.u32 %v2912, 4294901760
  %2914 = vmatpush.msra.mxu0 %v2913
  %v2915 = vand.u32 %v216, 4294901760
  %v2916 = vsub.f32 %v216, %v2915
  %v2917 = vand.u32 %v2916, 4294901760
  %2918 = vmatpush.msra.mxu0 %v2917
  %v2919 = vand.u32 %v208, 4294901760
  %v2920 = vsub.f32 %v208, %v2919
  %v2921 = vand.u32 %v2920, 4294901760
  %2922 = vmatpush.msra.mxu0 %v2921
  %v2923 = vand.u32 %v200, 4294901760
  %v2924 = vsub.f32 %v200, %v2923
  %v2925 = vand.u32 %v2924, 4294901760
  %2926 = vmatpush.msra.mxu0 %v2925
  %v2927 = vand.u32 %v192, 4294901760
  %v2928 = vsub.f32 %v192, %v2927
  %v2929 = vand.u32 %v2928, 4294901760
  %2930 = vmatpush.msra.mxu0 %v2929
  %v2931 = vand.u32 %v184, 4294901760
  %v2932 = vsub.f32 %v184, %v2931
  %v2933 = vand.u32 %v2932, 4294901760
  %2934 = vmatpush.msra.mxu0 %v2933
  %v2935 = vand.u32 %v176, 4294901760
  %v2936 = vsub.f32 %v176, %v2935
  %v2937 = vand.u32 %v2936, 4294901760
  %2938 = vmatpush.msra.mxu0 %v2937
  %v2939 = vand.u32 %v168, 4294901760
  %v2940 = vsub.f32 %v168, %v2939
  %v2941 = vand.u32 %v2940, 4294901760
  %2942 = vmatpush.msra.mxu0 %v2941
  %v2943 = vand.u32 %v160, 4294901760
  %v2944 = vsub.f32 %v160, %v2943
  %v2945 = vand.u32 %v2944, 4294901760
  %2946 = vmatpush.msra.mxu0 %v2945
  %v2947 = vand.u32 %v152, 4294901760
  %v2948 = vsub.f32 %v152, %v2947
  %v2949 = vand.u32 %v2948, 4294901760
  %2950 = vmatpush.msra.mxu0 %v2949
  %v2951 = vand.u32 %v144, 4294901760
  %v2952 = vsub.f32 %v144, %v2951
  %v2953 = vand.u32 %v2952, 4294901760
  %2954 = vmatpush.msra.mxu0 %v2953
  %v2955 = vand.u32 %v12, 4294901760
  %2956 = vmatmul.f32.gmra.mxu0 %v2955
  %v2957 = vpop.f32.mrf.mxu0
  %v2958 = vadd.f32 %v2889, %v2957
  %2959 = vdwg.mxu0
  %v2960 = vand.u32 %v264, 4294901760
  %2961 = vmatpush.msra.mxu0 %v2960
  %v2962 = vand.u32 %v256, 4294901760
  %2963 = vmatpush.msra.mxu0 %v2962
  %v2964 = vand.u32 %v248, 4294901760
  %2965 = vmatpush.msra.mxu0 %v2964
  %v2966 = vand.u32 %v240, 4294901760
  %2967 = vmatpush.msra.mxu0 %v2966
  %v2968 = vand.u32 %v232, 4294901760
  %2969 = vmatpush.msra.mxu0 %v2968
  %v2970 = vand.u32 %v224, 4294901760
  %2971 = vmatpush.msra.mxu0 %v2970
  %v2972 = vand.u32 %v216, 4294901760
  %2973 = vmatpush.msra.mxu0 %v2972
  %v2974 = vand.u32 %v208, 4294901760
  %2975 = vmatpush.msra.mxu0 %v2974
  %v2976 = vand.u32 %v200, 4294901760
  %2977 = vmatpush.msra.mxu0 %v2976
  %v2978 = vand.u32 %v192, 4294901760
  %2979 = vmatpush.msra.mxu0 %v2978
  %v2980 = vand.u32 %v184, 4294901760
  %2981 = vmatpush.msra.mxu0 %v2980
  %v2982 = vand.u32 %v176, 4294901760
  %2983 = vmatpush.msra.mxu0 %v2982
  %v2984 = vand.u32 %v168, 4294901760
  %2985 = vmatpush.msra.mxu0 %v2984
  %v2986 = vand.u32 %v160, 4294901760
  %2987 = vmatpush.msra.mxu0 %v2986
  %v2988 = vand.u32 %v152, 4294901760
  %2989 = vmatpush.msra.mxu0 %v2988
  %v2990 = vand.u32 %v144, 4294901760
  %2991 = vmatpush.msra.mxu0 %v2990
  %v2992 = vand.u32 %v12, 4294901760
  %2993 = vmatmul.f32.gmra.mxu0 %v2992
  %v2994 = vpop.f32.mrf.mxu0
  %v2995 = vadd.f32 %v2958, %v2994
  %2996 = vdwg.mxu0
  %v2997 = vand.u32 %v137, 4294901760
  %2998 = vmatpush.msra.mxu0 %v2997
  %v2999 = vand.u32 %v129, 4294901760
  %3000 = vmatpush.msra.mxu0 %v2999
  %v3001 = vand.u32 %v121, 4294901760
  %3002 = vmatpush.msra.mxu0 %v3001
  %v3003 = vand.u32 %v113, 4294901760
  %3004 = vmatpush.msra.mxu0 %v3003
  %v3005 = vand.u32 %v105, 4294901760
  %3006 = vmatpush.msra.mxu0 %v3005
  %v3007 = vand.u32 %v97, 4294901760
  %3008 = vmatpush.msra.mxu0 %v3007
  %v3009 = vand.u32 %v89, 4294901760
  %3010 = vmatpush.msra.mxu0 %v3009
  %v3011 = vand.u32 %v81, 4294901760
  %3012 = vmatpush.msra.mxu0 %v3011
  %v3013 = vand.u32 %v73, 4294901760
  %3014 = vmatpush.msra.mxu0 %v3013
  %v3015 = vand.u32 %v65, 4294901760
  %3016 = vmatpush.msra.mxu0 %v3015
  %v3017 = vand.u32 %v57, 4294901760
  %3018 = vmatpush.msra.mxu0 %v3017
  %v3019 = vand.u32 %v49, 4294901760
  %3020 = vmatpush.msra.mxu0 %v3019
  %v3021 = vand.u32 %v41, 4294901760
  %3022 = vmatpush.msra.mxu0 %v3021
  %v3023 = vand.u32 %v33, 4294901760
  %3024 = vmatpush.msra.mxu0 %v3023
  %v3025 = vand.u32 %v25, 4294901760
  %3026 = vmatpush.msra.mxu0 %v3025
  %v3027 = vand.u32 %v17, 4294901760
  %3028 = vmatpush.msra.mxu0 %v3027
  %v3029 = vand.u32 %v11, 4294901760
  %v3030 = vsub.f32 %v11, %v3029
  %v3031 = vand.u32 %v3030, 4294901760
  %v3032 = vsub.f32 %v3030, %v3031
  %v3033 = vand.u32 %v3032, 4294901760
  %3034 = vmatmul.f32.gmra.mxu0 %v3033
  %v3035 = vpop.f32.mrf.mxu0
  %v3036 = vadd.f32 0.0, %v3035
  %3037 = vdwg.mxu0
  %v3038 = vand.u32 %v137, 4294901760
  %v3039 = vsub.f32 %v137, %v3038
  %v3040 = vand.u32 %v3039, 4294901760
  %v3041 = vsub.f32 %v3039, %v3040
  %v3042 = vand.u32 %v3041, 4294901760
  %3043 = vmatpush.msra.mxu0 %v3042
  %v3044 = vand.u32 %v129, 4294901760
  %v3045 = vsub.f32 %v129, %v3044
  %v3046 = vand.u32 %v3045, 4294901760
  %v3047 = vsub.f32 %v3045, %v3046
  %v3048 = vand.u32 %v3047, 4294901760
  %3049 = vmatpush.msra.mxu0 %v3048
  %v3050 = vand.u32 %v121, 4294901760
  %v3051 = vsub.f32 %v121, %v3050
  %v3052 = vand.u32 %v3051, 4294901760
  %v3053 = vsub.f32 %v3051, %v3052
  %v3054 = vand.u32 %v3053, 4294901760
  %3055 = vmatpush.msra.mxu0 %v3054
  %v3056 = vand.u32 %v113, 4294901760
  %v3057 = vsub.f32 %v113, %v3056
  %v3058 = vand.u32 %v3057, 4294901760
  %v3059 = vsub.f32 %v3057, %v3058
  %v3060 = vand.u32 %v3059, 4294901760
  %3061 = vmatpush.msra.mxu0 %v3060
  %v3062 = vand.u32 %v105, 4294901760
  %v3063 = vsub.f32 %v105, %v3062
  %v3064 = vand.u32 %v3063, 4294901760
  %v3065 = vsub.f32 %v3063, %v3064
  %v3066 = vand.u32 %v3065, 4294901760
  %3067 = vmatpush.msra.mxu0 %v3066
  %v3068 = vand.u32 %v97, 4294901760
  %v3069 = vsub.f32 %v97, %v3068
  %v3070 = vand.u32 %v3069, 4294901760
  %v3071 = vsub.f32 %v3069, %v3070
  %v3072 = vand.u32 %v3071, 4294901760
  %3073 = vmatpush.msra.mxu0 %v3072
  %v3074 = vand.u32 %v89, 4294901760
  %v3075 = vsub.f32 %v89, %v3074
  %v3076 = vand.u32 %v3075, 4294901760
  %v3077 = vsub.f32 %v3075, %v3076
  %v3078 = vand.u32 %v3077, 4294901760
  %3079 = vmatpush.msra.mxu0 %v3078
  %v3080 = vand.u32 %v81, 4294901760
  %v3081 = vsub.f32 %v81, %v3080
  %v3082 = vand.u32 %v3081, 4294901760
  %v3083 = vsub.f32 %v3081, %v3082
  %v3084 = vand.u32 %v3083, 4294901760
  %3085 = vmatpush.msra.mxu0 %v3084
  %v3086 = vand.u32 %v73, 4294901760
  %v3087 = vsub.f32 %v73, %v3086
  %v3088 = vand.u32 %v3087, 4294901760
  %v3089 = vsub.f32 %v3087, %v3088
  %v3090 = vand.u32 %v3089, 4294901760
  %3091 = vmatpush.msra.mxu0 %v3090
  %v3092 = vand.u32 %v65, 4294901760
  %v3093 = vsub.f32 %v65, %v3092
  %v3094 = vand.u32 %v3093, 4294901760
  %v3095 = vsub.f32 %v3093, %v3094
  %v3096 = vand.u32 %v3095, 4294901760
  %3097 = vmatpush.msra.mxu0 %v3096
  %v3098 = vand.u32 %v57, 4294901760
  %v3099 = vsub.f32 %v57, %v3098
  %v3100 = vand.u32 %v3099, 4294901760
  %v3101 = vsub.f32 %v3099, %v3100
  %v3102 = vand.u32 %v3101, 4294901760
  %3103 = vmatpush.msra.mxu0 %v3102
  %v3104 = vand.u32 %v49, 4294901760
  %v3105 = vsub.f32 %v49, %v3104
  %v3106 = vand.u32 %v3105, 4294901760
  %v3107 = vsub.f32 %v3105, %v3106
  %v3108 = vand.u32 %v3107, 4294901760
  %3109 = vmatpush.msra.mxu0 %v3108
  %v3110 = vand.u32 %v41, 4294901760
  %v3111 = vsub.f32 %v41, %v3110
  %v3112 = vand.u32 %v3111, 4294901760
  %v3113 = vsub.f32 %v3111, %v3112
  %v3114 = vand.u32 %v3113, 4294901760
  %3115 = vmatpush.msra.mxu0 %v3114
  %v3116 = vand.u32 %v33, 4294901760
  %v3117 = vsub.f32 %v33, %v3116
  %v3118 = vand.u32 %v3117, 4294901760
  %v3119 = vsub.f32 %v3117, %v3118
  %v3120 = vand.u32 %v3119, 4294901760
  %3121 = vmatpush.msra.mxu0 %v3120
  %v3122 = vand.u32 %v25, 4294901760
  %v3123 = vsub.f32 %v25, %v3122
  %v3124 = vand.u32 %v3123, 4294901760
  %v3125 = vsub.f32 %v3123, %v3124
  %v3126 = vand.u32 %v3125, 4294901760
  %3127 = vmatpush.msra.mxu0 %v3126
  %v3128 = vand.u32 %v17, 4294901760
  %v3129 = vsub.f32 %v17, %v3128
  %v3130 = vand.u32 %v3129, 4294901760
  %v3131 = vsub.f32 %v3129, %v3130
  %v3132 = vand.u32 %v3131, 4294901760
  %3133 = vmatpush.msra.mxu0 %v3132
  %v3134 = vand.u32 %v11, 4294901760
  %3135 = vmatmul.f32.gmra.mxu0 %v3134
  %v3136 = vpop.f32.mrf.mxu0
  %v3137 = vadd.f32 %v3036, %v3136
  %3138 = vdwg.mxu0
  %v3139 = vand.u32 %v137, 4294901760
  %v3140 = vsub.f32 %v137, %v3139
  %3141 = vmatpush.msra.mxu0 %v3140
  %v3142 = vand.u32 %v129, 4294901760
  %v3143 = vsub.f32 %v129, %v3142
  %3144 = vmatpush.msra.mxu0 %v3143
  %v3145 = vand.u32 %v121, 4294901760
  %v3146 = vsub.f32 %v121, %v3145
  %3147 = vmatpush.msra.mxu0 %v3146
  %v3148 = vand.u32 %v113, 4294901760
  %v3149 = vsub.f32 %v113, %v3148
  %3150 = vmatpush.msra.mxu0 %v3149
  %v3151 = vand.u32 %v105, 4294901760
  %v3152 = vsub.f32 %v105, %v3151
  %3153 = vmatpush.msra.mxu0 %v3152
  %v3154 = vand.u32 %v97, 4294901760
  %v3155 = vsub.f32 %v97, %v3154
  %3156 = vmatpush.msra.mxu0 %v3155
  %v3157 = vand.u32 %v89, 4294901760
  %v3158 = vsub.f32 %v89, %v3157
  %3159 = vmatpush.msra.mxu0 %v3158
  %v3160 = vand.u32 %v81, 4294901760
  %v3161 = vsub.f32 %v81, %v3160
  %3162 = vmatpush.msra.mxu0 %v3161
  %v3163 = vand.u32 %v73, 4294901760
  %v3164 = vsub.f32 %v73, %v3163
  %3165 = vmatpush.msra.mxu0 %v3164
  %v3166 = vand.u32 %v65, 4294901760
  %v3167 = vsub.f32 %v65, %v3166
  %3168 = vmatpush.msra.mxu0 %v3167
  %v3169 = vand.u32 %v57, 4294901760
  %v3170 = vsub.f32 %v57, %v3169
  %3171 = vmatpush.msra.mxu0 %v3170
  %v3172 = vand.u32 %v49, 4294901760
  %v3173 = vsub.f32 %v49, %v3172
  %3174 = vmatpush.msra.mxu0 %v3173
  %v3175 = vand.u32 %v41, 4294901760
  %v3176 = vsub.f32 %v41, %v3175
  %3177 = vmatpush.msra.mxu0 %v3176
  %v3178 = vand.u32 %v33, 4294901760
  %v3179 = vsub.f32 %v33, %v3178
  %3180 = vmatpush.msra.mxu0 %v3179
  %v3181 = vand.u32 %v25, 4294901760
  %v3182 = vsub.f32 %v25, %v3181
  %3183 = vmatpush.msra.mxu0 %v3182
  %v3184 = vand.u32 %v17, 4294901760
  %v3185 = vsub.f32 %v17, %v3184
  %3186 = vmatpush.msra.mxu0 %v3185
  %v3187 = vand.u32 %v11, 4294901760
  %v3188 = vsub.f32 %v11, %v3187
  %3189 = vmatmul.f32.gmra.mxu0 %v3188
  %v3190 = vpop.f32.mrf.mxu0
  %v3191 = vadd.f32 %v3137, %v3190
  %3192 = vdwg.mxu0
  %v3193 = vand.u32 %v137, 4294901760
  %3194 = vmatpush.msra.mxu0 %v3193
  %v3195 = vand.u32 %v129, 4294901760
  %3196 = vmatpush.msra.mxu0 %v3195
  %v3197 = vand.u32 %v121, 4294901760
  %3198 = vmatpush.msra.mxu0 %v3197
  %v3199 = vand.u32 %v113, 4294901760
  %3200 = vmatpush.msra.mxu0 %v3199
  %v3201 = vand.u32 %v105, 4294901760
  %3202 = vmatpush.msra.mxu0 %v3201
  %v3203 = vand.u32 %v97, 4294901760
  %3204 = vmatpush.msra.mxu0 %v3203
  %v3205 = vand.u32 %v89, 4294901760
  %3206 = vmatpush.msra.mxu0 %v3205
  %v3207 = vand.u32 %v81, 4294901760
  %3208 = vmatpush.msra.mxu0 %v3207
  %v3209 = vand.u32 %v73, 4294901760
  %3210 = vmatpush.msra.mxu0 %v3209
  %v3211 = vand.u32 %v65, 4294901760
  %3212 = vmatpush.msra.mxu0 %v3211
  %v3213 = vand.u32 %v57, 4294901760
  %3214 = vmatpush.msra.mxu0 %v3213
  %v3215 = vand.u32 %v49, 4294901760
  %3216 = vmatpush.msra.mxu0 %v3215
  %v3217 = vand.u32 %v41, 4294901760
  %3218 = vmatpush.msra.mxu0 %v3217
  %v3219 = vand.u32 %v33, 4294901760
  %3220 = vmatpush.msra.mxu0 %v3219
  %v3221 = vand.u32 %v25, 4294901760
  %3222 = vmatpush.msra.mxu0 %v3221
  %v3223 = vand.u32 %v17, 4294901760
  %3224 = vmatpush.msra.mxu0 %v3223
  %v3225 = vand.u32 %v11, 4294901760
  %v3226 = vsub.f32 %v11, %v3225
  %v3227 = vand.u32 %v3226, 4294901760
  %3228 = vmatmul.f32.gmra.mxu0 %v3227
  %v3229 = vpop.f32.mrf.mxu0
  %v3230 = vadd.f32 %v3191, %v3229
  %3231 = vdwg.mxu0
  %v3232 = vand.u32 %v137, 4294901760
  %v3233 = vsub.f32 %v137, %v3232
  %v3234 = vand.u32 %v3233, 4294901760
  %3235 = vmatpush.msra.mxu0 %v3234
  %v3236 = vand.u32 %v129, 4294901760
  %v3237 = vsub.f32 %v129, %v3236
  %v3238 = vand.u32 %v3237, 4294901760
  %3239 = vmatpush.msra.mxu0 %v3238
  %v3240 = vand.u32 %v121, 4294901760
  %v3241 = vsub.f32 %v121, %v3240
  %v3242 = vand.u32 %v3241, 4294901760
  %3243 = vmatpush.msra.mxu0 %v3242
  %v3244 = vand.u32 %v113, 4294901760
  %v3245 = vsub.f32 %v113, %v3244
  %v3246 = vand.u32 %v3245, 4294901760
  %3247 = vmatpush.msra.mxu0 %v3246
  %v3248 = vand.u32 %v105, 4294901760
  %v3249 = vsub.f32 %v105, %v3248
  %v3250 = vand.u32 %v3249, 4294901760
  %3251 = vmatpush.msra.mxu0 %v3250
  %v3252 = vand.u32 %v97, 4294901760
  %v3253 = vsub.f32 %v97, %v3252
  %v3254 = vand.u32 %v3253, 4294901760
  %3255 = vmatpush.msra.mxu0 %v3254
  %v3256 = vand.u32 %v89, 4294901760
  %v3257 = vsub.f32 %v89, %v3256
  %v3258 = vand.u32 %v3257, 4294901760
  %3259 = vmatpush.msra.mxu0 %v3258
  %v3260 = vand.u32 %v81, 4294901760
  %v3261 = vsub.f32 %v81, %v3260
  %v3262 = vand.u32 %v3261, 4294901760
  %3263 = vmatpush.msra.mxu0 %v3262
  %v3264 = vand.u32 %v73, 4294901760
  %v3265 = vsub.f32 %v73, %v3264
  %v3266 = vand.u32 %v3265, 4294901760
  %3267 = vmatpush.msra.mxu0 %v3266
  %v3268 = vand.u32 %v65, 4294901760
  %v3269 = vsub.f32 %v65, %v3268
  %v3270 = vand.u32 %v3269, 4294901760
  %3271 = vmatpush.msra.mxu0 %v3270
  %v3272 = vand.u32 %v57, 4294901760
  %v3273 = vsub.f32 %v57, %v3272
  %v3274 = vand.u32 %v3273, 4294901760
  %3275 = vmatpush.msra.mxu0 %v3274
  %v3276 = vand.u32 %v49, 4294901760
  %v3277 = vsub.f32 %v49, %v3276
  %v3278 = vand.u32 %v3277, 4294901760
  %3279 = vmatpush.msra.mxu0 %v3278
  %v3280 = vand.u32 %v41, 4294901760
  %v3281 = vsub.f32 %v41, %v3280
  %v3282 = vand.u32 %v3281, 4294901760
  %3283 = vmatpush.msra.mxu0 %v3282
  %v3284 = vand.u32 %v33, 4294901760
  %v3285 = vsub.f32 %v33, %v3284
  %v3286 = vand.u32 %v3285, 4294901760
  %3287 = vmatpush.msra.mxu0 %v3286
  %v3288 = vand.u32 %v25, 4294901760
  %v3289 = vsub.f32 %v25, %v3288
  %v3290 = vand.u32 %v3289, 4294901760
  %3291 = vmatpush.msra.mxu0 %v3290
  %v3292 = vand.u32 %v17, 4294901760
  %v3293 = vsub.f32 %v17, %v3292
  %v3294 = vand.u32 %v3293, 4294901760
  %3295 = vmatpush.msra.mxu0 %v3294
  %v3296 = vand.u32 %v11, 4294901760
  %3297 = vmatmul.f32.gmra.mxu0 %v3296
  %v3298 = vpop.f32.mrf.mxu0
  %v3299 = vadd.f32 %v3230, %v3298
  %3300 = vdwg.mxu0
  %v3301 = vand.u32 %v137, 4294901760
  %3302 = vmatpush.msra.mxu0 %v3301
  %v3303 = vand.u32 %v129, 4294901760
  %3304 = vmatpush.msra.mxu0 %v3303
  %v3305 = vand.u32 %v121, 4294901760
  %3306 = vmatpush.msra.mxu0 %v3305
  %v3307 = vand.u32 %v113, 4294901760
  %3308 = vmatpush.msra.mxu0 %v3307
  %v3309 = vand.u32 %v105, 4294901760
  %3310 = vmatpush.msra.mxu0 %v3309
  %v3311 = vand.u32 %v97, 4294901760
  %3312 = vmatpush.msra.mxu0 %v3311
  %v3313 = vand.u32 %v89, 4294901760
  %3314 = vmatpush.msra.mxu0 %v3313
  %v3315 = vand.u32 %v81, 4294901760
  %3316 = vmatpush.msra.mxu0 %v3315
  %v3317 = vand.u32 %v73, 4294901760
  %3318 = vmatpush.msra.mxu0 %v3317
  %v3319 = vand.u32 %v65, 4294901760
  %3320 = vmatpush.msra.mxu0 %v3319
  %v3321 = vand.u32 %v57, 4294901760
  %3322 = vmatpush.msra.mxu0 %v3321
  %v3323 = vand.u32 %v49, 4294901760
  %3324 = vmatpush.msra.mxu0 %v3323
  %v3325 = vand.u32 %v41, 4294901760
  %3326 = vmatpush.msra.mxu0 %v3325
  %v3327 = vand.u32 %v33, 4294901760
  %3328 = vmatpush.msra.mxu0 %v3327
  %v3329 = vand.u32 %v25, 4294901760
  %3330 = vmatpush.msra.mxu0 %v3329
  %v3331 = vand.u32 %v17, 4294901760
  %3332 = vmatpush.msra.mxu0 %v3331
  %v3333 = vand.u32 %v11, 4294901760
  %3334 = vmatmul.f32.gmra.mxu0 %v3333
  %v3335 = vpop.f32.mrf.mxu0
  %v3336 = vadd.f32 %v3299, %v3335
  %3337 = vdwg.mxu0
  %v3338 = vand.u32 %v265, 4294901760
  %3339 = vmatpush.msra.mxu0 %v3338
  %v3340 = vand.u32 %v257, 4294901760
  %3341 = vmatpush.msra.mxu0 %v3340
  %v3342 = vand.u32 %v249, 4294901760
  %3343 = vmatpush.msra.mxu0 %v3342
  %v3344 = vand.u32 %v241, 4294901760
  %3345 = vmatpush.msra.mxu0 %v3344
  %v3346 = vand.u32 %v233, 4294901760
  %3347 = vmatpush.msra.mxu0 %v3346
  %v3348 = vand.u32 %v225, 4294901760
  %3349 = vmatpush.msra.mxu0 %v3348
  %v3350 = vand.u32 %v217, 4294901760
  %3351 = vmatpush.msra.mxu0 %v3350
  %v3352 = vand.u32 %v209, 4294901760
  %3353 = vmatpush.msra.mxu0 %v3352
  %v3354 = vand.u32 %v201, 4294901760
  %3355 = vmatpush.msra.mxu0 %v3354
  %v3356 = vand.u32 %v193, 4294901760
  %3357 = vmatpush.msra.mxu0 %v3356
  %v3358 = vand.u32 %v185, 4294901760
  %3359 = vmatpush.msra.mxu0 %v3358
  %v3360 = vand.u32 %v177, 4294901760
  %3361 = vmatpush.msra.mxu0 %v3360
  %v3362 = vand.u32 %v169, 4294901760
  %3363 = vmatpush.msra.mxu0 %v3362
  %v3364 = vand.u32 %v161, 4294901760
  %3365 = vmatpush.msra.mxu0 %v3364
  %v3366 = vand.u32 %v153, 4294901760
  %3367 = vmatpush.msra.mxu0 %v3366
  %v3368 = vand.u32 %v145, 4294901760
  %3369 = vmatpush.msra.mxu0 %v3368
  %v3370 = vand.u32 %v12, 4294901760
  %v3371 = vsub.f32 %v12, %v3370
  %v3372 = vand.u32 %v3371, 4294901760
  %v3373 = vsub.f32 %v3371, %v3372
  %v3374 = vand.u32 %v3373, 4294901760
  %3375 = vmatmul.f32.gmra.mxu0 %v3374
  %v3376 = vpop.f32.mrf.mxu0
  %v3377 = vadd.f32 %v3336, %v3376
  %3378 = vdwg.mxu0
  %v3379 = vand.u32 %v265, 4294901760
  %v3380 = vsub.f32 %v265, %v3379
  %v3381 = vand.u32 %v3380, 4294901760
  %v3382 = vsub.f32 %v3380, %v3381
  %v3383 = vand.u32 %v3382, 4294901760
  %3384 = vmatpush.msra.mxu0 %v3383
  %v3385 = vand.u32 %v257, 4294901760
  %v3386 = vsub.f32 %v257, %v3385
  %v3387 = vand.u32 %v3386, 4294901760
  %v3388 = vsub.f32 %v3386, %v3387
  %v3389 = vand.u32 %v3388, 4294901760
  %3390 = vmatpush.msra.mxu0 %v3389
  %v3391 = vand.u32 %v249, 4294901760
  %v3392 = vsub.f32 %v249, %v3391
  %v3393 = vand.u32 %v3392, 4294901760
  %v3394 = vsub.f32 %v3392, %v3393
  %v3395 = vand.u32 %v3394, 4294901760
  %3396 = vmatpush.msra.mxu0 %v3395
  %v3397 = vand.u32 %v241, 4294901760
  %v3398 = vsub.f32 %v241, %v3397
  %v3399 = vand.u32 %v3398, 4294901760
  %v3400 = vsub.f32 %v3398, %v3399
  %v3401 = vand.u32 %v3400, 4294901760
  %3402 = vmatpush.msra.mxu0 %v3401
  %v3403 = vand.u32 %v233, 4294901760
  %v3404 = vsub.f32 %v233, %v3403
  %v3405 = vand.u32 %v3404, 4294901760
  %v3406 = vsub.f32 %v3404, %v3405
  %v3407 = vand.u32 %v3406, 4294901760
  %3408 = vmatpush.msra.mxu0 %v3407
  %v3409 = vand.u32 %v225, 4294901760
  %v3410 = vsub.f32 %v225, %v3409
  %v3411 = vand.u32 %v3410, 4294901760
  %v3412 = vsub.f32 %v3410, %v3411
  %v3413 = vand.u32 %v3412, 4294901760
  %3414 = vmatpush.msra.mxu0 %v3413
  %v3415 = vand.u32 %v217, 4294901760
  %v3416 = vsub.f32 %v217, %v3415
  %v3417 = vand.u32 %v3416, 4294901760
  %v3418 = vsub.f32 %v3416, %v3417
  %v3419 = vand.u32 %v3418, 4294901760
  %3420 = vmatpush.msra.mxu0 %v3419
  %v3421 = vand.u32 %v209, 4294901760
  %v3422 = vsub.f32 %v209, %v3421
  %v3423 = vand.u32 %v3422, 4294901760
  %v3424 = vsub.f32 %v3422, %v3423
  %v3425 = vand.u32 %v3424, 4294901760
  %3426 = vmatpush.msra.mxu0 %v3425
  %v3427 = vand.u32 %v201, 4294901760
  %v3428 = vsub.f32 %v201, %v3427
  %v3429 = vand.u32 %v3428, 4294901760
  %v3430 = vsub.f32 %v3428, %v3429
  %v3431 = vand.u32 %v3430, 4294901760
  %3432 = vmatpush.msra.mxu0 %v3431
  %v3433 = vand.u32 %v193, 4294901760
  %v3434 = vsub.f32 %v193, %v3433
  %v3435 = vand.u32 %v3434, 4294901760
  %v3436 = vsub.f32 %v3434, %v3435
  %v3437 = vand.u32 %v3436, 4294901760
  %3438 = vmatpush.msra.mxu0 %v3437
  %v3439 = vand.u32 %v185, 4294901760
  %v3440 = vsub.f32 %v185, %v3439
  %v3441 = vand.u32 %v3440, 4294901760
  %v3442 = vsub.f32 %v3440, %v3441
  %v3443 = vand.u32 %v3442, 4294901760
  %3444 = vmatpush.msra.mxu0 %v3443
  %v3445 = vand.u32 %v177, 4294901760
  %v3446 = vsub.f32 %v177, %v3445
  %v3447 = vand.u32 %v3446, 4294901760
  %v3448 = vsub.f32 %v3446, %v3447
  %v3449 = vand.u32 %v3448, 4294901760
  %3450 = vmatpush.msra.mxu0 %v3449
  %v3451 = vand.u32 %v169, 4294901760
  %v3452 = vsub.f32 %v169, %v3451
  %v3453 = vand.u32 %v3452, 4294901760
  %v3454 = vsub.f32 %v3452, %v3453
  %v3455 = vand.u32 %v3454, 4294901760
  %3456 = vmatpush.msra.mxu0 %v3455
  %v3457 = vand.u32 %v161, 4294901760
  %v3458 = vsub.f32 %v161, %v3457
  %v3459 = vand.u32 %v3458, 4294901760
  %v3460 = vsub.f32 %v3458, %v3459
  %v3461 = vand.u32 %v3460, 4294901760
  %3462 = vmatpush.msra.mxu0 %v3461
  %v3463 = vand.u32 %v153, 4294901760
  %v3464 = vsub.f32 %v153, %v3463
  %v3465 = vand.u32 %v3464, 4294901760
  %v3466 = vsub.f32 %v3464, %v3465
  %v3467 = vand.u32 %v3466, 4294901760
  %3468 = vmatpush.msra.mxu0 %v3467
  %v3469 = vand.u32 %v145, 4294901760
  %v3470 = vsub.f32 %v145, %v3469
  %v3471 = vand.u32 %v3470, 4294901760
  %v3472 = vsub.f32 %v3470, %v3471
  %v3473 = vand.u32 %v3472, 4294901760
  %3474 = vmatpush.msra.mxu0 %v3473
  %v3475 = vand.u32 %v12, 4294901760
  %3476 = vmatmul.f32.gmra.mxu0 %v3475
  %v3477 = vpop.f32.mrf.mxu0
  %v3478 = vadd.f32 %v3377, %v3477
  %3479 = vdwg.mxu0
  %v3480 = vand.u32 %v265, 4294901760
  %v3481 = vsub.f32 %v265, %v3480
  %3482 = vmatpush.msra.mxu0 %v3481
  %v3483 = vand.u32 %v257, 4294901760
  %v3484 = vsub.f32 %v257, %v3483
  %3485 = vmatpush.msra.mxu0 %v3484
  %v3486 = vand.u32 %v249, 4294901760
  %v3487 = vsub.f32 %v249, %v3486
  %3488 = vmatpush.msra.mxu0 %v3487
  %v3489 = vand.u32 %v241, 4294901760
  %v3490 = vsub.f32 %v241, %v3489
  %3491 = vmatpush.msra.mxu0 %v3490
  %v3492 = vand.u32 %v233, 4294901760
  %v3493 = vsub.f32 %v233, %v3492
  %3494 = vmatpush.msra.mxu0 %v3493
  %v3495 = vand.u32 %v225, 4294901760
  %v3496 = vsub.f32 %v225, %v3495
  %3497 = vmatpush.msra.mxu0 %v3496
  %v3498 = vand.u32 %v217, 4294901760
  %v3499 = vsub.f32 %v217, %v3498
  %3500 = vmatpush.msra.mxu0 %v3499
  %v3501 = vand.u32 %v209, 4294901760
  %v3502 = vsub.f32 %v209, %v3501
  %3503 = vmatpush.msra.mxu0 %v3502
  %v3504 = vand.u32 %v201, 4294901760
  %v3505 = vsub.f32 %v201, %v3504
  %3506 = vmatpush.msra.mxu0 %v3505
  %v3507 = vand.u32 %v193, 4294901760
  %v3508 = vsub.f32 %v193, %v3507
  %3509 = vmatpush.msra.mxu0 %v3508
  %v3510 = vand.u32 %v185, 4294901760
  %v3511 = vsub.f32 %v185, %v3510
  %3512 = vmatpush.msra.mxu0 %v3511
  %v3513 = vand.u32 %v177, 4294901760
  %v3514 = vsub.f32 %v177, %v3513
  %3515 = vmatpush.msra.mxu0 %v3514
  %v3516 = vand.u32 %v169, 4294901760
  %v3517 = vsub.f32 %v169, %v3516
  %3518 = vmatpush.msra.mxu0 %v3517
  %v3519 = vand.u32 %v161, 4294901760
  %v3520 = vsub.f32 %v161, %v3519
  %3521 = vmatpush.msra.mxu0 %v3520
  %v3522 = vand.u32 %v153, 4294901760
  %v3523 = vsub.f32 %v153, %v3522
  %3524 = vmatpush.msra.mxu0 %v3523
  %v3525 = vand.u32 %v145, 4294901760
  %v3526 = vsub.f32 %v145, %v3525
  %3527 = vmatpush.msra.mxu0 %v3526
  %v3528 = vand.u32 %v12, 4294901760
  %v3529 = vsub.f32 %v12, %v3528
  %3530 = vmatmul.f32.gmra.mxu0 %v3529
  %v3531 = vpop.f32.mrf.mxu0
  %v3532 = vadd.f32 %v3478, %v3531
  %3533 = vdwg.mxu0
  %v3534 = vand.u32 %v265, 4294901760
  %3535 = vmatpush.msra.mxu0 %v3534
  %v3536 = vand.u32 %v257, 4294901760
  %3537 = vmatpush.msra.mxu0 %v3536
  %v3538 = vand.u32 %v249, 4294901760
  %3539 = vmatpush.msra.mxu0 %v3538
  %v3540 = vand.u32 %v241, 4294901760
  %3541 = vmatpush.msra.mxu0 %v3540
  %v3542 = vand.u32 %v233, 4294901760
  %3543 = vmatpush.msra.mxu0 %v3542
  %v3544 = vand.u32 %v225, 4294901760
  %3545 = vmatpush.msra.mxu0 %v3544
  %v3546 = vand.u32 %v217, 4294901760
  %3547 = vmatpush.msra.mxu0 %v3546
  %v3548 = vand.u32 %v209, 4294901760
  %3549 = vmatpush.msra.mxu0 %v3548
  %v3550 = vand.u32 %v201, 4294901760
  %3551 = vmatpush.msra.mxu0 %v3550
  %v3552 = vand.u32 %v193, 4294901760
  %3553 = vmatpush.msra.mxu0 %v3552
  %v3554 = vand.u32 %v185, 4294901760
  %3555 = vmatpush.msra.mxu0 %v3554
  %v3556 = vand.u32 %v177, 4294901760
  %3557 = vmatpush.msra.mxu0 %v3556
  %v3558 = vand.u32 %v169, 4294901760
  %3559 = vmatpush.msra.mxu0 %v3558
  %v3560 = vand.u32 %v161, 4294901760
  %3561 = vmatpush.msra.mxu0 %v3560
  %v3562 = vand.u32 %v153, 4294901760
  %3563 = vmatpush.msra.mxu0 %v3562
  %v3564 = vand.u32 %v145, 4294901760
  %3565 = vmatpush.msra.mxu0 %v3564
  %v3566 = vand.u32 %v12, 4294901760
  %v3567 = vsub.f32 %v12, %v3566
  %v3568 = vand.u32 %v3567, 4294901760
  %3569 = vmatmul.f32.gmra.mxu0 %v3568
  %v3570 = vpop.f32.mrf.mxu0
  %v3571 = vadd.f32 %v3532, %v3570
  %3572 = vdwg.mxu0
  %v3573 = vand.u32 %v265, 4294901760
  %v3574 = vsub.f32 %v265, %v3573
  %v3575 = vand.u32 %v3574, 4294901760
  %3576 = vmatpush.msra.mxu0 %v3575
  %v3577 = vand.u32 %v257, 4294901760
  %v3578 = vsub.f32 %v257, %v3577
  %v3579 = vand.u32 %v3578, 4294901760
  %3580 = vmatpush.msra.mxu0 %v3579
  %v3581 = vand.u32 %v249, 4294901760
  %v3582 = vsub.f32 %v249, %v3581
  %v3583 = vand.u32 %v3582, 4294901760
  %3584 = vmatpush.msra.mxu0 %v3583
  %v3585 = vand.u32 %v241, 4294901760
  %v3586 = vsub.f32 %v241, %v3585
  %v3587 = vand.u32 %v3586, 4294901760
  %3588 = vmatpush.msra.mxu0 %v3587
  %v3589 = vand.u32 %v233, 4294901760
  %v3590 = vsub.f32 %v233, %v3589
  %v3591 = vand.u32 %v3590, 4294901760
  %3592 = vmatpush.msra.mxu0 %v3591
  %v3593 = vand.u32 %v225, 4294901760
  %v3594 = vsub.f32 %v225, %v3593
  %v3595 = vand.u32 %v3594, 4294901760
  %3596 = vmatpush.msra.mxu0 %v3595
  %v3597 = vand.u32 %v217, 4294901760
  %v3598 = vsub.f32 %v217, %v3597
  %v3599 = vand.u32 %v3598, 4294901760
  %3600 = vmatpush.msra.mxu0 %v3599
  %v3601 = vand.u32 %v209, 4294901760
  %v3602 = vsub.f32 %v209, %v3601
  %v3603 = vand.u32 %v3602, 4294901760
  %3604 = vmatpush.msra.mxu0 %v3603
  %v3605 = vand.u32 %v201, 4294901760
  %v3606 = vsub.f32 %v201, %v3605
  %v3607 = vand.u32 %v3606, 4294901760
  %3608 = vmatpush.msra.mxu0 %v3607
  %v3609 = vand.u32 %v193, 4294901760
  %v3610 = vsub.f32 %v193, %v3609
  %v3611 = vand.u32 %v3610, 4294901760
  %3612 = vmatpush.msra.mxu0 %v3611
  %v3613 = vand.u32 %v185, 4294901760
  %v3614 = vsub.f32 %v185, %v3613
  %v3615 = vand.u32 %v3614, 4294901760
  %3616 = vmatpush.msra.mxu0 %v3615
  %v3617 = vand.u32 %v177, 4294901760
  %v3618 = vsub.f32 %v177, %v3617
  %v3619 = vand.u32 %v3618, 4294901760
  %3620 = vmatpush.msra.mxu0 %v3619
  %v3621 = vand.u32 %v169, 4294901760
  %v3622 = vsub.f32 %v169, %v3621
  %v3623 = vand.u32 %v3622, 4294901760
  %3624 = vmatpush.msra.mxu0 %v3623
  %v3625 = vand.u32 %v161, 4294901760
  %v3626 = vsub.f32 %v161, %v3625
  %v3627 = vand.u32 %v3626, 4294901760
  %3628 = vmatpush.msra.mxu0 %v3627
  %v3629 = vand.u32 %v153, 4294901760
  %v3630 = vsub.f32 %v153, %v3629
  %v3631 = vand.u32 %v3630, 4294901760
  %3632 = vmatpush.msra.mxu0 %v3631
  %v3633 = vand.u32 %v145, 4294901760
  %v3634 = vsub.f32 %v145, %v3633
  %v3635 = vand.u32 %v3634, 4294901760
  %3636 = vmatpush.msra.mxu0 %v3635
  %v3637 = vand.u32 %v12, 4294901760
  %3638 = vmatmul.f32.gmra.mxu0 %v3637
  %v3639 = vpop.f32.mrf.mxu0
  %v3640 = vadd.f32 %v3571, %v3639
  %3641 = vdwg.mxu0
  %v3642 = vand.u32 %v265, 4294901760
  %3643 = vmatpush.msra.mxu0 %v3642
  %v3644 = vand.u32 %v257, 4294901760
  %3645 = vmatpush.msra.mxu0 %v3644
  %v3646 = vand.u32 %v249, 4294901760
  %3647 = vmatpush.msra.mxu0 %v3646
  %v3648 = vand.u32 %v241, 4294901760
  %3649 = vmatpush.msra.mxu0 %v3648
  %v3650 = vand.u32 %v233, 4294901760
  %3651 = vmatpush.msra.mxu0 %v3650
  %v3652 = vand.u32 %v225, 4294901760
  %3653 = vmatpush.msra.mxu0 %v3652
  %v3654 = vand.u32 %v217, 4294901760
  %3655 = vmatpush.msra.mxu0 %v3654
  %v3656 = vand.u32 %v209, 4294901760
  %3657 = vmatpush.msra.mxu0 %v3656
  %v3658 = vand.u32 %v201, 4294901760
  %3659 = vmatpush.msra.mxu0 %v3658
  %v3660 = vand.u32 %v193, 4294901760
  %3661 = vmatpush.msra.mxu0 %v3660
  %v3662 = vand.u32 %v185, 4294901760
  %3663 = vmatpush.msra.mxu0 %v3662
  %v3664 = vand.u32 %v177, 4294901760
  %3665 = vmatpush.msra.mxu0 %v3664
  %v3666 = vand.u32 %v169, 4294901760
  %3667 = vmatpush.msra.mxu0 %v3666
  %v3668 = vand.u32 %v161, 4294901760
  %3669 = vmatpush.msra.mxu0 %v3668
  %v3670 = vand.u32 %v153, 4294901760
  %3671 = vmatpush.msra.mxu0 %v3670
  %v3672 = vand.u32 %v145, 4294901760
  %3673 = vmatpush.msra.mxu0 %v3672
  %v3674 = vand.u32 %v12, 4294901760
  %3675 = vmatmul.f32.gmra.mxu0 %v3674
  %v3676 = vpop.f32.mrf.mxu0
  %v3677 = vadd.f32 %v3640, %v3676
  %3678 = vdwg.mxu0
  %v3679 = vand.u32 %v138, 4294901760
  %3680 = vmatpush.msra.mxu0 %v3679
  %v3681 = vand.u32 %v130, 4294901760
  %3682 = vmatpush.msra.mxu0 %v3681
  %v3683 = vand.u32 %v122, 4294901760
  %3684 = vmatpush.msra.mxu0 %v3683
  %v3685 = vand.u32 %v114, 4294901760
  %3686 = vmatpush.msra.mxu0 %v3685
  %v3687 = vand.u32 %v106, 4294901760
  %3688 = vmatpush.msra.mxu0 %v3687
  %v3689 = vand.u32 %v98, 4294901760
  %3690 = vmatpush.msra.mxu0 %v3689
  %v3691 = vand.u32 %v90, 4294901760
  %3692 = vmatpush.msra.mxu0 %v3691
  %v3693 = vand.u32 %v82, 4294901760
  %3694 = vmatpush.msra.mxu0 %v3693
  %v3695 = vand.u32 %v74, 4294901760
  %3696 = vmatpush.msra.mxu0 %v3695
  %v3697 = vand.u32 %v66, 4294901760
  %3698 = vmatpush.msra.mxu0 %v3697
  %v3699 = vand.u32 %v58, 4294901760
  %3700 = vmatpush.msra.mxu0 %v3699
  %v3701 = vand.u32 %v50, 4294901760
  %3702 = vmatpush.msra.mxu0 %v3701
  %v3703 = vand.u32 %v42, 4294901760
  %3704 = vmatpush.msra.mxu0 %v3703
  %v3705 = vand.u32 %v34, 4294901760
  %3706 = vmatpush.msra.mxu0 %v3705
  %v3707 = vand.u32 %v26, 4294901760
  %3708 = vmatpush.msra.mxu0 %v3707
  %v3709 = vand.u32 %v18, 4294901760
  %3710 = vmatpush.msra.mxu0 %v3709
  %v3711 = vand.u32 %v11, 4294901760
  %v3712 = vsub.f32 %v11, %v3711
  %v3713 = vand.u32 %v3712, 4294901760
  %v3714 = vsub.f32 %v3712, %v3713
  %v3715 = vand.u32 %v3714, 4294901760
  %3716 = vmatmul.f32.gmra.mxu0 %v3715
  %v3717 = vpop.f32.mrf.mxu0
  %v3718 = vadd.f32 0.0, %v3717
  %3719 = vdwg.mxu0
  %v3720 = vand.u32 %v138, 4294901760
  %v3721 = vsub.f32 %v138, %v3720
  %v3722 = vand.u32 %v3721, 4294901760
  %v3723 = vsub.f32 %v3721, %v3722
  %v3724 = vand.u32 %v3723, 4294901760
  %3725 = vmatpush.msra.mxu0 %v3724
  %v3726 = vand.u32 %v130, 4294901760
  %v3727 = vsub.f32 %v130, %v3726
  %v3728 = vand.u32 %v3727, 4294901760
  %v3729 = vsub.f32 %v3727, %v3728
  %v3730 = vand.u32 %v3729, 4294901760
  %3731 = vmatpush.msra.mxu0 %v3730
  %v3732 = vand.u32 %v122, 4294901760
  %v3733 = vsub.f32 %v122, %v3732
  %v3734 = vand.u32 %v3733, 4294901760
  %v3735 = vsub.f32 %v3733, %v3734
  %v3736 = vand.u32 %v3735, 4294901760
  %3737 = vmatpush.msra.mxu0 %v3736
  %v3738 = vand.u32 %v114, 4294901760
  %v3739 = vsub.f32 %v114, %v3738
  %v3740 = vand.u32 %v3739, 4294901760
  %v3741 = vsub.f32 %v3739, %v3740
  %v3742 = vand.u32 %v3741, 4294901760
  %3743 = vmatpush.msra.mxu0 %v3742
  %v3744 = vand.u32 %v106, 4294901760
  %v3745 = vsub.f32 %v106, %v3744
  %v3746 = vand.u32 %v3745, 4294901760
  %v3747 = vsub.f32 %v3745, %v3746
  %v3748 = vand.u32 %v3747, 4294901760
  %3749 = vmatpush.msra.mxu0 %v3748
  %v3750 = vand.u32 %v98, 4294901760
  %v3751 = vsub.f32 %v98, %v3750
  %v3752 = vand.u32 %v3751, 4294901760
  %v3753 = vsub.f32 %v3751, %v3752
  %v3754 = vand.u32 %v3753, 4294901760
  %3755 = vmatpush.msra.mxu0 %v3754
  %v3756 = vand.u32 %v90, 4294901760
  %v3757 = vsub.f32 %v90, %v3756
  %v3758 = vand.u32 %v3757, 4294901760
  %v3759 = vsub.f32 %v3757, %v3758
  %v3760 = vand.u32 %v3759, 4294901760
  %3761 = vmatpush.msra.mxu0 %v3760
  %v3762 = vand.u32 %v82, 4294901760
  %v3763 = vsub.f32 %v82, %v3762
  %v3764 = vand.u32 %v3763, 4294901760
  %v3765 = vsub.f32 %v3763, %v3764
  %v3766 = vand.u32 %v3765, 4294901760
  %3767 = vmatpush.msra.mxu0 %v3766
  %v3768 = vand.u32 %v74, 4294901760
  %v3769 = vsub.f32 %v74, %v3768
  %v3770 = vand.u32 %v3769, 4294901760
  %v3771 = vsub.f32 %v3769, %v3770
  %v3772 = vand.u32 %v3771, 4294901760
  %3773 = vmatpush.msra.mxu0 %v3772
  %v3774 = vand.u32 %v66, 4294901760
  %v3775 = vsub.f32 %v66, %v3774
  %v3776 = vand.u32 %v3775, 4294901760
  %v3777 = vsub.f32 %v3775, %v3776
  %v3778 = vand.u32 %v3777, 4294901760
  %3779 = vmatpush.msra.mxu0 %v3778
  %v3780 = vand.u32 %v58, 4294901760
  %v3781 = vsub.f32 %v58, %v3780
  %v3782 = vand.u32 %v3781, 4294901760
  %v3783 = vsub.f32 %v3781, %v3782
  %v3784 = vand.u32 %v3783, 4294901760
  %3785 = vmatpush.msra.mxu0 %v3784
  %v3786 = vand.u32 %v50, 4294901760
  %v3787 = vsub.f32 %v50, %v3786
  %v3788 = vand.u32 %v3787, 4294901760
  %v3789 = vsub.f32 %v3787, %v3788
  %v3790 = vand.u32 %v3789, 4294901760
  %3791 = vmatpush.msra.mxu0 %v3790
  %v3792 = vand.u32 %v42, 4294901760
  %v3793 = vsub.f32 %v42, %v3792
  %v3794 = vand.u32 %v3793, 4294901760
  %v3795 = vsub.f32 %v3793, %v3794
  %v3796 = vand.u32 %v3795, 4294901760
  %3797 = vmatpush.msra.mxu0 %v3796
  %v3798 = vand.u32 %v34, 4294901760
  %v3799 = vsub.f32 %v34, %v3798
  %v3800 = vand.u32 %v3799, 4294901760
  %v3801 = vsub.f32 %v3799, %v3800
  %v3802 = vand.u32 %v3801, 4294901760
  %3803 = vmatpush.msra.mxu0 %v3802
  %v3804 = vand.u32 %v26, 4294901760
  %v3805 = vsub.f32 %v26, %v3804
  %v3806 = vand.u32 %v3805, 4294901760
  %v3807 = vsub.f32 %v3805, %v3806
  %v3808 = vand.u32 %v3807, 4294901760
  %3809 = vmatpush.msra.mxu0 %v3808
  %v3810 = vand.u32 %v18, 4294901760
  %v3811 = vsub.f32 %v18, %v3810
  %v3812 = vand.u32 %v3811, 4294901760
  %v3813 = vsub.f32 %v3811, %v3812
  %v3814 = vand.u32 %v3813, 4294901760
  %3815 = vmatpush.msra.mxu0 %v3814
  %v3816 = vand.u32 %v11, 4294901760
  %3817 = vmatmul.f32.gmra.mxu0 %v3816
  %v3818 = vpop.f32.mrf.mxu0
  %v3819 = vadd.f32 %v3718, %v3818
  %3820 = vdwg.mxu0
  %v3821 = vand.u32 %v138, 4294901760
  %v3822 = vsub.f32 %v138, %v3821
  %3823 = vmatpush.msra.mxu0 %v3822
  %v3824 = vand.u32 %v130, 4294901760
  %v3825 = vsub.f32 %v130, %v3824
  %3826 = vmatpush.msra.mxu0 %v3825
  %v3827 = vand.u32 %v122, 4294901760
  %v3828 = vsub.f32 %v122, %v3827
  %3829 = vmatpush.msra.mxu0 %v3828
  %v3830 = vand.u32 %v114, 4294901760
  %v3831 = vsub.f32 %v114, %v3830
  %3832 = vmatpush.msra.mxu0 %v3831
  %v3833 = vand.u32 %v106, 4294901760
  %v3834 = vsub.f32 %v106, %v3833
  %3835 = vmatpush.msra.mxu0 %v3834
  %v3836 = vand.u32 %v98, 4294901760
  %v3837 = vsub.f32 %v98, %v3836
  %3838 = vmatpush.msra.mxu0 %v3837
  %v3839 = vand.u32 %v90, 4294901760
  %v3840 = vsub.f32 %v90, %v3839
  %3841 = vmatpush.msra.mxu0 %v3840
  %v3842 = vand.u32 %v82, 4294901760
  %v3843 = vsub.f32 %v82, %v3842
  %3844 = vmatpush.msra.mxu0 %v3843
  %v3845 = vand.u32 %v74, 4294901760
  %v3846 = vsub.f32 %v74, %v3845
  %3847 = vmatpush.msra.mxu0 %v3846
  %v3848 = vand.u32 %v66, 4294901760
  %v3849 = vsub.f32 %v66, %v3848
  %3850 = vmatpush.msra.mxu0 %v3849
  %v3851 = vand.u32 %v58, 4294901760
  %v3852 = vsub.f32 %v58, %v3851
  %3853 = vmatpush.msra.mxu0 %v3852
  %v3854 = vand.u32 %v50, 4294901760
  %v3855 = vsub.f32 %v50, %v3854
  %3856 = vmatpush.msra.mxu0 %v3855
  %v3857 = vand.u32 %v42, 4294901760
  %v3858 = vsub.f32 %v42, %v3857
  %3859 = vmatpush.msra.mxu0 %v3858
  %v3860 = vand.u32 %v34, 4294901760
  %v3861 = vsub.f32 %v34, %v3860
  %3862 = vmatpush.msra.mxu0 %v3861
  %v3863 = vand.u32 %v26, 4294901760
  %v3864 = vsub.f32 %v26, %v3863
  %3865 = vmatpush.msra.mxu0 %v3864
  %v3866 = vand.u32 %v18, 4294901760
  %v3867 = vsub.f32 %v18, %v3866
  %3868 = vmatpush.msra.mxu0 %v3867
  %v3869 = vand.u32 %v11, 4294901760
  %v3870 = vsub.f32 %v11, %v3869
  %3871 = vmatmul.f32.gmra.mxu0 %v3870
  %v3872 = vpop.f32.mrf.mxu0
  %v3873 = vadd.f32 %v3819, %v3872
  %3874 = vdwg.mxu0
  %v3875 = vand.u32 %v138, 4294901760
  %3876 = vmatpush.msra.mxu0 %v3875
  %v3877 = vand.u32 %v130, 4294901760
  %3878 = vmatpush.msra.mxu0 %v3877
  %v3879 = vand.u32 %v122, 4294901760
  %3880 = vmatpush.msra.mxu0 %v3879
  %v3881 = vand.u32 %v114, 4294901760
  %3882 = vmatpush.msra.mxu0 %v3881
  %v3883 = vand.u32 %v106, 4294901760
  %3884 = vmatpush.msra.mxu0 %v3883
  %v3885 = vand.u32 %v98, 4294901760
  %3886 = vmatpush.msra.mxu0 %v3885
  %v3887 = vand.u32 %v90, 4294901760
  %3888 = vmatpush.msra.mxu0 %v3887
  %v3889 = vand.u32 %v82, 4294901760
  %3890 = vmatpush.msra.mxu0 %v3889
  %v3891 = vand.u32 %v74, 4294901760
  %3892 = vmatpush.msra.mxu0 %v3891
  %v3893 = vand.u32 %v66, 4294901760
  %3894 = vmatpush.msra.mxu0 %v3893
  %v3895 = vand.u32 %v58, 4294901760
  %3896 = vmatpush.msra.mxu0 %v3895
  %v3897 = vand.u32 %v50, 4294901760
  %3898 = vmatpush.msra.mxu0 %v3897
  %v3899 = vand.u32 %v42, 4294901760
  %3900 = vmatpush.msra.mxu0 %v3899
  %v3901 = vand.u32 %v34, 4294901760
  %3902 = vmatpush.msra.mxu0 %v3901
  %v3903 = vand.u32 %v26, 4294901760
  %3904 = vmatpush.msra.mxu0 %v3903
  %v3905 = vand.u32 %v18, 4294901760
  %3906 = vmatpush.msra.mxu0 %v3905
  %v3907 = vand.u32 %v11, 4294901760
  %v3908 = vsub.f32 %v11, %v3907
  %v3909 = vand.u32 %v3908, 4294901760
  %3910 = vmatmul.f32.gmra.mxu0 %v3909
  %v3911 = vpop.f32.mrf.mxu0
  %v3912 = vadd.f32 %v3873, %v3911
  %3913 = vdwg.mxu0
  %v3914 = vand.u32 %v138, 4294901760
  %v3915 = vsub.f32 %v138, %v3914
  %v3916 = vand.u32 %v3915, 4294901760
  %3917 = vmatpush.msra.mxu0 %v3916
  %v3918 = vand.u32 %v130, 4294901760
  %v3919 = vsub.f32 %v130, %v3918
  %v3920 = vand.u32 %v3919, 4294901760
  %3921 = vmatpush.msra.mxu0 %v3920
  %v3922 = vand.u32 %v122, 4294901760
  %v3923 = vsub.f32 %v122, %v3922
  %v3924 = vand.u32 %v3923, 4294901760
  %3925 = vmatpush.msra.mxu0 %v3924
  %v3926 = vand.u32 %v114, 4294901760
  %v3927 = vsub.f32 %v114, %v3926
  %v3928 = vand.u32 %v3927, 4294901760
  %3929 = vmatpush.msra.mxu0 %v3928
  %v3930 = vand.u32 %v106, 4294901760
  %v3931 = vsub.f32 %v106, %v3930
  %v3932 = vand.u32 %v3931, 4294901760
  %3933 = vmatpush.msra.mxu0 %v3932
  %v3934 = vand.u32 %v98, 4294901760
  %v3935 = vsub.f32 %v98, %v3934
  %v3936 = vand.u32 %v3935, 4294901760
  %3937 = vmatpush.msra.mxu0 %v3936
  %v3938 = vand.u32 %v90, 4294901760
  %v3939 = vsub.f32 %v90, %v3938
  %v3940 = vand.u32 %v3939, 4294901760
  %3941 = vmatpush.msra.mxu0 %v3940
  %v3942 = vand.u32 %v82, 4294901760
  %v3943 = vsub.f32 %v82, %v3942
  %v3944 = vand.u32 %v3943, 4294901760
  %3945 = vmatpush.msra.mxu0 %v3944
  %v3946 = vand.u32 %v74, 4294901760
  %v3947 = vsub.f32 %v74, %v3946
  %v3948 = vand.u32 %v3947, 4294901760
  %3949 = vmatpush.msra.mxu0 %v3948
  %v3950 = vand.u32 %v66, 4294901760
  %v3951 = vsub.f32 %v66, %v3950
  %v3952 = vand.u32 %v3951, 4294901760
  %3953 = vmatpush.msra.mxu0 %v3952
  %v3954 = vand.u32 %v58, 4294901760
  %v3955 = vsub.f32 %v58, %v3954
  %v3956 = vand.u32 %v3955, 4294901760
  %3957 = vmatpush.msra.mxu0 %v3956
  %v3958 = vand.u32 %v50, 4294901760
  %v3959 = vsub.f32 %v50, %v3958
  %v3960 = vand.u32 %v3959, 4294901760
  %3961 = vmatpush.msra.mxu0 %v3960
  %v3962 = vand.u32 %v42, 4294901760
  %v3963 = vsub.f32 %v42, %v3962
  %v3964 = vand.u32 %v3963, 4294901760
  %3965 = vmatpush.msra.mxu0 %v3964
  %v3966 = vand.u32 %v34, 4294901760
  %v3967 = vsub.f32 %v34, %v3966
  %v3968 = vand.u32 %v3967, 4294901760
  %3969 = vmatpush.msra.mxu0 %v3968
  %v3970 = vand.u32 %v26, 4294901760
  %v3971 = vsub.f32 %v26, %v3970
  %v3972 = vand.u32 %v3971, 4294901760
  %3973 = vmatpush.msra.mxu0 %v3972
  %v3974 = vand.u32 %v18, 4294901760
  %v3975 = vsub.f32 %v18, %v3974
  %v3976 = vand.u32 %v3975, 4294901760
  %3977 = vmatpush.msra.mxu0 %v3976
  %v3978 = vand.u32 %v11, 4294901760
  %3979 = vmatmul.f32.gmra.mxu0 %v3978
  %v3980 = vpop.f32.mrf.mxu0
  %v3981 = vadd.f32 %v3912, %v3980
  %3982 = vdwg.mxu0
  %v3983 = vand.u32 %v138, 4294901760
  %3984 = vmatpush.msra.mxu0 %v3983
  %v3985 = vand.u32 %v130, 4294901760
  %3986 = vmatpush.msra.mxu0 %v3985
  %v3987 = vand.u32 %v122, 4294901760
  %3988 = vmatpush.msra.mxu0 %v3987
  %v3989 = vand.u32 %v114, 4294901760
  %3990 = vmatpush.msra.mxu0 %v3989
  %v3991 = vand.u32 %v106, 4294901760
  %3992 = vmatpush.msra.mxu0 %v3991
  %v3993 = vand.u32 %v98, 4294901760
  %3994 = vmatpush.msra.mxu0 %v3993
  %v3995 = vand.u32 %v90, 4294901760
  %3996 = vmatpush.msra.mxu0 %v3995
  %v3997 = vand.u32 %v82, 4294901760
  %3998 = vmatpush.msra.mxu0 %v3997
  %v3999 = vand.u32 %v74, 4294901760
  %4000 = vmatpush.msra.mxu0 %v3999
  %v4001 = vand.u32 %v66, 4294901760
  %4002 = vmatpush.msra.mxu0 %v4001
  %v4003 = vand.u32 %v58, 4294901760
  %4004 = vmatpush.msra.mxu0 %v4003
  %v4005 = vand.u32 %v50, 4294901760
  %4006 = vmatpush.msra.mxu0 %v4005
  %v4007 = vand.u32 %v42, 4294901760
  %4008 = vmatpush.msra.mxu0 %v4007
  %v4009 = vand.u32 %v34, 4294901760
  %4010 = vmatpush.msra.mxu0 %v4009
  %v4011 = vand.u32 %v26, 4294901760
  %4012 = vmatpush.msra.mxu0 %v4011
  %v4013 = vand.u32 %v18, 4294901760
  %4014 = vmatpush.msra.mxu0 %v4013
  %v4015 = vand.u32 %v11, 4294901760
  %4016 = vmatmul.f32.gmra.mxu0 %v4015
  %v4017 = vpop.f32.mrf.mxu0
  %v4018 = vadd.f32 %v3981, %v4017
  %4019 = vdwg.mxu0
  %v4020 = vand.u32 %v266, 4294901760
  %4021 = vmatpush.msra.mxu0 %v4020
  %v4022 = vand.u32 %v258, 4294901760
  %4023 = vmatpush.msra.mxu0 %v4022
  %v4024 = vand.u32 %v250, 4294901760
  %4025 = vmatpush.msra.mxu0 %v4024
  %v4026 = vand.u32 %v242, 4294901760
  %4027 = vmatpush.msra.mxu0 %v4026
  %v4028 = vand.u32 %v234, 4294901760
  %4029 = vmatpush.msra.mxu0 %v4028
  %v4030 = vand.u32 %v226, 4294901760
  %4031 = vmatpush.msra.mxu0 %v4030
  %v4032 = vand.u32 %v218, 4294901760
  %4033 = vmatpush.msra.mxu0 %v4032
  %v4034 = vand.u32 %v210, 4294901760
  %4035 = vmatpush.msra.mxu0 %v4034
  %v4036 = vand.u32 %v202, 4294901760
  %4037 = vmatpush.msra.mxu0 %v4036
  %v4038 = vand.u32 %v194, 4294901760
  %4039 = vmatpush.msra.mxu0 %v4038
  %v4040 = vand.u32 %v186, 4294901760
  %4041 = vmatpush.msra.mxu0 %v4040
  %v4042 = vand.u32 %v178, 4294901760
  %4043 = vmatpush.msra.mxu0 %v4042
  %v4044 = vand.u32 %v170, 4294901760
  %4045 = vmatpush.msra.mxu0 %v4044
  %v4046 = vand.u32 %v162, 4294901760
  %4047 = vmatpush.msra.mxu0 %v4046
  %v4048 = vand.u32 %v154, 4294901760
  %4049 = vmatpush.msra.mxu0 %v4048
  %v4050 = vand.u32 %v146, 4294901760
  %4051 = vmatpush.msra.mxu0 %v4050
  %v4052 = vand.u32 %v12, 4294901760
  %v4053 = vsub.f32 %v12, %v4052
  %v4054 = vand.u32 %v4053, 4294901760
  %v4055 = vsub.f32 %v4053, %v4054
  %v4056 = vand.u32 %v4055, 4294901760
  %4057 = vmatmul.f32.gmra.mxu0 %v4056
  %v4058 = vpop.f32.mrf.mxu0
  %v4059 = vadd.f32 %v4018, %v4058
  %4060 = vdwg.mxu0
  %v4061 = vand.u32 %v266, 4294901760
  %v4062 = vsub.f32 %v266, %v4061
  %v4063 = vand.u32 %v4062, 4294901760
  %v4064 = vsub.f32 %v4062, %v4063
  %v4065 = vand.u32 %v4064, 4294901760
  %4066 = vmatpush.msra.mxu0 %v4065
  %v4067 = vand.u32 %v258, 4294901760
  %v4068 = vsub.f32 %v258, %v4067
  %v4069 = vand.u32 %v4068, 4294901760
  %v4070 = vsub.f32 %v4068, %v4069
  %v4071 = vand.u32 %v4070, 4294901760
  %4072 = vmatpush.msra.mxu0 %v4071
  %v4073 = vand.u32 %v250, 4294901760
  %v4074 = vsub.f32 %v250, %v4073
  %v4075 = vand.u32 %v4074, 4294901760
  %v4076 = vsub.f32 %v4074, %v4075
  %v4077 = vand.u32 %v4076, 4294901760
  %4078 = vmatpush.msra.mxu0 %v4077
  %v4079 = vand.u32 %v242, 4294901760
  %v4080 = vsub.f32 %v242, %v4079
  %v4081 = vand.u32 %v4080, 4294901760
  %v4082 = vsub.f32 %v4080, %v4081
  %v4083 = vand.u32 %v4082, 4294901760
  %4084 = vmatpush.msra.mxu0 %v4083
  %v4085 = vand.u32 %v234, 4294901760
  %v4086 = vsub.f32 %v234, %v4085
  %v4087 = vand.u32 %v4086, 4294901760
  %v4088 = vsub.f32 %v4086, %v4087
  %v4089 = vand.u32 %v4088, 4294901760
  %4090 = vmatpush.msra.mxu0 %v4089
  %v4091 = vand.u32 %v226, 4294901760
  %v4092 = vsub.f32 %v226, %v4091
  %v4093 = vand.u32 %v4092, 4294901760
  %v4094 = vsub.f32 %v4092, %v4093
  %v4095 = vand.u32 %v4094, 4294901760
  %4096 = vmatpush.msra.mxu0 %v4095
  %v4097 = vand.u32 %v218, 4294901760
  %v4098 = vsub.f32 %v218, %v4097
  %v4099 = vand.u32 %v4098, 4294901760
  %v4100 = vsub.f32 %v4098, %v4099
  %v4101 = vand.u32 %v4100, 4294901760
  %4102 = vmatpush.msra.mxu0 %v4101
  %v4103 = vand.u32 %v210, 4294901760
  %v4104 = vsub.f32 %v210, %v4103
  %v4105 = vand.u32 %v4104, 4294901760
  %v4106 = vsub.f32 %v4104, %v4105
  %v4107 = vand.u32 %v4106, 4294901760
  %4108 = vmatpush.msra.mxu0 %v4107
  %v4109 = vand.u32 %v202, 4294901760
  %v4110 = vsub.f32 %v202, %v4109
  %v4111 = vand.u32 %v4110, 4294901760
  %v4112 = vsub.f32 %v4110, %v4111
  %v4113 = vand.u32 %v4112, 4294901760
  %4114 = vmatpush.msra.mxu0 %v4113
  %v4115 = vand.u32 %v194, 4294901760
  %v4116 = vsub.f32 %v194, %v4115
  %v4117 = vand.u32 %v4116, 4294901760
  %v4118 = vsub.f32 %v4116, %v4117
  %v4119 = vand.u32 %v4118, 4294901760
  %4120 = vmatpush.msra.mxu0 %v4119
  %v4121 = vand.u32 %v186, 4294901760
  %v4122 = vsub.f32 %v186, %v4121
  %v4123 = vand.u32 %v4122, 4294901760
  %v4124 = vsub.f32 %v4122, %v4123
  %v4125 = vand.u32 %v4124, 4294901760
  %4126 = vmatpush.msra.mxu0 %v4125
  %v4127 = vand.u32 %v178, 4294901760
  %v4128 = vsub.f32 %v178, %v4127
  %v4129 = vand.u32 %v4128, 4294901760
  %v4130 = vsub.f32 %v4128, %v4129
  %v4131 = vand.u32 %v4130, 4294901760
  %4132 = vmatpush.msra.mxu0 %v4131
  %v4133 = vand.u32 %v170, 4294901760
  %v4134 = vsub.f32 %v170, %v4133
  %v4135 = vand.u32 %v4134, 4294901760
  %v4136 = vsub.f32 %v4134, %v4135
  %v4137 = vand.u32 %v4136, 4294901760
  %4138 = vmatpush.msra.mxu0 %v4137
  %v4139 = vand.u32 %v162, 4294901760
  %v4140 = vsub.f32 %v162, %v4139
  %v4141 = vand.u32 %v4140, 4294901760
  %v4142 = vsub.f32 %v4140, %v4141
  %v4143 = vand.u32 %v4142, 4294901760
  %4144 = vmatpush.msra.mxu0 %v4143
  %v4145 = vand.u32 %v154, 4294901760
  %v4146 = vsub.f32 %v154, %v4145
  %v4147 = vand.u32 %v4146, 4294901760
  %v4148 = vsub.f32 %v4146, %v4147
  %v4149 = vand.u32 %v4148, 4294901760
  %4150 = vmatpush.msra.mxu0 %v4149
  %v4151 = vand.u32 %v146, 4294901760
  %v4152 = vsub.f32 %v146, %v4151
  %v4153 = vand.u32 %v4152, 4294901760
  %v4154 = vsub.f32 %v4152, %v4153
  %v4155 = vand.u32 %v4154, 4294901760
  %4156 = vmatpush.msra.mxu0 %v4155
  %v4157 = vand.u32 %v12, 4294901760
  %4158 = vmatmul.f32.gmra.mxu0 %v4157
  %v4159 = vpop.f32.mrf.mxu0
  %v4160 = vadd.f32 %v4059, %v4159
  %4161 = vdwg.mxu0
  %v4162 = vand.u32 %v266, 4294901760
  %v4163 = vsub.f32 %v266, %v4162
  %4164 = vmatpush.msra.mxu0 %v4163
  %v4165 = vand.u32 %v258, 4294901760
  %v4166 = vsub.f32 %v258, %v4165
  %4167 = vmatpush.msra.mxu0 %v4166
  %v4168 = vand.u32 %v250, 4294901760
  %v4169 = vsub.f32 %v250, %v4168
  %4170 = vmatpush.msra.mxu0 %v4169
  %v4171 = vand.u32 %v242, 4294901760
  %v4172 = vsub.f32 %v242, %v4171
  %4173 = vmatpush.msra.mxu0 %v4172
  %v4174 = vand.u32 %v234, 4294901760
  %v4175 = vsub.f32 %v234, %v4174
  %4176 = vmatpush.msra.mxu0 %v4175
  %v4177 = vand.u32 %v226, 4294901760
  %v4178 = vsub.f32 %v226, %v4177
  %4179 = vmatpush.msra.mxu0 %v4178
  %v4180 = vand.u32 %v218, 4294901760
  %v4181 = vsub.f32 %v218, %v4180
  %4182 = vmatpush.msra.mxu0 %v4181
  %v4183 = vand.u32 %v210, 4294901760
  %v4184 = vsub.f32 %v210, %v4183
  %4185 = vmatpush.msra.mxu0 %v4184
  %v4186 = vand.u32 %v202, 4294901760
  %v4187 = vsub.f32 %v202, %v4186
  %4188 = vmatpush.msra.mxu0 %v4187
  %v4189 = vand.u32 %v194, 4294901760
  %v4190 = vsub.f32 %v194, %v4189
  %4191 = vmatpush.msra.mxu0 %v4190
  %v4192 = vand.u32 %v186, 4294901760
  %v4193 = vsub.f32 %v186, %v4192
  %4194 = vmatpush.msra.mxu0 %v4193
  %v4195 = vand.u32 %v178, 4294901760
  %v4196 = vsub.f32 %v178, %v4195
  %4197 = vmatpush.msra.mxu0 %v4196
  %v4198 = vand.u32 %v170, 4294901760
  %v4199 = vsub.f32 %v170, %v4198
  %4200 = vmatpush.msra.mxu0 %v4199
  %v4201 = vand.u32 %v162, 4294901760
  %v4202 = vsub.f32 %v162, %v4201
  %4203 = vmatpush.msra.mxu0 %v4202
  %v4204 = vand.u32 %v154, 4294901760
  %v4205 = vsub.f32 %v154, %v4204
  %4206 = vmatpush.msra.mxu0 %v4205
  %v4207 = vand.u32 %v146, 4294901760
  %v4208 = vsub.f32 %v146, %v4207
  %4209 = vmatpush.msra.mxu0 %v4208
  %v4210 = vand.u32 %v12, 4294901760
  %v4211 = vsub.f32 %v12, %v4210
  %4212 = vmatmul.f32.gmra.mxu0 %v4211
  %v4213 = vpop.f32.mrf.mxu0
  %v4214 = vadd.f32 %v4160, %v4213
  %4215 = vdwg.mxu0
  %v4216 = vand.u32 %v266, 4294901760
  %4217 = vmatpush.msra.mxu0 %v4216
  %v4218 = vand.u32 %v258, 4294901760
  %4219 = vmatpush.msra.mxu0 %v4218
  %v4220 = vand.u32 %v250, 4294901760
  %4221 = vmatpush.msra.mxu0 %v4220
  %v4222 = vand.u32 %v242, 4294901760
  %4223 = vmatpush.msra.mxu0 %v4222
  %v4224 = vand.u32 %v234, 4294901760
  %4225 = vmatpush.msra.mxu0 %v4224
  %v4226 = vand.u32 %v226, 4294901760
  %4227 = vmatpush.msra.mxu0 %v4226
  %v4228 = vand.u32 %v218, 4294901760
  %4229 = vmatpush.msra.mxu0 %v4228
  %v4230 = vand.u32 %v210, 4294901760
  %4231 = vmatpush.msra.mxu0 %v4230
  %v4232 = vand.u32 %v202, 4294901760
  %4233 = vmatpush.msra.mxu0 %v4232
  %v4234 = vand.u32 %v194, 4294901760
  %4235 = vmatpush.msra.mxu0 %v4234
  %v4236 = vand.u32 %v186, 4294901760
  %4237 = vmatpush.msra.mxu0 %v4236
  %v4238 = vand.u32 %v178, 4294901760
  %4239 = vmatpush.msra.mxu0 %v4238
  %v4240 = vand.u32 %v170, 4294901760
  %4241 = vmatpush.msra.mxu0 %v4240
  %v4242 = vand.u32 %v162, 4294901760
  %4243 = vmatpush.msra.mxu0 %v4242
  %v4244 = vand.u32 %v154, 4294901760
  %4245 = vmatpush.msra.mxu0 %v4244
  %v4246 = vand.u32 %v146, 4294901760
  %4247 = vmatpush.msra.mxu0 %v4246
  %v4248 = vand.u32 %v12, 4294901760
  %v4249 = vsub.f32 %v12, %v4248
  %v4250 = vand.u32 %v4249, 4294901760
  %4251 = vmatmul.f32.gmra.mxu0 %v4250
  %v4252 = vpop.f32.mrf.mxu0
  %v4253 = vadd.f32 %v4214, %v4252
  %4254 = vdwg.mxu0
  %v4255 = vand.u32 %v266, 4294901760
  %v4256 = vsub.f32 %v266, %v4255
  %v4257 = vand.u32 %v4256, 4294901760
  %4258 = vmatpush.msra.mxu0 %v4257
  %v4259 = vand.u32 %v258, 4294901760
  %v4260 = vsub.f32 %v258, %v4259
  %v4261 = vand.u32 %v4260, 4294901760
  %4262 = vmatpush.msra.mxu0 %v4261
  %v4263 = vand.u32 %v250, 4294901760
  %v4264 = vsub.f32 %v250, %v4263
  %v4265 = vand.u32 %v4264, 4294901760
  %4266 = vmatpush.msra.mxu0 %v4265
  %v4267 = vand.u32 %v242, 4294901760
  %v4268 = vsub.f32 %v242, %v4267
  %v4269 = vand.u32 %v4268, 4294901760
  %4270 = vmatpush.msra.mxu0 %v4269
  %v4271 = vand.u32 %v234, 4294901760
  %v4272 = vsub.f32 %v234, %v4271
  %v4273 = vand.u32 %v4272, 4294901760
  %4274 = vmatpush.msra.mxu0 %v4273
  %v4275 = vand.u32 %v226, 4294901760
  %v4276 = vsub.f32 %v226, %v4275
  %v4277 = vand.u32 %v4276, 4294901760
  %4278 = vmatpush.msra.mxu0 %v4277
  %v4279 = vand.u32 %v218, 4294901760
  %v4280 = vsub.f32 %v218, %v4279
  %v4281 = vand.u32 %v4280, 4294901760
  %4282 = vmatpush.msra.mxu0 %v4281
  %v4283 = vand.u32 %v210, 4294901760
  %v4284 = vsub.f32 %v210, %v4283
  %v4285 = vand.u32 %v4284, 4294901760
  %4286 = vmatpush.msra.mxu0 %v4285
  %v4287 = vand.u32 %v202, 4294901760
  %v4288 = vsub.f32 %v202, %v4287
  %v4289 = vand.u32 %v4288, 4294901760
  %4290 = vmatpush.msra.mxu0 %v4289
  %v4291 = vand.u32 %v194, 4294901760
  %v4292 = vsub.f32 %v194, %v4291
  %v4293 = vand.u32 %v4292, 4294901760
  %4294 = vmatpush.msra.mxu0 %v4293
  %v4295 = vand.u32 %v186, 4294901760
  %v4296 = vsub.f32 %v186, %v4295
  %v4297 = vand.u32 %v4296, 4294901760
  %4298 = vmatpush.msra.mxu0 %v4297
  %v4299 = vand.u32 %v178, 4294901760
  %v4300 = vsub.f32 %v178, %v4299
  %v4301 = vand.u32 %v4300, 4294901760
  %4302 = vmatpush.msra.mxu0 %v4301
  %v4303 = vand.u32 %v170, 4294901760
  %v4304 = vsub.f32 %v170, %v4303
  %v4305 = vand.u32 %v4304, 4294901760
  %4306 = vmatpush.msra.mxu0 %v4305
  %v4307 = vand.u32 %v162, 4294901760
  %v4308 = vsub.f32 %v162, %v4307
  %v4309 = vand.u32 %v4308, 4294901760
  %4310 = vmatpush.msra.mxu0 %v4309
  %v4311 = vand.u32 %v154, 4294901760
  %v4312 = vsub.f32 %v154, %v4311
  %v4313 = vand.u32 %v4312, 4294901760
  %4314 = vmatpush.msra.mxu0 %v4313
  %v4315 = vand.u32 %v146, 4294901760
  %v4316 = vsub.f32 %v146, %v4315
  %v4317 = vand.u32 %v4316, 4294901760
  %4318 = vmatpush.msra.mxu0 %v4317
  %v4319 = vand.u32 %v12, 4294901760
  %4320 = vmatmul.f32.gmra.mxu0 %v4319
  %v4321 = vpop.f32.mrf.mxu0
  %v4322 = vadd.f32 %v4253, %v4321
  %4323 = vdwg.mxu0
  %v4324 = vand.u32 %v266, 4294901760
  %4325 = vmatpush.msra.mxu0 %v4324
  %v4326 = vand.u32 %v258, 4294901760
  %4327 = vmatpush.msra.mxu0 %v4326
  %v4328 = vand.u32 %v250, 4294901760
  %4329 = vmatpush.msra.mxu0 %v4328
  %v4330 = vand.u32 %v242, 4294901760
  %4331 = vmatpush.msra.mxu0 %v4330
  %v4332 = vand.u32 %v234, 4294901760
  %4333 = vmatpush.msra.mxu0 %v4332
  %v4334 = vand.u32 %v226, 4294901760
  %4335 = vmatpush.msra.mxu0 %v4334
  %v4336 = vand.u32 %v218, 4294901760
  %4337 = vmatpush.msra.mxu0 %v4336
  %v4338 = vand.u32 %v210, 4294901760
  %4339 = vmatpush.msra.mxu0 %v4338
  %v4340 = vand.u32 %v202, 4294901760
  %4341 = vmatpush.msra.mxu0 %v4340
  %v4342 = vand.u32 %v194, 4294901760
  %4343 = vmatpush.msra.mxu0 %v4342
  %v4344 = vand.u32 %v186, 4294901760
  %4345 = vmatpush.msra.mxu0 %v4344
  %v4346 = vand.u32 %v178, 4294901760
  %4347 = vmatpush.msra.mxu0 %v4346
  %v4348 = vand.u32 %v170, 4294901760
  %4349 = vmatpush.msra.mxu0 %v4348
  %v4350 = vand.u32 %v162, 4294901760
  %4351 = vmatpush.msra.mxu0 %v4350
  %v4352 = vand.u32 %v154, 4294901760
  %4353 = vmatpush.msra.mxu0 %v4352
  %v4354 = vand.u32 %v146, 4294901760
  %4355 = vmatpush.msra.mxu0 %v4354
  %v4356 = vand.u32 %v12, 4294901760
  %4357 = vmatmul.f32.gmra.mxu0 %v4356
  %v4358 = vpop.f32.mrf.mxu0
  %v4359 = vadd.f32 %v4322, %v4358
  %4360 = vdwg.mxu0
  %v4361 = vand.u32 %v139, 4294901760
  %4362 = vmatpush.msra.mxu0 %v4361
  %v4363 = vand.u32 %v131, 4294901760
  %4364 = vmatpush.msra.mxu0 %v4363
  %v4365 = vand.u32 %v123, 4294901760
  %4366 = vmatpush.msra.mxu0 %v4365
  %v4367 = vand.u32 %v115, 4294901760
  %4368 = vmatpush.msra.mxu0 %v4367
  %v4369 = vand.u32 %v107, 4294901760
  %4370 = vmatpush.msra.mxu0 %v4369
  %v4371 = vand.u32 %v99, 4294901760
  %4372 = vmatpush.msra.mxu0 %v4371
  %v4373 = vand.u32 %v91, 4294901760
  %4374 = vmatpush.msra.mxu0 %v4373
  %v4375 = vand.u32 %v83, 4294901760
  %4376 = vmatpush.msra.mxu0 %v4375
  %v4377 = vand.u32 %v75, 4294901760
  %4378 = vmatpush.msra.mxu0 %v4377
  %v4379 = vand.u32 %v67, 4294901760
  %4380 = vmatpush.msra.mxu0 %v4379
  %v4381 = vand.u32 %v59, 4294901760
  %4382 = vmatpush.msra.mxu0 %v4381
  %v4383 = vand.u32 %v51, 4294901760
  %4384 = vmatpush.msra.mxu0 %v4383
  %v4385 = vand.u32 %v43, 4294901760
  %4386 = vmatpush.msra.mxu0 %v4385
  %v4387 = vand.u32 %v35, 4294901760
  %4388 = vmatpush.msra.mxu0 %v4387
  %v4389 = vand.u32 %v27, 4294901760
  %4390 = vmatpush.msra.mxu0 %v4389
  %v4391 = vand.u32 %v19, 4294901760
  %4392 = vmatpush.msra.mxu0 %v4391
  %v4393 = vand.u32 %v11, 4294901760
  %v4394 = vsub.f32 %v11, %v4393
  %v4395 = vand.u32 %v4394, 4294901760
  %v4396 = vsub.f32 %v4394, %v4395
  %v4397 = vand.u32 %v4396, 4294901760
  %4398 = vmatmul.f32.gmra.mxu0 %v4397
  %v4399 = vpop.f32.mrf.mxu0
  %v4400 = vadd.f32 0.0, %v4399
  %4401 = vdwg.mxu0
  %v4402 = vand.u32 %v139, 4294901760
  %v4403 = vsub.f32 %v139, %v4402
  %v4404 = vand.u32 %v4403, 4294901760
  %v4405 = vsub.f32 %v4403, %v4404
  %v4406 = vand.u32 %v4405, 4294901760
  %4407 = vmatpush.msra.mxu0 %v4406
  %v4408 = vand.u32 %v131, 4294901760
  %v4409 = vsub.f32 %v131, %v4408
  %v4410 = vand.u32 %v4409, 4294901760
  %v4411 = vsub.f32 %v4409, %v4410
  %v4412 = vand.u32 %v4411, 4294901760
  %4413 = vmatpush.msra.mxu0 %v4412
  %v4414 = vand.u32 %v123, 4294901760
  %v4415 = vsub.f32 %v123, %v4414
  %v4416 = vand.u32 %v4415, 4294901760
  %v4417 = vsub.f32 %v4415, %v4416
  %v4418 = vand.u32 %v4417, 4294901760
  %4419 = vmatpush.msra.mxu0 %v4418
  %v4420 = vand.u32 %v115, 4294901760
  %v4421 = vsub.f32 %v115, %v4420
  %v4422 = vand.u32 %v4421, 4294901760
  %v4423 = vsub.f32 %v4421, %v4422
  %v4424 = vand.u32 %v4423, 4294901760
  %4425 = vmatpush.msra.mxu0 %v4424
  %v4426 = vand.u32 %v107, 4294901760
  %v4427 = vsub.f32 %v107, %v4426
  %v4428 = vand.u32 %v4427, 4294901760
  %v4429 = vsub.f32 %v4427, %v4428
  %v4430 = vand.u32 %v4429, 4294901760
  %4431 = vmatpush.msra.mxu0 %v4430
  %v4432 = vand.u32 %v99, 4294901760
  %v4433 = vsub.f32 %v99, %v4432
  %v4434 = vand.u32 %v4433, 4294901760
  %v4435 = vsub.f32 %v4433, %v4434
  %v4436 = vand.u32 %v4435, 4294901760
  %4437 = vmatpush.msra.mxu0 %v4436
  %v4438 = vand.u32 %v91, 4294901760
  %v4439 = vsub.f32 %v91, %v4438
  %v4440 = vand.u32 %v4439, 4294901760
  %v4441 = vsub.f32 %v4439, %v4440
  %v4442 = vand.u32 %v4441, 4294901760
  %4443 = vmatpush.msra.mxu0 %v4442
  %v4444 = vand.u32 %v83, 4294901760
  %v4445 = vsub.f32 %v83, %v4444
  %v4446 = vand.u32 %v4445, 4294901760
  %v4447 = vsub.f32 %v4445, %v4446
  %v4448 = vand.u32 %v4447, 4294901760
  %4449 = vmatpush.msra.mxu0 %v4448
  %v4450 = vand.u32 %v75, 4294901760
  %v4451 = vsub.f32 %v75, %v4450
  %v4452 = vand.u32 %v4451, 4294901760
  %v4453 = vsub.f32 %v4451, %v4452
  %v4454 = vand.u32 %v4453, 4294901760
  %4455 = vmatpush.msra.mxu0 %v4454
  %v4456 = vand.u32 %v67, 4294901760
  %v4457 = vsub.f32 %v67, %v4456
  %v4458 = vand.u32 %v4457, 4294901760
  %v4459 = vsub.f32 %v4457, %v4458
  %v4460 = vand.u32 %v4459, 4294901760
  %4461 = vmatpush.msra.mxu0 %v4460
  %v4462 = vand.u32 %v59, 4294901760
  %v4463 = vsub.f32 %v59, %v4462
  %v4464 = vand.u32 %v4463, 4294901760
  %v4465 = vsub.f32 %v4463, %v4464
  %v4466 = vand.u32 %v4465, 4294901760
  %4467 = vmatpush.msra.mxu0 %v4466
  %v4468 = vand.u32 %v51, 4294901760
  %v4469 = vsub.f32 %v51, %v4468
  %v4470 = vand.u32 %v4469, 4294901760
  %v4471 = vsub.f32 %v4469, %v4470
  %v4472 = vand.u32 %v4471, 4294901760
  %4473 = vmatpush.msra.mxu0 %v4472
  %v4474 = vand.u32 %v43, 4294901760
  %v4475 = vsub.f32 %v43, %v4474
  %v4476 = vand.u32 %v4475, 4294901760
  %v4477 = vsub.f32 %v4475, %v4476
  %v4478 = vand.u32 %v4477, 4294901760
  %4479 = vmatpush.msra.mxu0 %v4478
  %v4480 = vand.u32 %v35, 4294901760
  %v4481 = vsub.f32 %v35, %v4480
  %v4482 = vand.u32 %v4481, 4294901760
  %v4483 = vsub.f32 %v4481, %v4482
  %v4484 = vand.u32 %v4483, 4294901760
  %4485 = vmatpush.msra.mxu0 %v4484
  %v4486 = vand.u32 %v27, 4294901760
  %v4487 = vsub.f32 %v27, %v4486
  %v4488 = vand.u32 %v4487, 4294901760
  %v4489 = vsub.f32 %v4487, %v4488
  %v4490 = vand.u32 %v4489, 4294901760
  %4491 = vmatpush.msra.mxu0 %v4490
  %v4492 = vand.u32 %v19, 4294901760
  %v4493 = vsub.f32 %v19, %v4492
  %v4494 = vand.u32 %v4493, 4294901760
  %v4495 = vsub.f32 %v4493, %v4494
  %v4496 = vand.u32 %v4495, 4294901760
  %4497 = vmatpush.msra.mxu0 %v4496
  %v4498 = vand.u32 %v11, 4294901760
  %4499 = vmatmul.f32.gmra.mxu0 %v4498
  %v4500 = vpop.f32.mrf.mxu0
  %v4501 = vadd.f32 %v4400, %v4500
  %4502 = vdwg.mxu0
  %v4503 = vand.u32 %v139, 4294901760
  %v4504 = vsub.f32 %v139, %v4503
  %4505 = vmatpush.msra.mxu0 %v4504
  %v4506 = vand.u32 %v131, 4294901760
  %v4507 = vsub.f32 %v131, %v4506
  %4508 = vmatpush.msra.mxu0 %v4507
  %v4509 = vand.u32 %v123, 4294901760
  %v4510 = vsub.f32 %v123, %v4509
  %4511 = vmatpush.msra.mxu0 %v4510
  %v4512 = vand.u32 %v115, 4294901760
  %v4513 = vsub.f32 %v115, %v4512
  %4514 = vmatpush.msra.mxu0 %v4513
  %v4515 = vand.u32 %v107, 4294901760
  %v4516 = vsub.f32 %v107, %v4515
  %4517 = vmatpush.msra.mxu0 %v4516
  %v4518 = vand.u32 %v99, 4294901760
  %v4519 = vsub.f32 %v99, %v4518
  %4520 = vmatpush.msra.mxu0 %v4519
  %v4521 = vand.u32 %v91, 4294901760
  %v4522 = vsub.f32 %v91, %v4521
  %4523 = vmatpush.msra.mxu0 %v4522
  %v4524 = vand.u32 %v83, 4294901760
  %v4525 = vsub.f32 %v83, %v4524
  %4526 = vmatpush.msra.mxu0 %v4525
  %v4527 = vand.u32 %v75, 4294901760
  %v4528 = vsub.f32 %v75, %v4527
  %4529 = vmatpush.msra.mxu0 %v4528
  %v4530 = vand.u32 %v67, 4294901760
  %v4531 = vsub.f32 %v67, %v4530
  %4532 = vmatpush.msra.mxu0 %v4531
  %v4533 = vand.u32 %v59, 4294901760
  %v4534 = vsub.f32 %v59, %v4533
  %4535 = vmatpush.msra.mxu0 %v4534
  %v4536 = vand.u32 %v51, 4294901760
  %v4537 = vsub.f32 %v51, %v4536
  %4538 = vmatpush.msra.mxu0 %v4537
  %v4539 = vand.u32 %v43, 4294901760
  %v4540 = vsub.f32 %v43, %v4539
  %4541 = vmatpush.msra.mxu0 %v4540
  %v4542 = vand.u32 %v35, 4294901760
  %v4543 = vsub.f32 %v35, %v4542
  %4544 = vmatpush.msra.mxu0 %v4543
  %v4545 = vand.u32 %v27, 4294901760
  %v4546 = vsub.f32 %v27, %v4545
  %4547 = vmatpush.msra.mxu0 %v4546
  %v4548 = vand.u32 %v19, 4294901760
  %v4549 = vsub.f32 %v19, %v4548
  %4550 = vmatpush.msra.mxu0 %v4549
  %v4551 = vand.u32 %v11, 4294901760
  %v4552 = vsub.f32 %v11, %v4551
  %4553 = vmatmul.f32.gmra.mxu0 %v4552
  %v4554 = vpop.f32.mrf.mxu0
  %v4555 = vadd.f32 %v4501, %v4554
  %4556 = vdwg.mxu0
  %v4557 = vand.u32 %v139, 4294901760
  %4558 = vmatpush.msra.mxu0 %v4557
  %v4559 = vand.u32 %v131, 4294901760
  %4560 = vmatpush.msra.mxu0 %v4559
  %v4561 = vand.u32 %v123, 4294901760
  %4562 = vmatpush.msra.mxu0 %v4561
  %v4563 = vand.u32 %v115, 4294901760
  %4564 = vmatpush.msra.mxu0 %v4563
  %v4565 = vand.u32 %v107, 4294901760
  %4566 = vmatpush.msra.mxu0 %v4565
  %v4567 = vand.u32 %v99, 4294901760
  %4568 = vmatpush.msra.mxu0 %v4567
  %v4569 = vand.u32 %v91, 4294901760
  %4570 = vmatpush.msra.mxu0 %v4569
  %v4571 = vand.u32 %v83, 4294901760
  %4572 = vmatpush.msra.mxu0 %v4571
  %v4573 = vand.u32 %v75, 4294901760
  %4574 = vmatpush.msra.mxu0 %v4573
  %v4575 = vand.u32 %v67, 4294901760
  %4576 = vmatpush.msra.mxu0 %v4575
  %v4577 = vand.u32 %v59, 4294901760
  %4578 = vmatpush.msra.mxu0 %v4577
  %v4579 = vand.u32 %v51, 4294901760
  %4580 = vmatpush.msra.mxu0 %v4579
  %v4581 = vand.u32 %v43, 4294901760
  %4582 = vmatpush.msra.mxu0 %v4581
  %v4583 = vand.u32 %v35, 4294901760
  %4584 = vmatpush.msra.mxu0 %v4583
  %v4585 = vand.u32 %v27, 4294901760
  %4586 = vmatpush.msra.mxu0 %v4585
  %v4587 = vand.u32 %v19, 4294901760
  %4588 = vmatpush.msra.mxu0 %v4587
  %v4589 = vand.u32 %v11, 4294901760
  %v4590 = vsub.f32 %v11, %v4589
  %v4591 = vand.u32 %v4590, 4294901760
  %4592 = vmatmul.f32.gmra.mxu0 %v4591
  %v4593 = vpop.f32.mrf.mxu0
  %v4594 = vadd.f32 %v4555, %v4593
  %4595 = vdwg.mxu0
  %v4596 = vand.u32 %v139, 4294901760
  %v4597 = vsub.f32 %v139, %v4596
  %v4598 = vand.u32 %v4597, 4294901760
  %4599 = vmatpush.msra.mxu0 %v4598
  %v4600 = vand.u32 %v131, 4294901760
  %v4601 = vsub.f32 %v131, %v4600
  %v4602 = vand.u32 %v4601, 4294901760
  %4603 = vmatpush.msra.mxu0 %v4602
  %v4604 = vand.u32 %v123, 4294901760
  %v4605 = vsub.f32 %v123, %v4604
  %v4606 = vand.u32 %v4605, 4294901760
  %4607 = vmatpush.msra.mxu0 %v4606
  %v4608 = vand.u32 %v115, 4294901760
  %v4609 = vsub.f32 %v115, %v4608
  %v4610 = vand.u32 %v4609, 4294901760
  %4611 = vmatpush.msra.mxu0 %v4610
  %v4612 = vand.u32 %v107, 4294901760
  %v4613 = vsub.f32 %v107, %v4612
  %v4614 = vand.u32 %v4613, 4294901760
  %4615 = vmatpush.msra.mxu0 %v4614
  %v4616 = vand.u32 %v99, 4294901760
  %v4617 = vsub.f32 %v99, %v4616
  %v4618 = vand.u32 %v4617, 4294901760
  %4619 = vmatpush.msra.mxu0 %v4618
  %v4620 = vand.u32 %v91, 4294901760
  %v4621 = vsub.f32 %v91, %v4620
  %v4622 = vand.u32 %v4621, 4294901760
  %4623 = vmatpush.msra.mxu0 %v4622
  %v4624 = vand.u32 %v83, 4294901760
  %v4625 = vsub.f32 %v83, %v4624
  %v4626 = vand.u32 %v4625, 4294901760
  %4627 = vmatpush.msra.mxu0 %v4626
  %v4628 = vand.u32 %v75, 4294901760
  %v4629 = vsub.f32 %v75, %v4628
  %v4630 = vand.u32 %v4629, 4294901760
  %4631 = vmatpush.msra.mxu0 %v4630
  %v4632 = vand.u32 %v67, 4294901760
  %v4633 = vsub.f32 %v67, %v4632
  %v4634 = vand.u32 %v4633, 4294901760
  %4635 = vmatpush.msra.mxu0 %v4634
  %v4636 = vand.u32 %v59, 4294901760
  %v4637 = vsub.f32 %v59, %v4636
  %v4638 = vand.u32 %v4637, 4294901760
  %4639 = vmatpush.msra.mxu0 %v4638
  %v4640 = vand.u32 %v51, 4294901760
  %v4641 = vsub.f32 %v51, %v4640
  %v4642 = vand.u32 %v4641, 4294901760
  %4643 = vmatpush.msra.mxu0 %v4642
  %v4644 = vand.u32 %v43, 4294901760
  %v4645 = vsub.f32 %v43, %v4644
  %v4646 = vand.u32 %v4645, 4294901760
  %4647 = vmatpush.msra.mxu0 %v4646
  %v4648 = vand.u32 %v35, 4294901760
  %v4649 = vsub.f32 %v35, %v4648
  %v4650 = vand.u32 %v4649, 4294901760
  %4651 = vmatpush.msra.mxu0 %v4650
  %v4652 = vand.u32 %v27, 4294901760
  %v4653 = vsub.f32 %v27, %v4652
  %v4654 = vand.u32 %v4653, 4294901760
  %4655 = vmatpush.msra.mxu0 %v4654
  %v4656 = vand.u32 %v19, 4294901760
  %v4657 = vsub.f32 %v19, %v4656
  %v4658 = vand.u32 %v4657, 4294901760
  %4659 = vmatpush.msra.mxu0 %v4658
  %v4660 = vand.u32 %v11, 4294901760
  %4661 = vmatmul.f32.gmra.mxu0 %v4660
  %v4662 = vpop.f32.mrf.mxu0
  %v4663 = vadd.f32 %v4594, %v4662
  %4664 = vdwg.mxu0
  %v4665 = vand.u32 %v139, 4294901760
  %4666 = vmatpush.msra.mxu0 %v4665
  %v4667 = vand.u32 %v131, 4294901760
  %4668 = vmatpush.msra.mxu0 %v4667
  %v4669 = vand.u32 %v123, 4294901760
  %4670 = vmatpush.msra.mxu0 %v4669
  %v4671 = vand.u32 %v115, 4294901760
  %4672 = vmatpush.msra.mxu0 %v4671
  %v4673 = vand.u32 %v107, 4294901760
  %4674 = vmatpush.msra.mxu0 %v4673
  %v4675 = vand.u32 %v99, 4294901760
  %4676 = vmatpush.msra.mxu0 %v4675
  %v4677 = vand.u32 %v91, 4294901760
  %4678 = vmatpush.msra.mxu0 %v4677
  %v4679 = vand.u32 %v83, 4294901760
  %4680 = vmatpush.msra.mxu0 %v4679
  %v4681 = vand.u32 %v75, 4294901760
  %4682 = vmatpush.msra.mxu0 %v4681
  %v4683 = vand.u32 %v67, 4294901760
  %4684 = vmatpush.msra.mxu0 %v4683
  %v4685 = vand.u32 %v59, 4294901760
  %4686 = vmatpush.msra.mxu0 %v4685
  %v4687 = vand.u32 %v51, 4294901760
  %4688 = vmatpush.msra.mxu0 %v4687
  %v4689 = vand.u32 %v43, 4294901760
  %4690 = vmatpush.msra.mxu0 %v4689
  %v4691 = vand.u32 %v35, 4294901760
  %4692 = vmatpush.msra.mxu0 %v4691
  %v4693 = vand.u32 %v27, 4294901760
  %4694 = vmatpush.msra.mxu0 %v4693
  %v4695 = vand.u32 %v19, 4294901760
  %4696 = vmatpush.msra.mxu0 %v4695
  %v4697 = vand.u32 %v11, 4294901760
  %4698 = vmatmul.f32.gmra.mxu0 %v4697
  %v4699 = vpop.f32.mrf.mxu0
  %v4700 = vadd.f32 %v4663, %v4699
  %4701 = vdwg.mxu0
  %v4702 = vand.u32 %v267, 4294901760
  %4703 = vmatpush.msra.mxu0 %v4702
  %v4704 = vand.u32 %v259, 4294901760
  %4705 = vmatpush.msra.mxu0 %v4704
  %v4706 = vand.u32 %v251, 4294901760
  %4707 = vmatpush.msra.mxu0 %v4706
  %v4708 = vand.u32 %v243, 4294901760
  %4709 = vmatpush.msra.mxu0 %v4708
  %v4710 = vand.u32 %v235, 4294901760
  %4711 = vmatpush.msra.mxu0 %v4710
  %v4712 = vand.u32 %v227, 4294901760
  %4713 = vmatpush.msra.mxu0 %v4712
  %v4714 = vand.u32 %v219, 4294901760
  %4715 = vmatpush.msra.mxu0 %v4714
  %v4716 = vand.u32 %v211, 4294901760
  %4717 = vmatpush.msra.mxu0 %v4716
  %v4718 = vand.u32 %v203, 4294901760
  %4719 = vmatpush.msra.mxu0 %v4718
  %v4720 = vand.u32 %v195, 4294901760
  %4721 = vmatpush.msra.mxu0 %v4720
  %v4722 = vand.u32 %v187, 4294901760
  %4723 = vmatpush.msra.mxu0 %v4722
  %v4724 = vand.u32 %v179, 4294901760
  %4725 = vmatpush.msra.mxu0 %v4724
  %v4726 = vand.u32 %v171, 4294901760
  %4727 = vmatpush.msra.mxu0 %v4726
  %v4728 = vand.u32 %v163, 4294901760
  %4729 = vmatpush.msra.mxu0 %v4728
  %v4730 = vand.u32 %v155, 4294901760
  %4731 = vmatpush.msra.mxu0 %v4730
  %v4732 = vand.u32 %v147, 4294901760
  %4733 = vmatpush.msra.mxu0 %v4732
  %v4734 = vand.u32 %v12, 4294901760
  %v4735 = vsub.f32 %v12, %v4734
  %v4736 = vand.u32 %v4735, 4294901760
  %v4737 = vsub.f32 %v4735, %v4736
  %v4738 = vand.u32 %v4737, 4294901760
  %4739 = vmatmul.f32.gmra.mxu0 %v4738
  %v4740 = vpop.f32.mrf.mxu0
  %v4741 = vadd.f32 %v4700, %v4740
  %4742 = vdwg.mxu0
  %v4743 = vand.u32 %v267, 4294901760
  %v4744 = vsub.f32 %v267, %v4743
  %v4745 = vand.u32 %v4744, 4294901760
  %v4746 = vsub.f32 %v4744, %v4745
  %v4747 = vand.u32 %v4746, 4294901760
  %4748 = vmatpush.msra.mxu0 %v4747
  %v4749 = vand.u32 %v259, 4294901760
  %v4750 = vsub.f32 %v259, %v4749
  %v4751 = vand.u32 %v4750, 4294901760
  %v4752 = vsub.f32 %v4750, %v4751
  %v4753 = vand.u32 %v4752, 4294901760
  %4754 = vmatpush.msra.mxu0 %v4753
  %v4755 = vand.u32 %v251, 4294901760
  %v4756 = vsub.f32 %v251, %v4755
  %v4757 = vand.u32 %v4756, 4294901760
  %v4758 = vsub.f32 %v4756, %v4757
  %v4759 = vand.u32 %v4758, 4294901760
  %4760 = vmatpush.msra.mxu0 %v4759
  %v4761 = vand.u32 %v243, 4294901760
  %v4762 = vsub.f32 %v243, %v4761
  %v4763 = vand.u32 %v4762, 4294901760
  %v4764 = vsub.f32 %v4762, %v4763
  %v4765 = vand.u32 %v4764, 4294901760
  %4766 = vmatpush.msra.mxu0 %v4765
  %v4767 = vand.u32 %v235, 4294901760
  %v4768 = vsub.f32 %v235, %v4767
  %v4769 = vand.u32 %v4768, 4294901760
  %v4770 = vsub.f32 %v4768, %v4769
  %v4771 = vand.u32 %v4770, 4294901760
  %4772 = vmatpush.msra.mxu0 %v4771
  %v4773 = vand.u32 %v227, 4294901760
  %v4774 = vsub.f32 %v227, %v4773
  %v4775 = vand.u32 %v4774, 4294901760
  %v4776 = vsub.f32 %v4774, %v4775
  %v4777 = vand.u32 %v4776, 4294901760
  %4778 = vmatpush.msra.mxu0 %v4777
  %v4779 = vand.u32 %v219, 4294901760
  %v4780 = vsub.f32 %v219, %v4779
  %v4781 = vand.u32 %v4780, 4294901760
  %v4782 = vsub.f32 %v4780, %v4781
  %v4783 = vand.u32 %v4782, 4294901760
  %4784 = vmatpush.msra.mxu0 %v4783
  %v4785 = vand.u32 %v211, 4294901760
  %v4786 = vsub.f32 %v211, %v4785
  %v4787 = vand.u32 %v4786, 4294901760
  %v4788 = vsub.f32 %v4786, %v4787
  %v4789 = vand.u32 %v4788, 4294901760
  %4790 = vmatpush.msra.mxu0 %v4789
  %v4791 = vand.u32 %v203, 4294901760
  %v4792 = vsub.f32 %v203, %v4791
  %v4793 = vand.u32 %v4792, 4294901760
  %v4794 = vsub.f32 %v4792, %v4793
  %v4795 = vand.u32 %v4794, 4294901760
  %4796 = vmatpush.msra.mxu0 %v4795
  %v4797 = vand.u32 %v195, 4294901760
  %v4798 = vsub.f32 %v195, %v4797
  %v4799 = vand.u32 %v4798, 4294901760
  %v4800 = vsub.f32 %v4798, %v4799
  %v4801 = vand.u32 %v4800, 4294901760
  %4802 = vmatpush.msra.mxu0 %v4801
  %v4803 = vand.u32 %v187, 4294901760
  %v4804 = vsub.f32 %v187, %v4803
  %v4805 = vand.u32 %v4804, 4294901760
  %v4806 = vsub.f32 %v4804, %v4805
  %v4807 = vand.u32 %v4806, 4294901760
  %4808 = vmatpush.msra.mxu0 %v4807
  %v4809 = vand.u32 %v179, 4294901760
  %v4810 = vsub.f32 %v179, %v4809
  %v4811 = vand.u32 %v4810, 4294901760
  %v4812 = vsub.f32 %v4810, %v4811
  %v4813 = vand.u32 %v4812, 4294901760
  %4814 = vmatpush.msra.mxu0 %v4813
  %v4815 = vand.u32 %v171, 4294901760
  %v4816 = vsub.f32 %v171, %v4815
  %v4817 = vand.u32 %v4816, 4294901760
  %v4818 = vsub.f32 %v4816, %v4817
  %v4819 = vand.u32 %v4818, 4294901760
  %4820 = vmatpush.msra.mxu0 %v4819
  %v4821 = vand.u32 %v163, 4294901760
  %v4822 = vsub.f32 %v163, %v4821
  %v4823 = vand.u32 %v4822, 4294901760
  %v4824 = vsub.f32 %v4822, %v4823
  %v4825 = vand.u32 %v4824, 4294901760
  %4826 = vmatpush.msra.mxu0 %v4825
  %v4827 = vand.u32 %v155, 4294901760
  %v4828 = vsub.f32 %v155, %v4827
  %v4829 = vand.u32 %v4828, 4294901760
  %v4830 = vsub.f32 %v4828, %v4829
  %v4831 = vand.u32 %v4830, 4294901760
  %4832 = vmatpush.msra.mxu0 %v4831
  %v4833 = vand.u32 %v147, 4294901760
  %v4834 = vsub.f32 %v147, %v4833
  %v4835 = vand.u32 %v4834, 4294901760
  %v4836 = vsub.f32 %v4834, %v4835
  %v4837 = vand.u32 %v4836, 4294901760
  %4838 = vmatpush.msra.mxu0 %v4837
  %v4839 = vand.u32 %v12, 4294901760
  %4840 = vmatmul.f32.gmra.mxu0 %v4839
  %v4841 = vpop.f32.mrf.mxu0
  %v4842 = vadd.f32 %v4741, %v4841
  %4843 = vdwg.mxu0
  %v4844 = vand.u32 %v267, 4294901760
  %v4845 = vsub.f32 %v267, %v4844
  %4846 = vmatpush.msra.mxu0 %v4845
  %v4847 = vand.u32 %v259, 4294901760
  %v4848 = vsub.f32 %v259, %v4847
  %4849 = vmatpush.msra.mxu0 %v4848
  %v4850 = vand.u32 %v251, 4294901760
  %v4851 = vsub.f32 %v251, %v4850
  %4852 = vmatpush.msra.mxu0 %v4851
  %v4853 = vand.u32 %v243, 4294901760
  %v4854 = vsub.f32 %v243, %v4853
  %4855 = vmatpush.msra.mxu0 %v4854
  %v4856 = vand.u32 %v235, 4294901760
  %v4857 = vsub.f32 %v235, %v4856
  %4858 = vmatpush.msra.mxu0 %v4857
  %v4859 = vand.u32 %v227, 4294901760
  %v4860 = vsub.f32 %v227, %v4859
  %4861 = vmatpush.msra.mxu0 %v4860
  %v4862 = vand.u32 %v219, 4294901760
  %v4863 = vsub.f32 %v219, %v4862
  %4864 = vmatpush.msra.mxu0 %v4863
  %v4865 = vand.u32 %v211, 4294901760
  %v4866 = vsub.f32 %v211, %v4865
  %4867 = vmatpush.msra.mxu0 %v4866
  %v4868 = vand.u32 %v203, 4294901760
  %v4869 = vsub.f32 %v203, %v4868
  %4870 = vmatpush.msra.mxu0 %v4869
  %v4871 = vand.u32 %v195, 4294901760
  %v4872 = vsub.f32 %v195, %v4871
  %4873 = vmatpush.msra.mxu0 %v4872
  %v4874 = vand.u32 %v187, 4294901760
  %v4875 = vsub.f32 %v187, %v4874
  %4876 = vmatpush.msra.mxu0 %v4875
  %v4877 = vand.u32 %v179, 4294901760
  %v4878 = vsub.f32 %v179, %v4877
  %4879 = vmatpush.msra.mxu0 %v4878
  %v4880 = vand.u32 %v171, 4294901760
  %v4881 = vsub.f32 %v171, %v4880
  %4882 = vmatpush.msra.mxu0 %v4881
  %v4883 = vand.u32 %v163, 4294901760
  %v4884 = vsub.f32 %v163, %v4883
  %4885 = vmatpush.msra.mxu0 %v4884
  %v4886 = vand.u32 %v155, 4294901760
  %v4887 = vsub.f32 %v155, %v4886
  %4888 = vmatpush.msra.mxu0 %v4887
  %v4889 = vand.u32 %v147, 4294901760
  %v4890 = vsub.f32 %v147, %v4889
  %4891 = vmatpush.msra.mxu0 %v4890
  %v4892 = vand.u32 %v12, 4294901760
  %v4893 = vsub.f32 %v12, %v4892
  %4894 = vmatmul.f32.gmra.mxu0 %v4893
  %v4895 = vpop.f32.mrf.mxu0
  %v4896 = vadd.f32 %v4842, %v4895
  %4897 = vdwg.mxu0
  %v4898 = vand.u32 %v267, 4294901760
  %4899 = vmatpush.msra.mxu0 %v4898
  %v4900 = vand.u32 %v259, 4294901760
  %4901 = vmatpush.msra.mxu0 %v4900
  %v4902 = vand.u32 %v251, 4294901760
  %4903 = vmatpush.msra.mxu0 %v4902
  %v4904 = vand.u32 %v243, 4294901760
  %4905 = vmatpush.msra.mxu0 %v4904
  %v4906 = vand.u32 %v235, 4294901760
  %4907 = vmatpush.msra.mxu0 %v4906
  %v4908 = vand.u32 %v227, 4294901760
  %4909 = vmatpush.msra.mxu0 %v4908
  %v4910 = vand.u32 %v219, 4294901760
  %4911 = vmatpush.msra.mxu0 %v4910
  %v4912 = vand.u32 %v211, 4294901760
  %4913 = vmatpush.msra.mxu0 %v4912
  %v4914 = vand.u32 %v203, 4294901760
  %4915 = vmatpush.msra.mxu0 %v4914
  %v4916 = vand.u32 %v195, 4294901760
  %4917 = vmatpush.msra.mxu0 %v4916
  %v4918 = vand.u32 %v187, 4294901760
  %4919 = vmatpush.msra.mxu0 %v4918
  %v4920 = vand.u32 %v179, 4294901760
  %4921 = vmatpush.msra.mxu0 %v4920
  %v4922 = vand.u32 %v171, 4294901760
  %4923 = vmatpush.msra.mxu0 %v4922
  %v4924 = vand.u32 %v163, 4294901760
  %4925 = vmatpush.msra.mxu0 %v4924
  %v4926 = vand.u32 %v155, 4294901760
  %4927 = vmatpush.msra.mxu0 %v4926
  %v4928 = vand.u32 %v147, 4294901760
  %4929 = vmatpush.msra.mxu0 %v4928
  %v4930 = vand.u32 %v12, 4294901760
  %v4931 = vsub.f32 %v12, %v4930
  %v4932 = vand.u32 %v4931, 4294901760
  %4933 = vmatmul.f32.gmra.mxu0 %v4932
  %v4934 = vpop.f32.mrf.mxu0
  %v4935 = vadd.f32 %v4896, %v4934
  %4936 = vdwg.mxu0
  %v4937 = vand.u32 %v267, 4294901760
  %v4938 = vsub.f32 %v267, %v4937
  %v4939 = vand.u32 %v4938, 4294901760
  %4940 = vmatpush.msra.mxu0 %v4939
  %v4941 = vand.u32 %v259, 4294901760
  %v4942 = vsub.f32 %v259, %v4941
  %v4943 = vand.u32 %v4942, 4294901760
  %4944 = vmatpush.msra.mxu0 %v4943
  %v4945 = vand.u32 %v251, 4294901760
  %v4946 = vsub.f32 %v251, %v4945
  %v4947 = vand.u32 %v4946, 4294901760
  %4948 = vmatpush.msra.mxu0 %v4947
  %v4949 = vand.u32 %v243, 4294901760
  %v4950 = vsub.f32 %v243, %v4949
  %v4951 = vand.u32 %v4950, 4294901760
  %4952 = vmatpush.msra.mxu0 %v4951
  %v4953 = vand.u32 %v235, 4294901760
  %v4954 = vsub.f32 %v235, %v4953
  %v4955 = vand.u32 %v4954, 4294901760
  %4956 = vmatpush.msra.mxu0 %v4955
  %v4957 = vand.u32 %v227, 4294901760
  %v4958 = vsub.f32 %v227, %v4957
  %v4959 = vand.u32 %v4958, 4294901760
  %4960 = vmatpush.msra.mxu0 %v4959
  %v4961 = vand.u32 %v219, 4294901760
  %v4962 = vsub.f32 %v219, %v4961
  %v4963 = vand.u32 %v4962, 4294901760
  %4964 = vmatpush.msra.mxu0 %v4963
  %v4965 = vand.u32 %v211, 4294901760
  %v4966 = vsub.f32 %v211, %v4965
  %v4967 = vand.u32 %v4966, 4294901760
  %4968 = vmatpush.msra.mxu0 %v4967
  %v4969 = vand.u32 %v203, 4294901760
  %v4970 = vsub.f32 %v203, %v4969
  %v4971 = vand.u32 %v4970, 4294901760
  %4972 = vmatpush.msra.mxu0 %v4971
  %v4973 = vand.u32 %v195, 4294901760
  %v4974 = vsub.f32 %v195, %v4973
  %v4975 = vand.u32 %v4974, 4294901760
  %4976 = vmatpush.msra.mxu0 %v4975
  %v4977 = vand.u32 %v187, 4294901760
  %v4978 = vsub.f32 %v187, %v4977
  %v4979 = vand.u32 %v4978, 4294901760
  %4980 = vmatpush.msra.mxu0 %v4979
  %v4981 = vand.u32 %v179, 4294901760
  %v4982 = vsub.f32 %v179, %v4981
  %v4983 = vand.u32 %v4982, 4294901760
  %4984 = vmatpush.msra.mxu0 %v4983
  %v4985 = vand.u32 %v171, 4294901760
  %v4986 = vsub.f32 %v171, %v4985
  %v4987 = vand.u32 %v4986, 4294901760
  %4988 = vmatpush.msra.mxu0 %v4987
  %v4989 = vand.u32 %v163, 4294901760
  %v4990 = vsub.f32 %v163, %v4989
  %v4991 = vand.u32 %v4990, 4294901760
  %4992 = vmatpush.msra.mxu0 %v4991
  %v4993 = vand.u32 %v155, 4294901760
  %v4994 = vsub.f32 %v155, %v4993
  %v4995 = vand.u32 %v4994, 4294901760
  %4996 = vmatpush.msra.mxu0 %v4995
  %v4997 = vand.u32 %v147, 4294901760
  %v4998 = vsub.f32 %v147, %v4997
  %v4999 = vand.u32 %v4998, 4294901760
  %5000 = vmatpush.msra.mxu0 %v4999
  %v5001 = vand.u32 %v12, 4294901760
  %5002 = vmatmul.f32.gmra.mxu0 %v5001
  %v5003 = vpop.f32.mrf.mxu0
  %v5004 = vadd.f32 %v4935, %v5003
  %5005 = vdwg.mxu0
  %v5006 = vand.u32 %v267, 4294901760
  %5007 = vmatpush.msra.mxu0 %v5006
  %v5008 = vand.u32 %v259, 4294901760
  %5009 = vmatpush.msra.mxu0 %v5008
  %v5010 = vand.u32 %v251, 4294901760
  %5011 = vmatpush.msra.mxu0 %v5010
  %v5012 = vand.u32 %v243, 4294901760
  %5013 = vmatpush.msra.mxu0 %v5012
  %v5014 = vand.u32 %v235, 4294901760
  %5015 = vmatpush.msra.mxu0 %v5014
  %v5016 = vand.u32 %v227, 4294901760
  %5017 = vmatpush.msra.mxu0 %v5016
  %v5018 = vand.u32 %v219, 4294901760
  %5019 = vmatpush.msra.mxu0 %v5018
  %v5020 = vand.u32 %v211, 4294901760
  %5021 = vmatpush.msra.mxu0 %v5020
  %v5022 = vand.u32 %v203, 4294901760
  %5023 = vmatpush.msra.mxu0 %v5022
  %v5024 = vand.u32 %v195, 4294901760
  %5025 = vmatpush.msra.mxu0 %v5024
  %v5026 = vand.u32 %v187, 4294901760
  %5027 = vmatpush.msra.mxu0 %v5026
  %v5028 = vand.u32 %v179, 4294901760
  %5029 = vmatpush.msra.mxu0 %v5028
  %v5030 = vand.u32 %v171, 4294901760
  %5031 = vmatpush.msra.mxu0 %v5030
  %v5032 = vand.u32 %v163, 4294901760
  %5033 = vmatpush.msra.mxu0 %v5032
  %v5034 = vand.u32 %v155, 4294901760
  %5035 = vmatpush.msra.mxu0 %v5034
  %v5036 = vand.u32 %v147, 4294901760
  %5037 = vmatpush.msra.mxu0 %v5036
  %v5038 = vand.u32 %v12, 4294901760
  %5039 = vmatmul.f32.gmra.mxu0 %v5038
  %v5040 = vpop.f32.mrf.mxu0
  %v5041 = vadd.f32 %v5004, %v5040
  %5042 = vdwg.mxu0
  %v5043 = vand.u32 %v140, 4294901760
  %5044 = vmatpush.msra.mxu0 %v5043
  %v5045 = vand.u32 %v132, 4294901760
  %5046 = vmatpush.msra.mxu0 %v5045
  %v5047 = vand.u32 %v124, 4294901760
  %5048 = vmatpush.msra.mxu0 %v5047
  %v5049 = vand.u32 %v116, 4294901760
  %5050 = vmatpush.msra.mxu0 %v5049
  %v5051 = vand.u32 %v108, 4294901760
  %5052 = vmatpush.msra.mxu0 %v5051
  %v5053 = vand.u32 %v100, 4294901760
  %5054 = vmatpush.msra.mxu0 %v5053
  %v5055 = vand.u32 %v92, 4294901760
  %5056 = vmatpush.msra.mxu0 %v5055
  %v5057 = vand.u32 %v84, 4294901760
  %5058 = vmatpush.msra.mxu0 %v5057
  %v5059 = vand.u32 %v76, 4294901760
  %5060 = vmatpush.msra.mxu0 %v5059
  %v5061 = vand.u32 %v68, 4294901760
  %5062 = vmatpush.msra.mxu0 %v5061
  %v5063 = vand.u32 %v60, 4294901760
  %5064 = vmatpush.msra.mxu0 %v5063
  %v5065 = vand.u32 %v52, 4294901760
  %5066 = vmatpush.msra.mxu0 %v5065
  %v5067 = vand.u32 %v44, 4294901760
  %5068 = vmatpush.msra.mxu0 %v5067
  %v5069 = vand.u32 %v36, 4294901760
  %5070 = vmatpush.msra.mxu0 %v5069
  %v5071 = vand.u32 %v28, 4294901760
  %5072 = vmatpush.msra.mxu0 %v5071
  %v5073 = vand.u32 %v20, 4294901760
  %5074 = vmatpush.msra.mxu0 %v5073
  %v5075 = vand.u32 %v11, 4294901760
  %v5076 = vsub.f32 %v11, %v5075
  %v5077 = vand.u32 %v5076, 4294901760
  %v5078 = vsub.f32 %v5076, %v5077
  %v5079 = vand.u32 %v5078, 4294901760
  %5080 = vmatmul.f32.gmra.mxu0 %v5079
  %v5081 = vpop.f32.mrf.mxu0
  %v5082 = vadd.f32 0.0, %v5081
  %5083 = vdwg.mxu0
  %v5084 = vand.u32 %v140, 4294901760
  %v5085 = vsub.f32 %v140, %v5084
  %v5086 = vand.u32 %v5085, 4294901760
  %v5087 = vsub.f32 %v5085, %v5086
  %v5088 = vand.u32 %v5087, 4294901760
  %5089 = vmatpush.msra.mxu0 %v5088
  %v5090 = vand.u32 %v132, 4294901760
  %v5091 = vsub.f32 %v132, %v5090
  %v5092 = vand.u32 %v5091, 4294901760
  %v5093 = vsub.f32 %v5091, %v5092
  %v5094 = vand.u32 %v5093, 4294901760
  %5095 = vmatpush.msra.mxu0 %v5094
  %v5096 = vand.u32 %v124, 4294901760
  %v5097 = vsub.f32 %v124, %v5096
  %v5098 = vand.u32 %v5097, 4294901760
  %v5099 = vsub.f32 %v5097, %v5098
  %v5100 = vand.u32 %v5099, 4294901760
  %5101 = vmatpush.msra.mxu0 %v5100
  %v5102 = vand.u32 %v116, 4294901760
  %v5103 = vsub.f32 %v116, %v5102
  %v5104 = vand.u32 %v5103, 4294901760
  %v5105 = vsub.f32 %v5103, %v5104
  %v5106 = vand.u32 %v5105, 4294901760
  %5107 = vmatpush.msra.mxu0 %v5106
  %v5108 = vand.u32 %v108, 4294901760
  %v5109 = vsub.f32 %v108, %v5108
  %v5110 = vand.u32 %v5109, 4294901760
  %v5111 = vsub.f32 %v5109, %v5110
  %v5112 = vand.u32 %v5111, 4294901760
  %5113 = vmatpush.msra.mxu0 %v5112
  %v5114 = vand.u32 %v100, 4294901760
  %v5115 = vsub.f32 %v100, %v5114
  %v5116 = vand.u32 %v5115, 4294901760
  %v5117 = vsub.f32 %v5115, %v5116
  %v5118 = vand.u32 %v5117, 4294901760
  %5119 = vmatpush.msra.mxu0 %v5118
  %v5120 = vand.u32 %v92, 4294901760
  %v5121 = vsub.f32 %v92, %v5120
  %v5122 = vand.u32 %v5121, 4294901760
  %v5123 = vsub.f32 %v5121, %v5122
  %v5124 = vand.u32 %v5123, 4294901760
  %5125 = vmatpush.msra.mxu0 %v5124
  %v5126 = vand.u32 %v84, 4294901760
  %v5127 = vsub.f32 %v84, %v5126
  %v5128 = vand.u32 %v5127, 4294901760
  %v5129 = vsub.f32 %v5127, %v5128
  %v5130 = vand.u32 %v5129, 4294901760
  %5131 = vmatpush.msra.mxu0 %v5130
  %v5132 = vand.u32 %v76, 4294901760
  %v5133 = vsub.f32 %v76, %v5132
  %v5134 = vand.u32 %v5133, 4294901760
  %v5135 = vsub.f32 %v5133, %v5134
  %v5136 = vand.u32 %v5135, 4294901760
  %5137 = vmatpush.msra.mxu0 %v5136
  %v5138 = vand.u32 %v68, 4294901760
  %v5139 = vsub.f32 %v68, %v5138
  %v5140 = vand.u32 %v5139, 4294901760
  %v5141 = vsub.f32 %v5139, %v5140
  %v5142 = vand.u32 %v5141, 4294901760
  %5143 = vmatpush.msra.mxu0 %v5142
  %v5144 = vand.u32 %v60, 4294901760
  %v5145 = vsub.f32 %v60, %v5144
  %v5146 = vand.u32 %v5145, 4294901760
  %v5147 = vsub.f32 %v5145, %v5146
  %v5148 = vand.u32 %v5147, 4294901760
  %5149 = vmatpush.msra.mxu0 %v5148
  %v5150 = vand.u32 %v52, 4294901760
  %v5151 = vsub.f32 %v52, %v5150
  %v5152 = vand.u32 %v5151, 4294901760
  %v5153 = vsub.f32 %v5151, %v5152
  %v5154 = vand.u32 %v5153, 4294901760
  %5155 = vmatpush.msra.mxu0 %v5154
  %v5156 = vand.u32 %v44, 4294901760
  %v5157 = vsub.f32 %v44, %v5156
  %v5158 = vand.u32 %v5157, 4294901760
  %v5159 = vsub.f32 %v5157, %v5158
  %v5160 = vand.u32 %v5159, 4294901760
  %5161 = vmatpush.msra.mxu0 %v5160
  %v5162 = vand.u32 %v36, 4294901760
  %v5163 = vsub.f32 %v36, %v5162
  %v5164 = vand.u32 %v5163, 4294901760
  %v5165 = vsub.f32 %v5163, %v5164
  %v5166 = vand.u32 %v5165, 4294901760
  %5167 = vmatpush.msra.mxu0 %v5166
  %v5168 = vand.u32 %v28, 4294901760
  %v5169 = vsub.f32 %v28, %v5168
  %v5170 = vand.u32 %v5169, 4294901760
  %v5171 = vsub.f32 %v5169, %v5170
  %v5172 = vand.u32 %v5171, 4294901760
  %5173 = vmatpush.msra.mxu0 %v5172
  %v5174 = vand.u32 %v20, 4294901760
  %v5175 = vsub.f32 %v20, %v5174
  %v5176 = vand.u32 %v5175, 4294901760
  %v5177 = vsub.f32 %v5175, %v5176
  %v5178 = vand.u32 %v5177, 4294901760
  %5179 = vmatpush.msra.mxu0 %v5178
  %v5180 = vand.u32 %v11, 4294901760
  %5181 = vmatmul.f32.gmra.mxu0 %v5180
  %v5182 = vpop.f32.mrf.mxu0
  %v5183 = vadd.f32 %v5082, %v5182
  %5184 = vdwg.mxu0
  %v5185 = vand.u32 %v140, 4294901760
  %v5186 = vsub.f32 %v140, %v5185
  %5187 = vmatpush.msra.mxu0 %v5186
  %v5188 = vand.u32 %v132, 4294901760
  %v5189 = vsub.f32 %v132, %v5188
  %5190 = vmatpush.msra.mxu0 %v5189
  %v5191 = vand.u32 %v124, 4294901760
  %v5192 = vsub.f32 %v124, %v5191
  %5193 = vmatpush.msra.mxu0 %v5192
  %v5194 = vand.u32 %v116, 4294901760
  %v5195 = vsub.f32 %v116, %v5194
  %5196 = vmatpush.msra.mxu0 %v5195
  %v5197 = vand.u32 %v108, 4294901760
  %v5198 = vsub.f32 %v108, %v5197
  %5199 = vmatpush.msra.mxu0 %v5198
  %v5200 = vand.u32 %v100, 4294901760
  %v5201 = vsub.f32 %v100, %v5200
  %5202 = vmatpush.msra.mxu0 %v5201
  %v5203 = vand.u32 %v92, 4294901760
  %v5204 = vsub.f32 %v92, %v5203
  %5205 = vmatpush.msra.mxu0 %v5204
  %v5206 = vand.u32 %v84, 4294901760
  %v5207 = vsub.f32 %v84, %v5206
  %5208 = vmatpush.msra.mxu0 %v5207
  %v5209 = vand.u32 %v76, 4294901760
  %v5210 = vsub.f32 %v76, %v5209
  %5211 = vmatpush.msra.mxu0 %v5210
  %v5212 = vand.u32 %v68, 4294901760
  %v5213 = vsub.f32 %v68, %v5212
  %5214 = vmatpush.msra.mxu0 %v5213
  %v5215 = vand.u32 %v60, 4294901760
  %v5216 = vsub.f32 %v60, %v5215
  %5217 = vmatpush.msra.mxu0 %v5216
  %v5218 = vand.u32 %v52, 4294901760
  %v5219 = vsub.f32 %v52, %v5218
  %5220 = vmatpush.msra.mxu0 %v5219
  %v5221 = vand.u32 %v44, 4294901760
  %v5222 = vsub.f32 %v44, %v5221
  %5223 = vmatpush.msra.mxu0 %v5222
  %v5224 = vand.u32 %v36, 4294901760
  %v5225 = vsub.f32 %v36, %v5224
  %5226 = vmatpush.msra.mxu0 %v5225
  %v5227 = vand.u32 %v28, 4294901760
  %v5228 = vsub.f32 %v28, %v5227
  %5229 = vmatpush.msra.mxu0 %v5228
  %v5230 = vand.u32 %v20, 4294901760
  %v5231 = vsub.f32 %v20, %v5230
  %5232 = vmatpush.msra.mxu0 %v5231
  %v5233 = vand.u32 %v11, 4294901760
  %v5234 = vsub.f32 %v11, %v5233
  %5235 = vmatmul.f32.gmra.mxu0 %v5234
  %v5236 = vpop.f32.mrf.mxu0
  %v5237 = vadd.f32 %v5183, %v5236
  %5238 = vdwg.mxu0
  %v5239 = vand.u32 %v140, 4294901760
  %5240 = vmatpush.msra.mxu0 %v5239
  %v5241 = vand.u32 %v132, 4294901760
  %5242 = vmatpush.msra.mxu0 %v5241
  %v5243 = vand.u32 %v124, 4294901760
  %5244 = vmatpush.msra.mxu0 %v5243
  %v5245 = vand.u32 %v116, 4294901760
  %5246 = vmatpush.msra.mxu0 %v5245
  %v5247 = vand.u32 %v108, 4294901760
  %5248 = vmatpush.msra.mxu0 %v5247
  %v5249 = vand.u32 %v100, 4294901760
  %5250 = vmatpush.msra.mxu0 %v5249
  %v5251 = vand.u32 %v92, 4294901760
  %5252 = vmatpush.msra.mxu0 %v5251
  %v5253 = vand.u32 %v84, 4294901760
  %5254 = vmatpush.msra.mxu0 %v5253
  %v5255 = vand.u32 %v76, 4294901760
  %5256 = vmatpush.msra.mxu0 %v5255
  %v5257 = vand.u32 %v68, 4294901760
  %5258 = vmatpush.msra.mxu0 %v5257
  %v5259 = vand.u32 %v60, 4294901760
  %5260 = vmatpush.msra.mxu0 %v5259
  %v5261 = vand.u32 %v52, 4294901760
  %5262 = vmatpush.msra.mxu0 %v5261
  %v5263 = vand.u32 %v44, 4294901760
  %5264 = vmatpush.msra.mxu0 %v5263
  %v5265 = vand.u32 %v36, 4294901760
  %5266 = vmatpush.msra.mxu0 %v5265
  %v5267 = vand.u32 %v28, 4294901760
  %5268 = vmatpush.msra.mxu0 %v5267
  %v5269 = vand.u32 %v20, 4294901760
  %5270 = vmatpush.msra.mxu0 %v5269
  %v5271 = vand.u32 %v11, 4294901760
  %v5272 = vsub.f32 %v11, %v5271
  %v5273 = vand.u32 %v5272, 4294901760
  %5274 = vmatmul.f32.gmra.mxu0 %v5273
  %v5275 = vpop.f32.mrf.mxu0
  %v5276 = vadd.f32 %v5237, %v5275
  %5277 = vdwg.mxu0
  %v5278 = vand.u32 %v140, 4294901760
  %v5279 = vsub.f32 %v140, %v5278
  %v5280 = vand.u32 %v5279, 4294901760
  %5281 = vmatpush.msra.mxu0 %v5280
  %v5282 = vand.u32 %v132, 4294901760
  %v5283 = vsub.f32 %v132, %v5282
  %v5284 = vand.u32 %v5283, 4294901760
  %5285 = vmatpush.msra.mxu0 %v5284
  %v5286 = vand.u32 %v124, 4294901760
  %v5287 = vsub.f32 %v124, %v5286
  %v5288 = vand.u32 %v5287, 4294901760
  %5289 = vmatpush.msra.mxu0 %v5288
  %v5290 = vand.u32 %v116, 4294901760
  %v5291 = vsub.f32 %v116, %v5290
  %v5292 = vand.u32 %v5291, 4294901760
  %5293 = vmatpush.msra.mxu0 %v5292
  %v5294 = vand.u32 %v108, 4294901760
  %v5295 = vsub.f32 %v108, %v5294
  %v5296 = vand.u32 %v5295, 4294901760
  %5297 = vmatpush.msra.mxu0 %v5296
  %v5298 = vand.u32 %v100, 4294901760
  %v5299 = vsub.f32 %v100, %v5298
  %v5300 = vand.u32 %v5299, 4294901760
  %5301 = vmatpush.msra.mxu0 %v5300
  %v5302 = vand.u32 %v92, 4294901760
  %v5303 = vsub.f32 %v92, %v5302
  %v5304 = vand.u32 %v5303, 4294901760
  %5305 = vmatpush.msra.mxu0 %v5304
  %v5306 = vand.u32 %v84, 4294901760
  %v5307 = vsub.f32 %v84, %v5306
  %v5308 = vand.u32 %v5307, 4294901760
  %5309 = vmatpush.msra.mxu0 %v5308
  %v5310 = vand.u32 %v76, 4294901760
  %v5311 = vsub.f32 %v76, %v5310
  %v5312 = vand.u32 %v5311, 4294901760
  %5313 = vmatpush.msra.mxu0 %v5312
  %v5314 = vand.u32 %v68, 4294901760
  %v5315 = vsub.f32 %v68, %v5314
  %v5316 = vand.u32 %v5315, 4294901760
  %5317 = vmatpush.msra.mxu0 %v5316
  %v5318 = vand.u32 %v60, 4294901760
  %v5319 = vsub.f32 %v60, %v5318
  %v5320 = vand.u32 %v5319, 4294901760
  %5321 = vmatpush.msra.mxu0 %v5320
  %v5322 = vand.u32 %v52, 4294901760
  %v5323 = vsub.f32 %v52, %v5322
  %v5324 = vand.u32 %v5323, 4294901760
  %5325 = vmatpush.msra.mxu0 %v5324
  %v5326 = vand.u32 %v44, 4294901760
  %v5327 = vsub.f32 %v44, %v5326
  %v5328 = vand.u32 %v5327, 4294901760
  %5329 = vmatpush.msra.mxu0 %v5328
  %v5330 = vand.u32 %v36, 4294901760
  %v5331 = vsub.f32 %v36, %v5330
  %v5332 = vand.u32 %v5331, 4294901760
  %5333 = vmatpush.msra.mxu0 %v5332
  %v5334 = vand.u32 %v28, 4294901760
  %v5335 = vsub.f32 %v28, %v5334
  %v5336 = vand.u32 %v5335, 4294901760
  %5337 = vmatpush.msra.mxu0 %v5336
  %v5338 = vand.u32 %v20, 4294901760
  %v5339 = vsub.f32 %v20, %v5338
  %v5340 = vand.u32 %v5339, 4294901760
  %5341 = vmatpush.msra.mxu0 %v5340
  %v5342 = vand.u32 %v11, 4294901760
  %5343 = vmatmul.f32.gmra.mxu0 %v5342
  %v5344 = vpop.f32.mrf.mxu0
  %v5345 = vadd.f32 %v5276, %v5344
  %5346 = vdwg.mxu0
  %v5347 = vand.u32 %v140, 4294901760
  %5348 = vmatpush.msra.mxu0 %v5347
  %v5349 = vand.u32 %v132, 4294901760
  %5350 = vmatpush.msra.mxu0 %v5349
  %v5351 = vand.u32 %v124, 4294901760
  %5352 = vmatpush.msra.mxu0 %v5351
  %v5353 = vand.u32 %v116, 4294901760
  %5354 = vmatpush.msra.mxu0 %v5353
  %v5355 = vand.u32 %v108, 4294901760
  %5356 = vmatpush.msra.mxu0 %v5355
  %v5357 = vand.u32 %v100, 4294901760
  %5358 = vmatpush.msra.mxu0 %v5357
  %v5359 = vand.u32 %v92, 4294901760
  %5360 = vmatpush.msra.mxu0 %v5359
  %v5361 = vand.u32 %v84, 4294901760
  %5362 = vmatpush.msra.mxu0 %v5361
  %v5363 = vand.u32 %v76, 4294901760
  %5364 = vmatpush.msra.mxu0 %v5363
  %v5365 = vand.u32 %v68, 4294901760
  %5366 = vmatpush.msra.mxu0 %v5365
  %v5367 = vand.u32 %v60, 4294901760
  %5368 = vmatpush.msra.mxu0 %v5367
  %v5369 = vand.u32 %v52, 4294901760
  %5370 = vmatpush.msra.mxu0 %v5369
  %v5371 = vand.u32 %v44, 4294901760
  %5372 = vmatpush.msra.mxu0 %v5371
  %v5373 = vand.u32 %v36, 4294901760
  %5374 = vmatpush.msra.mxu0 %v5373
  %v5375 = vand.u32 %v28, 4294901760
  %5376 = vmatpush.msra.mxu0 %v5375
  %v5377 = vand.u32 %v20, 4294901760
  %5378 = vmatpush.msra.mxu0 %v5377
  %v5379 = vand.u32 %v11, 4294901760
  %5380 = vmatmul.f32.gmra.mxu0 %v5379
  %v5381 = vpop.f32.mrf.mxu0
  %v5382 = vadd.f32 %v5345, %v5381
  %5383 = vdwg.mxu0
  %v5384 = vand.u32 %v268, 4294901760
  %5385 = vmatpush.msra.mxu0 %v5384
  %v5386 = vand.u32 %v260, 4294901760
  %5387 = vmatpush.msra.mxu0 %v5386
  %v5388 = vand.u32 %v252, 4294901760
  %5389 = vmatpush.msra.mxu0 %v5388
  %v5390 = vand.u32 %v244, 4294901760
  %5391 = vmatpush.msra.mxu0 %v5390
  %v5392 = vand.u32 %v236, 4294901760
  %5393 = vmatpush.msra.mxu0 %v5392
  %v5394 = vand.u32 %v228, 4294901760
  %5395 = vmatpush.msra.mxu0 %v5394
  %v5396 = vand.u32 %v220, 4294901760
  %5397 = vmatpush.msra.mxu0 %v5396
  %v5398 = vand.u32 %v212, 4294901760
  %5399 = vmatpush.msra.mxu0 %v5398
  %v5400 = vand.u32 %v204, 4294901760
  %5401 = vmatpush.msra.mxu0 %v5400
  %v5402 = vand.u32 %v196, 4294901760
  %5403 = vmatpush.msra.mxu0 %v5402
  %v5404 = vand.u32 %v188, 4294901760
  %5405 = vmatpush.msra.mxu0 %v5404
  %v5406 = vand.u32 %v180, 4294901760
  %5407 = vmatpush.msra.mxu0 %v5406
  %v5408 = vand.u32 %v172, 4294901760
  %5409 = vmatpush.msra.mxu0 %v5408
  %v5410 = vand.u32 %v164, 4294901760
  %5411 = vmatpush.msra.mxu0 %v5410
  %v5412 = vand.u32 %v156, 4294901760
  %5413 = vmatpush.msra.mxu0 %v5412
  %v5414 = vand.u32 %v148, 4294901760
  %5415 = vmatpush.msra.mxu0 %v5414
  %v5416 = vand.u32 %v12, 4294901760
  %v5417 = vsub.f32 %v12, %v5416
  %v5418 = vand.u32 %v5417, 4294901760
  %v5419 = vsub.f32 %v5417, %v5418
  %v5420 = vand.u32 %v5419, 4294901760
  %5421 = vmatmul.f32.gmra.mxu0 %v5420
  %v5422 = vpop.f32.mrf.mxu0
  %v5423 = vadd.f32 %v5382, %v5422
  %5424 = vdwg.mxu0
  %v5425 = vand.u32 %v268, 4294901760
  %v5426 = vsub.f32 %v268, %v5425
  %v5427 = vand.u32 %v5426, 4294901760
  %v5428 = vsub.f32 %v5426, %v5427
  %v5429 = vand.u32 %v5428, 4294901760
  %5430 = vmatpush.msra.mxu0 %v5429
  %v5431 = vand.u32 %v260, 4294901760
  %v5432 = vsub.f32 %v260, %v5431
  %v5433 = vand.u32 %v5432, 4294901760
  %v5434 = vsub.f32 %v5432, %v5433
  %v5435 = vand.u32 %v5434, 4294901760
  %5436 = vmatpush.msra.mxu0 %v5435
  %v5437 = vand.u32 %v252, 4294901760
  %v5438 = vsub.f32 %v252, %v5437
  %v5439 = vand.u32 %v5438, 4294901760
  %v5440 = vsub.f32 %v5438, %v5439
  %v5441 = vand.u32 %v5440, 4294901760
  %5442 = vmatpush.msra.mxu0 %v5441
  %v5443 = vand.u32 %v244, 4294901760
  %v5444 = vsub.f32 %v244, %v5443
  %v5445 = vand.u32 %v5444, 4294901760
  %v5446 = vsub.f32 %v5444, %v5445
  %v5447 = vand.u32 %v5446, 4294901760
  %5448 = vmatpush.msra.mxu0 %v5447
  %v5449 = vand.u32 %v236, 4294901760
  %v5450 = vsub.f32 %v236, %v5449
  %v5451 = vand.u32 %v5450, 4294901760
  %v5452 = vsub.f32 %v5450, %v5451
  %v5453 = vand.u32 %v5452, 4294901760
  %5454 = vmatpush.msra.mxu0 %v5453
  %v5455 = vand.u32 %v228, 4294901760
  %v5456 = vsub.f32 %v228, %v5455
  %v5457 = vand.u32 %v5456, 4294901760
  %v5458 = vsub.f32 %v5456, %v5457
  %v5459 = vand.u32 %v5458, 4294901760
  %5460 = vmatpush.msra.mxu0 %v5459
  %v5461 = vand.u32 %v220, 4294901760
  %v5462 = vsub.f32 %v220, %v5461
  %v5463 = vand.u32 %v5462, 4294901760
  %v5464 = vsub.f32 %v5462, %v5463
  %v5465 = vand.u32 %v5464, 4294901760
  %5466 = vmatpush.msra.mxu0 %v5465
  %v5467 = vand.u32 %v212, 4294901760
  %v5468 = vsub.f32 %v212, %v5467
  %v5469 = vand.u32 %v5468, 4294901760
  %v5470 = vsub.f32 %v5468, %v5469
  %v5471 = vand.u32 %v5470, 4294901760
  %5472 = vmatpush.msra.mxu0 %v5471
  %v5473 = vand.u32 %v204, 4294901760
  %v5474 = vsub.f32 %v204, %v5473
  %v5475 = vand.u32 %v5474, 4294901760
  %v5476 = vsub.f32 %v5474, %v5475
  %v5477 = vand.u32 %v5476, 4294901760
  %5478 = vmatpush.msra.mxu0 %v5477
  %v5479 = vand.u32 %v196, 4294901760
  %v5480 = vsub.f32 %v196, %v5479
  %v5481 = vand.u32 %v5480, 4294901760
  %v5482 = vsub.f32 %v5480, %v5481
  %v5483 = vand.u32 %v5482, 4294901760
  %5484 = vmatpush.msra.mxu0 %v5483
  %v5485 = vand.u32 %v188, 4294901760
  %v5486 = vsub.f32 %v188, %v5485
  %v5487 = vand.u32 %v5486, 4294901760
  %v5488 = vsub.f32 %v5486, %v5487
  %v5489 = vand.u32 %v5488, 4294901760
  %5490 = vmatpush.msra.mxu0 %v5489
  %v5491 = vand.u32 %v180, 4294901760
  %v5492 = vsub.f32 %v180, %v5491
  %v5493 = vand.u32 %v5492, 4294901760
  %v5494 = vsub.f32 %v5492, %v5493
  %v5495 = vand.u32 %v5494, 4294901760
  %5496 = vmatpush.msra.mxu0 %v5495
  %v5497 = vand.u32 %v172, 4294901760
  %v5498 = vsub.f32 %v172, %v5497
  %v5499 = vand.u32 %v5498, 4294901760
  %v5500 = vsub.f32 %v5498, %v5499
  %v5501 = vand.u32 %v5500, 4294901760
  %5502 = vmatpush.msra.mxu0 %v5501
  %v5503 = vand.u32 %v164, 4294901760
  %v5504 = vsub.f32 %v164, %v5503
  %v5505 = vand.u32 %v5504, 4294901760
  %v5506 = vsub.f32 %v5504, %v5505
  %v5507 = vand.u32 %v5506, 4294901760
  %5508 = vmatpush.msra.mxu0 %v5507
  %v5509 = vand.u32 %v156, 4294901760
  %v5510 = vsub.f32 %v156, %v5509
  %v5511 = vand.u32 %v5510, 4294901760
  %v5512 = vsub.f32 %v5510, %v5511
  %v5513 = vand.u32 %v5512, 4294901760
  %5514 = vmatpush.msra.mxu0 %v5513
  %v5515 = vand.u32 %v148, 4294901760
  %v5516 = vsub.f32 %v148, %v5515
  %v5517 = vand.u32 %v5516, 4294901760
  %v5518 = vsub.f32 %v5516, %v5517
  %v5519 = vand.u32 %v5518, 4294901760
  %5520 = vmatpush.msra.mxu0 %v5519
  %v5521 = vand.u32 %v12, 4294901760
  %5522 = vmatmul.f32.gmra.mxu0 %v5521
  %v5523 = vpop.f32.mrf.mxu0
  %v5524 = vadd.f32 %v5423, %v5523
  %5525 = vdwg.mxu0
  %v5526 = vand.u32 %v268, 4294901760
  %v5527 = vsub.f32 %v268, %v5526
  %5528 = vmatpush.msra.mxu0 %v5527
  %v5529 = vand.u32 %v260, 4294901760
  %v5530 = vsub.f32 %v260, %v5529
  %5531 = vmatpush.msra.mxu0 %v5530
  %v5532 = vand.u32 %v252, 4294901760
  %v5533 = vsub.f32 %v252, %v5532
  %5534 = vmatpush.msra.mxu0 %v5533
  %v5535 = vand.u32 %v244, 4294901760
  %v5536 = vsub.f32 %v244, %v5535
  %5537 = vmatpush.msra.mxu0 %v5536
  %v5538 = vand.u32 %v236, 4294901760
  %v5539 = vsub.f32 %v236, %v5538
  %5540 = vmatpush.msra.mxu0 %v5539
  %v5541 = vand.u32 %v228, 4294901760
  %v5542 = vsub.f32 %v228, %v5541
  %5543 = vmatpush.msra.mxu0 %v5542
  %v5544 = vand.u32 %v220, 4294901760
  %v5545 = vsub.f32 %v220, %v5544
  %5546 = vmatpush.msra.mxu0 %v5545
  %v5547 = vand.u32 %v212, 4294901760
  %v5548 = vsub.f32 %v212, %v5547
  %5549 = vmatpush.msra.mxu0 %v5548
  %v5550 = vand.u32 %v204, 4294901760
  %v5551 = vsub.f32 %v204, %v5550
  %5552 = vmatpush.msra.mxu0 %v5551
  %v5553 = vand.u32 %v196, 4294901760
  %v5554 = vsub.f32 %v196, %v5553
  %5555 = vmatpush.msra.mxu0 %v5554
  %v5556 = vand.u32 %v188, 4294901760
  %v5557 = vsub.f32 %v188, %v5556
  %5558 = vmatpush.msra.mxu0 %v5557
  %v5559 = vand.u32 %v180, 4294901760
  %v5560 = vsub.f32 %v180, %v5559
  %5561 = vmatpush.msra.mxu0 %v5560
  %v5562 = vand.u32 %v172, 4294901760
  %v5563 = vsub.f32 %v172, %v5562
  %5564 = vmatpush.msra.mxu0 %v5563
  %v5565 = vand.u32 %v164, 4294901760
  %v5566 = vsub.f32 %v164, %v5565
  %5567 = vmatpush.msra.mxu0 %v5566
  %v5568 = vand.u32 %v156, 4294901760
  %v5569 = vsub.f32 %v156, %v5568
  %5570 = vmatpush.msra.mxu0 %v5569
  %v5571 = vand.u32 %v148, 4294901760
  %v5572 = vsub.f32 %v148, %v5571
  %5573 = vmatpush.msra.mxu0 %v5572
  %v5574 = vand.u32 %v12, 4294901760
  %v5575 = vsub.f32 %v12, %v5574
  %5576 = vmatmul.f32.gmra.mxu0 %v5575
  %v5577 = vpop.f32.mrf.mxu0
  %v5578 = vadd.f32 %v5524, %v5577
  %5579 = vdwg.mxu0
  %v5580 = vand.u32 %v268, 4294901760
  %5581 = vmatpush.msra.mxu0 %v5580
  %v5582 = vand.u32 %v260, 4294901760
  %5583 = vmatpush.msra.mxu0 %v5582
  %v5584 = vand.u32 %v252, 4294901760
  %5585 = vmatpush.msra.mxu0 %v5584
  %v5586 = vand.u32 %v244, 4294901760
  %5587 = vmatpush.msra.mxu0 %v5586
  %v5588 = vand.u32 %v236, 4294901760
  %5589 = vmatpush.msra.mxu0 %v5588
  %v5590 = vand.u32 %v228, 4294901760
  %5591 = vmatpush.msra.mxu0 %v5590
  %v5592 = vand.u32 %v220, 4294901760
  %5593 = vmatpush.msra.mxu0 %v5592
  %v5594 = vand.u32 %v212, 4294901760
  %5595 = vmatpush.msra.mxu0 %v5594
  %v5596 = vand.u32 %v204, 4294901760
  %5597 = vmatpush.msra.mxu0 %v5596
  %v5598 = vand.u32 %v196, 4294901760
  %5599 = vmatpush.msra.mxu0 %v5598
  %v5600 = vand.u32 %v188, 4294901760
  %5601 = vmatpush.msra.mxu0 %v5600
  %v5602 = vand.u32 %v180, 4294901760
  %5603 = vmatpush.msra.mxu0 %v5602
  %v5604 = vand.u32 %v172, 4294901760
  %5605 = vmatpush.msra.mxu0 %v5604
  %v5606 = vand.u32 %v164, 4294901760
  %5607 = vmatpush.msra.mxu0 %v5606
  %v5608 = vand.u32 %v156, 4294901760
  %5609 = vmatpush.msra.mxu0 %v5608
  %v5610 = vand.u32 %v148, 4294901760
  %5611 = vmatpush.msra.mxu0 %v5610
  %v5612 = vand.u32 %v12, 4294901760
  %v5613 = vsub.f32 %v12, %v5612
  %v5614 = vand.u32 %v5613, 4294901760
  %5615 = vmatmul.f32.gmra.mxu0 %v5614
  %v5616 = vpop.f32.mrf.mxu0
  %v5617 = vadd.f32 %v5578, %v5616
  %5618 = vdwg.mxu0
  %v5619 = vand.u32 %v268, 4294901760
  %v5620 = vsub.f32 %v268, %v5619
  %v5621 = vand.u32 %v5620, 4294901760
  %5622 = vmatpush.msra.mxu0 %v5621
  %v5623 = vand.u32 %v260, 4294901760
  %v5624 = vsub.f32 %v260, %v5623
  %v5625 = vand.u32 %v5624, 4294901760
  %5626 = vmatpush.msra.mxu0 %v5625
  %v5627 = vand.u32 %v252, 4294901760
  %v5628 = vsub.f32 %v252, %v5627
  %v5629 = vand.u32 %v5628, 4294901760
  %5630 = vmatpush.msra.mxu0 %v5629
  %v5631 = vand.u32 %v244, 4294901760
  %v5632 = vsub.f32 %v244, %v5631
  %v5633 = vand.u32 %v5632, 4294901760
  %5634 = vmatpush.msra.mxu0 %v5633
  %v5635 = vand.u32 %v236, 4294901760
  %v5636 = vsub.f32 %v236, %v5635
  %v5637 = vand.u32 %v5636, 4294901760
  %5638 = vmatpush.msra.mxu0 %v5637
  %v5639 = vand.u32 %v228, 4294901760
  %v5640 = vsub.f32 %v228, %v5639
  %v5641 = vand.u32 %v5640, 4294901760
  %5642 = vmatpush.msra.mxu0 %v5641
  %v5643 = vand.u32 %v220, 4294901760
  %v5644 = vsub.f32 %v220, %v5643
  %v5645 = vand.u32 %v5644, 4294901760
  %5646 = vmatpush.msra.mxu0 %v5645
  %v5647 = vand.u32 %v212, 4294901760
  %v5648 = vsub.f32 %v212, %v5647
  %v5649 = vand.u32 %v5648, 4294901760
  %5650 = vmatpush.msra.mxu0 %v5649
  %v5651 = vand.u32 %v204, 4294901760
  %v5652 = vsub.f32 %v204, %v5651
  %v5653 = vand.u32 %v5652, 4294901760
  %5654 = vmatpush.msra.mxu0 %v5653
  %v5655 = vand.u32 %v196, 4294901760
  %v5656 = vsub.f32 %v196, %v5655
  %v5657 = vand.u32 %v5656, 4294901760
  %5658 = vmatpush.msra.mxu0 %v5657
  %v5659 = vand.u32 %v188, 4294901760
  %v5660 = vsub.f32 %v188, %v5659
  %v5661 = vand.u32 %v5660, 4294901760
  %5662 = vmatpush.msra.mxu0 %v5661
  %v5663 = vand.u32 %v180, 4294901760
  %v5664 = vsub.f32 %v180, %v5663
  %v5665 = vand.u32 %v5664, 4294901760
  %5666 = vmatpush.msra.mxu0 %v5665
  %v5667 = vand.u32 %v172, 4294901760
  %v5668 = vsub.f32 %v172, %v5667
  %v5669 = vand.u32 %v5668, 4294901760
  %5670 = vmatpush.msra.mxu0 %v5669
  %v5671 = vand.u32 %v164, 4294901760
  %v5672 = vsub.f32 %v164, %v5671
  %v5673 = vand.u32 %v5672, 4294901760
  %5674 = vmatpush.msra.mxu0 %v5673
  %v5675 = vand.u32 %v156, 4294901760
  %v5676 = vsub.f32 %v156, %v5675
  %v5677 = vand.u32 %v5676, 4294901760
  %5678 = vmatpush.msra.mxu0 %v5677
  %v5679 = vand.u32 %v148, 4294901760
  %v5680 = vsub.f32 %v148, %v5679
  %v5681 = vand.u32 %v5680, 4294901760
  %5682 = vmatpush.msra.mxu0 %v5681
  %v5683 = vand.u32 %v12, 4294901760
  %5684 = vmatmul.f32.gmra.mxu0 %v5683
  %v5685 = vpop.f32.mrf.mxu0
  %v5686 = vadd.f32 %v5617, %v5685
  %5687 = vdwg.mxu0
  %v5688 = vand.u32 %v268, 4294901760
  %5689 = vmatpush.msra.mxu0 %v5688
  %v5690 = vand.u32 %v260, 4294901760
  %5691 = vmatpush.msra.mxu0 %v5690
  %v5692 = vand.u32 %v252, 4294901760
  %5693 = vmatpush.msra.mxu0 %v5692
  %v5694 = vand.u32 %v244, 4294901760
  %5695 = vmatpush.msra.mxu0 %v5694
  %v5696 = vand.u32 %v236, 4294901760
  %5697 = vmatpush.msra.mxu0 %v5696
  %v5698 = vand.u32 %v228, 4294901760
  %5699 = vmatpush.msra.mxu0 %v5698
  %v5700 = vand.u32 %v220, 4294901760
  %5701 = vmatpush.msra.mxu0 %v5700
  %v5702 = vand.u32 %v212, 4294901760
  %5703 = vmatpush.msra.mxu0 %v5702
  %v5704 = vand.u32 %v204, 4294901760
  %5705 = vmatpush.msra.mxu0 %v5704
  %v5706 = vand.u32 %v196, 4294901760
  %5707 = vmatpush.msra.mxu0 %v5706
  %v5708 = vand.u32 %v188, 4294901760
  %5709 = vmatpush.msra.mxu0 %v5708
  %v5710 = vand.u32 %v180, 4294901760
  %5711 = vmatpush.msra.mxu0 %v5710
  %v5712 = vand.u32 %v172, 4294901760
  %5713 = vmatpush.msra.mxu0 %v5712
  %v5714 = vand.u32 %v164, 4294901760
  %5715 = vmatpush.msra.mxu0 %v5714
  %v5716 = vand.u32 %v156, 4294901760
  %5717 = vmatpush.msra.mxu0 %v5716
  %v5718 = vand.u32 %v148, 4294901760
  %5719 = vmatpush.msra.mxu0 %v5718
  %v5720 = vand.u32 %v12, 4294901760
  %5721 = vmatmul.f32.gmra.mxu0 %v5720
  %v5722 = vpop.f32.mrf.mxu0
  %v5723 = vadd.f32 %v5686, %v5722
  %5724 = vdwg.mxu0
  %5725 = vst [vmem:[%s2] sm:$0xff] %v949
  %5726 = vst [vmem:[%s2 + $0x8] sm:$0xff] %v1631
  %5727 = vst [vmem:[%s2 + $0x10] sm:$0xff] %v2313
  %5728 = vst [vmem:[%s2 + $0x18] sm:$0xff] %v2995
  %5729 = vst [vmem:[%s2 + $0x20] sm:$0xff] %v3677
  %5730 = vst [vmem:[%s2 + $0x28] sm:$0xff] %v4359
  %5731 = vst [vmem:[%s2 + $0x30] sm:$0xff] %v5041
  %5732 = vst [vmem:[%s2 + $0x38] sm:$0xff] %v5723
  // Predicated region
  $region10: #{interpolate.1} parent=0 // pred_check
    _
  $region11: #{interpolate.1} parent=0 // pred_check_branch
    %5734 = sbr.rel (0) target = $region13
  $region12: #{interpolate.1} parent=0 // pred_region
    _
  $region13: #{interpolate.1} parent=0 // pred_fallthru
    _
  // Predicated region
  $region14: #{interpolate.1} parent=0 // pred_check
    _
  $region15: #{interpolate.1} parent=0 // pred_check_branch
    %5736 = sbr.rel (0) target = $region17
  $region16: #{interpolate.1} parent=0 // pred_region
    _
  $region17: #{interpolate.1} parent=0 // pred_fallthru
    _

</llo_original>
